<compile_context>
chip_gen: v7x
topology: tpu7x:2x2x1
jax: 0.10.0
libtpu: 0.0.40
codegen_flags: <defaults>
</compile_context>

<pallas_src>
import functools

import jax
import jax.numpy as jnp
import numpy as np
from jax import lax
from jax.experimental import pallas as pl
from jax.experimental.pallas import tpu as pltpu


# ---------------------------------------------------------------------------
# Fused kernel
# ---------------------------------------------------------------------------
def _fused_bottleneck_kernel(x_ref, xup_ref, xdn_ref,
                             w1_ref, s1_ref, b1_ref,
                             w2_ref, s2_ref, b2_ref,
                             w3_ref, s3_ref, b3_ref,
                             o_ref, h1pad_ref,
                             *, th, W, Cin, Cmid, d, cdt):
    i = pl.program_id(1)
    n_tiles = pl.num_programs(1)

    w1 = w1_ref[...].astype(cdt)
    s1 = s1_ref[...]
    b1 = b1_ref[...]

    def cbr1(x_rows, rows):
        """cbr_1 on `rows` image rows: (rows, W, Cin) f32 -> (rows, W, Cmid) f32."""
        y = jnp.dot(x_rows.reshape(rows * W, Cin).astype(cdt), w1,
                    preferred_element_type=jnp.float32)
        y = jnp.maximum(y * s1 + b1, 0.0)
        return y.reshape(rows, W, Cmid)

    # Zero-filled padded h1 tile: the zero halo realises the 3x3 conv's 'same' padding
    # applied to h1 (boundary halos that fall outside the image simply stay zero).
    h1pad_ref[...] = jnp.zeros_like(h1pad_ref)
    h1pad_ref[d:d + th, d:d + W, :] = cbr1(x_ref[0], th)

    @pl.when(i > 0)
    def _():                                  # top halo: last d rows of the tile above
        h1pad_ref[0:d, d:d + W, :] = cbr1(xup_ref[0], d)

    @pl.when(i < n_tiles - 1)
    def _():                                  # bottom halo: first d rows of the tile below
        h1pad_ref[th + d:th + 2 * d, d:d + W, :] = cbr1(xdn_ref[0], d)

    # cbr_2: dilated 3x3 conv as 9 shifted matmuls over the padded h1 tile.
    acc = jnp.zeros((th * W, Cmid), jnp.float32)
    for ky in range(3):
        for kx in range(3):
            patch = h1pad_ref[ky * d:ky * d + th, kx * d:kx * d + W, :]
            acc = acc + jnp.dot(patch.reshape(th * W, Cmid).astype(cdt),
                                w2_ref[ky, kx].astype(cdt),
                                preferred_element_type=jnp.float32)
    h2 = jnp.maximum(acc * s2_ref[...] + b2_ref[...], 0.0)

    # cb_3 + residual + ReLU epilogue (residual reuses the already-resident x tile).
    y = jnp.dot(h2.astype(cdt), w3_ref[...].astype(cdt),
                preferred_element_type=jnp.float32)
    y = y * s3_ref[...] + b3_ref[...] + x_ref[0].reshape(th * W, Cin)
    o_ref[...] = jnp.maximum(y, 0.0).reshape(1, th, W, Cin).astype(o_ref.dtype)


# ---------------------------------------------------------------------------
# Tile-size / VMEM budgeting
# ---------------------------------------------------------------------------
_VMEM_TILE_BUDGET = 36 * 2**20    # conservative across v5e/v6e (128 MiB) and v7x (64 MiB)
_VMEM_LIMIT_BYTES = 48 * 2**20


def _fused_vmem_bytes(th, W, Cin, Cmid, d):
    f32 = 4
    io = th * W * Cin + 2 * d * W * Cin + th * W * Cin        # x tile + halos + out tile
    wts = Cin * Cmid + 9 * Cmid * Cmid + Cmid * Cin + 2 * (Cmid + Cin)
    scratch = (th + 2 * d) * (W + 2 * d) * Cmid
    live = 6 * th * W * max(Cin, Cmid)                        # accumulator / temporaries
    return f32 * (2 * (io + wts) + scratch + live)            # x2: double-buffered blocks


def _pick_tile_h(H, W, Cin, Cmid, d, budget=_VMEM_TILE_BUDGET):
    chosen = H
    for th in range(H, 0, -1):
        if H % th:
            continue
        if th != H and th % d:
            continue     # halo BlockSpecs need d | tile_h when the H axis is tiled
        chosen = th
        if _fused_vmem_bytes(th, W, Cin, Cmid, d) <= budget:
            return th
    return chosen


# ---------------------------------------------------------------------------
# Pallas wrapper (NHWC core + NCHW interface)
# ---------------------------------------------------------------------------
def _fold_bn(gamma, beta, mean, var, eps=1e-5):
    s = gamma / jnp.sqrt(var + eps)
    b = beta - mean * s
    return s.reshape(1, -1).astype(jnp.float32), b.reshape(1, -1).astype(jnp.float32)


def _bottleneck_psp_nhwc(x, params, *, dilation, compute_dtype=jnp.bfloat16, tile_h=None):
    N, H, W, Cin = x.shape
    Cmid = params["w1"].shape[-1]
    d = int(dilation)

    s1, b1 = _fold_bn(*params["bn1"])
    s2, b2 = _fold_bn(*params["bn2"])
    s3, b3 = _fold_bn(*params["bn3"])
    w1 = params["w1"].reshape(Cin, Cmid)
    w2 = params["w2"]                       # (3, 3, Cmid, Cmid)
    w3 = params["w3"].reshape(Cmid, Cin)

    th = _pick_tile_h(H, W, Cin, Cmid, d) if tile_h is None else int(tile_h)
    if H % th:
        raise ValueError(f"tile_h={th} must divide H={H}")
    n_tiles = H // th
    if n_tiles > 1 and th % d:
        raise ValueError(f"tile_h={th} must be a multiple of dilation={d} when H is tiled")

    if n_tiles == 1:
        up_map = lambda n, i: (n, 0, 0, 0)          # halo blocks unused (masked in kernel)
        dn_map = lambda n, i: (n, 0, 0, 0)
    else:
        r = th // d
        last = H // d - 1
        up_map = lambda n, i: (n, jnp.maximum(i * r - 1, 0), 0, 0)
        dn_map = lambda n, i: (n, jnp.minimum((i + 1) * r, last), 0, 0)

    kernel = functools.partial(_fused_bottleneck_kernel,
                               th=th, W=W, Cin=Cin, Cmid=Cmid, d=d, cdt=compute_dtype)

    return pl.pallas_call(
        kernel,
        out_shape=jax.ShapeDtypeStruct((N, H, W, Cin), jnp.float32),
        grid_spec=pltpu.PrefetchScalarGridSpec(
            num_scalar_prefetch=0,
            grid=(N, n_tiles),
            in_specs=[
                pl.BlockSpec((1, th, W, Cin), lambda n, i: (n, i, 0, 0)),  # x tile (+residual)
                pl.BlockSpec((1, d, W, Cin), up_map),                      # d rows above tile
                pl.BlockSpec((1, d, W, Cin), dn_map),                      # d rows below tile
                pl.BlockSpec((Cin, Cmid), lambda n, i: (0, 0)),            # w1
                pl.BlockSpec((1, Cmid), lambda n, i: (0, 0)),              # s1
                pl.BlockSpec((1, Cmid), lambda n, i: (0, 0)),              # b1
                pl.BlockSpec((3, 3, Cmid, Cmid), lambda n, i: (0, 0, 0, 0)),  # w2
                pl.BlockSpec((1, Cmid), lambda n, i: (0, 0)),              # s2
                pl.BlockSpec((1, Cmid), lambda n, i: (0, 0)),              # b2
                pl.BlockSpec((Cmid, Cin), lambda n, i: (0, 0)),            # w3
                pl.BlockSpec((1, Cin), lambda n, i: (0, 0)),               # s3
                pl.BlockSpec((1, Cin), lambda n, i: (0, 0)),               # b3
            ],
            out_specs=pl.BlockSpec((1, th, W, Cin), lambda n, i: (n, i, 0, 0)),
            scratch_shapes=[pltpu.VMEM((th + 2 * d, W + 2 * d, Cmid), jnp.float32)],
        ),
        compiler_params=pltpu.CompilerParams(
            dimension_semantics=("parallel", "parallel"),
            vmem_limit_bytes=_VMEM_LIMIT_BYTES,
        ),
    )(x, x, x, w1, s1, b1, w2, s2, b2, w3, s3, b3)


def bottleneck_identify_psp(x_nchw, params, *, dilation,
                            compute_dtype=jnp.bfloat16, tile_h=None):
    """Forward pass matching the PyTorch module. Input/Output: NCHW float32."""
    # TODO(synk): in an end-to-end NHWC pipeline these boundary transposes disappear; they
    #             are kept only to match the PyTorch NCHW interface.
    x = jnp.transpose(x_nchw, (0, 2, 3, 1)).astype(jnp.float32)
    out = _bottleneck_psp_nhwc(x, params, dilation=dilation,
                               compute_dtype=compute_dtype, tile_h=tile_h)
    return jnp.transpose(out, (0, 3, 1, 2))


# ---------------------------------------------------------------------------
# Parameter init + plain-JAX reference (same bf16 rounding points as the kernel)
# ---------------------------------------------------------------------------
def init_params(key, in_channels, mid_channels):
    ks = jax.random.split(key, 6)

    def conv_w(k, kh, kw, cin, cout):
        fan_in = kh * kw * cin
        return jax.random.normal(k, (kh, kw, cin, cout), jnp.float32) / np.sqrt(fan_in)

    def bn(k, c):
        k1, k2, k3, k4 = jax.random.split(k, 4)
        gamma = 0.5 + jax.random.uniform(k1, (c,), jnp.float32)     # positive
        beta = 0.1 * jax.random.normal(k2, (c,), jnp.float32)
        mean = 0.1 * jax.random.normal(k3, (c,), jnp.float32)
        var = 0.5 + jax.random.uniform(k4, (c,), jnp.float32)       # positive
        return gamma, beta, mean, var

    p = {}
    p["w1"] = conv_w(ks[0], 1, 1, in_channels, mid_channels)        # HWIO
    p["bn1"] = bn(ks[1], mid_channels)
    p["w2"] = conv_w(ks[2], 3, 3, mid_channels, mid_channels)
    p["bn2"] = bn(ks[3], mid_channels)
    p["w3"] = conv_w(ks[4], 1, 1, mid_channels, in_channels)
    p["bn3"] = bn(ks[5], in_channels)
    return p


def _reference(x_nchw, params, *, dilation, compute_dtype=jnp.bfloat16):
    x = jnp.transpose(x_nchw, (0, 2, 3, 1)).astype(jnp.float32)
    dn = ("NHWC", "HWIO", "NHWC")
    s1, b1 = _fold_bn(*params["bn1"])
    s2, b2 = _fold_bn(*params["bn2"])
    s3, b3 = _fold_bn(*params["bn3"])

    def conv(h, w, padding, dil):
        return lax.conv_general_dilated(
            h.astype(compute_dtype), w.astype(compute_dtype), (1, 1), padding,
            rhs_dilation=dil, dimension_numbers=dn,
            preferred_element_type=jnp.float32)

    h = conv(x, params["w1"], "VALID", (1, 1))
    h = jnp.maximum(h * s1.reshape(1, 1, 1, -1) + b1.reshape(1, 1, 1, -1), 0.0)
    h = conv(h, params["w2"], ((dilation, dilation), (dilation, dilation)),
             (dilation, dilation))
    h = jnp.maximum(h * s2.reshape(1, 1, 1, -1) + b2.reshape(1, 1, 1, -1), 0.0)
    h = conv(h, params["w3"], "VALID", (1, 1))
    h = h * s3.reshape(1, 1, 1, -1) + b3.reshape(1, 1, 1, -1)
    out = jnp.maximum(h + x, 0.0)
    return jnp.transpose(out, (0, 3, 1, 2))


if __name__ == "__main__":
    # Small shapes consistent with the module: N=2, in_channels=4, mid_channels=2,
    # H=W=16 (the module's stride arg is unused in its forward path).
    N, Cin, Cmid, H, W = 2, 4, 2, 16, 16

    key = jax.random.PRNGKey(0)
    kx_, kp = jax.random.split(key)
    x = jax.random.normal(kx_, (N, Cin, H, W), jnp.float32)
    params = init_params(kp, Cin, Cmid)

    # Three configs: auto tile (single-tile path), explicit row tiling (halo path),
    # and a different dilation with 4-row tiles.
    for dilation, tile_h in ((2, None), (2, 8), (1, 4)):
        out = jax.block_until_ready(
            bottleneck_identify_psp(x, params, dilation=dilation, tile_h=tile_h))
        ref = jax.block_until_ready(_reference(x, params, dilation=dilation))
        np.testing.assert_allclose(np.asarray(out), np.asarray(ref),
                                   rtol=5e-3, atol=5e-3)

    print("KERNEL_OK")
</pallas_src>

<mosaic_0001>
module attributes {stable_mosaic.version = 11 : i64} {
  func.func @_fused_bottleneck_kernel(%arg0: i32, %arg1: i32, %arg2: memref<1x16x16x4xf32, #tpu.memory_space<vmem>>, %arg3: memref<1x2x16x4xf32, #tpu.memory_space<vmem>>, %arg4: memref<1x2x16x4xf32, #tpu.memory_space<vmem>>, %arg5: memref<4x2xf32, #tpu.memory_space<vmem>>, %arg6: memref<1x2xf32, #tpu.memory_space<vmem>>, %arg7: memref<1x2xf32, #tpu.memory_space<vmem>>, %arg8: memref<3x3x2x2xf32, #tpu.memory_space<vmem>>, %arg9: memref<1x2xf32, #tpu.memory_space<vmem>>, %arg10: memref<1x2xf32, #tpu.memory_space<vmem>>, %arg11: memref<2x4xf32, #tpu.memory_space<vmem>>, %arg12: memref<1x4xf32, #tpu.memory_space<vmem>>, %arg13: memref<1x4xf32, #tpu.memory_space<vmem>>, %arg14: memref<1x16x16x4xf32, #tpu.memory_space<vmem>>, %arg15: memref<20x20x2xf32, #tpu.memory_space<vmem>>) attributes {dimension_semantics = [#tpu.dimension_semantics<parallel>, #tpu.dimension_semantics<parallel>], iteration_bounds = array<i64: 2, 1>, scalar_prefetch = 0 : i64, scratch_operands = 1 : i64, tpu.core_type = #tpu.core_type<tc>, window_params = [{transform_indices = @transform_0, window_bounds = array<i64: 1, 16, 16, 4>}, {transform_indices = @transform_1, window_bounds = array<i64: 1, 2, 16, 4>}, {transform_indices = @transform_2, window_bounds = array<i64: 1, 2, 16, 4>}, {pipeline_mode = #tpu.pipeline_mode<synchronous>, transform_indices = @transform_3, window_bounds = array<i64: 4, 2>}, {pipeline_mode = #tpu.pipeline_mode<synchronous>, transform_indices = @transform_4, window_bounds = array<i64: 1, 2>}, {pipeline_mode = #tpu.pipeline_mode<synchronous>, transform_indices = @transform_5, window_bounds = array<i64: 1, 2>}, {pipeline_mode = #tpu.pipeline_mode<synchronous>, transform_indices = @transform_6, window_bounds = array<i64: 3, 3, 2, 2>}, {pipeline_mode = #tpu.pipeline_mode<synchronous>, transform_indices = @transform_7, window_bounds = array<i64: 1, 2>}, {pipeline_mode = #tpu.pipeline_mode<synchronous>, transform_indices = @transform_8, window_bounds = array<i64: 1, 2>}, {pipeline_mode = #tpu.pipeline_mode<synchronous>, transform_indices = @transform_9, window_bounds = array<i64: 2, 4>}, {pipeline_mode = #tpu.pipeline_mode<synchronous>, transform_indices = @transform_10, window_bounds = array<i64: 1, 4>}, {pipeline_mode = #tpu.pipeline_mode<synchronous>, transform_indices = @transform_11, window_bounds = array<i64: 1, 4>}, {transform_indices = @transform_12, window_bounds = array<i64: 1, 16, 16, 4>}]} {
    %c0 = arith.constant 0 : index
    %c0_0 = arith.constant 0 : index
    %0 = vector.load %arg5[%c0, %c0_0] : memref<4x2xf32, #tpu.memory_space<vmem>>, vector<4x2xf32>
    %1 = arith.truncf %0 : vector<4x2xf32> to vector<4x2xbf16>
    %c0_1 = arith.constant 0 : index
    %c0_2 = arith.constant 0 : index
    %2 = vector.load %arg6[%c0_1, %c0_2] : memref<1x2xf32, #tpu.memory_space<vmem>>, vector<1x2xf32>
    %c0_3 = arith.constant 0 : index
    %c0_4 = arith.constant 0 : index
    %3 = vector.load %arg7[%c0_3, %c0_4] : memref<1x2xf32, #tpu.memory_space<vmem>>, vector<1x2xf32>
    %cst = arith.constant 0.000000e+00 : f32
    %4 = vector.broadcast %cst : f32 to vector<20x20x2xf32>
    %c0_5 = arith.constant 0 : index
    %c0_6 = arith.constant 0 : index
    %c0_7 = arith.constant 0 : index
    %5 = vector.load %arg15[%c0_5, %c0_6, %c0_7] : memref<20x20x2xf32, #tpu.memory_space<vmem>>, vector<20x20x2xf32>
    tpu.vector_store %arg15[%c0_5, %c0_6, %c0_7], %4 {strides = array<i32>} : memref<20x20x2xf32, #tpu.memory_space<vmem>>, vector<20x20x2xf32>,
    %c0_8 = arith.constant 0 : index
    %c0_9 = arith.constant 0 : index
    %c0_10 = arith.constant 0 : index
    %c0_11 = arith.constant 0 : index
    %6 = vector.load %arg2[%c0_8, %c0_9, %c0_10, %c0_11] : memref<1x16x16x4xf32, #tpu.memory_space<vmem>>, vector<1x16x16x4xf32>
    %7 = vector.shape_cast %6 : vector<1x16x16x4xf32> to vector<16x16x4xf32>
    %8 = vector.shape_cast %7 : vector<16x16x4xf32> to vector<256x4xf32>
    %9 = arith.truncf %8 : vector<256x4xf32> to vector<256x4xbf16>
    %cst_12 = arith.constant dense<0.000000e+00> : vector<256x2xf32>
    %10 = tpu.matmul %9, %1, %cst_12 {dimension_numbers = #tpu.dot_dimension_numbers<[1], [0], [0], [1], [0, 0, 1, 1], [], []>} : vector<256x4xbf16>, vector<4x2xbf16>, vector<256x2xf32> -> vector<256x2xf32>
    %11 = vector.broadcast %2 : vector<1x2xf32> to vector<256x2xf32>
    %12 = arith.mulf %10, %11 : vector<256x2xf32>
    %13 = vector.broadcast %3 : vector<1x2xf32> to vector<256x2xf32>
    %14 = arith.addf %12, %13 : vector<256x2xf32>
    %cst_13 = arith.constant 0.000000e+00 : f32
    %15 = vector.broadcast %cst_13 : f32 to vector<256x2xf32>
    %16 = arith.maximumf %14, %15 : vector<256x2xf32>
    %17 = vector.shape_cast %16 : vector<256x2xf32> to vector<16x16x2xf32>
    %c2 = arith.constant 2 : index
    %c2_14 = arith.constant 2 : index
    %c0_15 = arith.constant 0 : index
    %18 = vector.load %arg15[%c2, %c2_14, %c0_15] : memref<20x20x2xf32, #tpu.memory_space<vmem>>, vector<16x16x2xf32>
    tpu.vector_store %arg15[%c2, %c2_14, %c0_15], %17 {strides = array<i32>} : memref<20x20x2xf32, #tpu.memory_space<vmem>>, vector<16x16x2xf32>,
    %c0_i32 = arith.constant 0 : i32
    %19 = arith.cmpi sgt, %arg1, %c0_i32 : i32
    %20 = arith.extui %19 : i1 to i32
    %c0_i32_16 = arith.constant 0 : i32
    %21 = arith.cmpi ne, %20, %c0_i32_16 : i32
    scf.if %21 {
      %c0_111 = arith.constant 0 : index
      %c0_112 = arith.constant 0 : index
      %c0_113 = arith.constant 0 : index
      %c0_114 = arith.constant 0 : index
      %124 = vector.load %arg3[%c0_111, %c0_112, %c0_113, %c0_114] : memref<1x2x16x4xf32, #tpu.memory_space<vmem>>, vector<1x2x16x4xf32>
      %125 = vector.shape_cast %124 : vector<1x2x16x4xf32> to vector<2x16x4xf32>
      %126 = vector.shape_cast %125 : vector<2x16x4xf32> to vector<32x4xf32>
      %127 = arith.truncf %126 : vector<32x4xf32> to vector<32x4xbf16>
      %cst_115 = arith.constant dense<0.000000e+00> : vector<32x2xf32>
      %128 = tpu.matmul %127, %1, %cst_115 {dimension_numbers = #tpu.dot_dimension_numbers<[1], [0], [0], [1], [0, 0, 1, 1], [], []>} : vector<32x4xbf16>, vector<4x2xbf16>, vector<32x2xf32> -> vector<32x2xf32>
      %129 = vector.broadcast %2 : vector<1x2xf32> to vector<32x2xf32>
      %130 = arith.mulf %128, %129 : vector<32x2xf32>
      %131 = vector.broadcast %3 : vector<1x2xf32> to vector<32x2xf32>
      %132 = arith.addf %130, %131 : vector<32x2xf32>
      %cst_116 = arith.constant 0.000000e+00 : f32
      %133 = vector.broadcast %cst_116 : f32 to vector<32x2xf32>
      %134 = arith.maximumf %132, %133 : vector<32x2xf32>
      %135 = vector.shape_cast %134 : vector<32x2xf32> to vector<2x16x2xf32>
      %c0_117 = arith.constant 0 : index
      %c2_118 = arith.constant 2 : index
      %c0_119 = arith.constant 0 : index
      %136 = vector.load %arg15[%c0_117, %c2_118, %c0_119] : memref<20x20x2xf32, #tpu.memory_space<vmem>>, vector<2x16x2xf32>
      tpu.vector_store %arg15[%c0_117, %c2_118, %c0_119], %135 {strides = array<i32>} : memref<20x20x2xf32, #tpu.memory_space<vmem>>, vector<2x16x2xf32>,
    } else {
    }
    %c0_i32_17 = arith.constant 0 : i32
    %22 = arith.cmpi slt, %arg1, %c0_i32_17 : i32
    %23 = arith.extui %22 : i1 to i32
    %c0_i32_18 = arith.constant 0 : i32
    %24 = arith.cmpi ne, %23, %c0_i32_18 : i32
    scf.if %24 {
      %c0_111 = arith.constant 0 : index
      %c0_112 = arith.constant 0 : index
      %c0_113 = arith.constant 0 : index
      %c0_114 = arith.constant 0 : index
      %124 = vector.load %arg4[%c0_111, %c0_112, %c0_113, %c0_114] : memref<1x2x16x4xf32, #tpu.memory_space<vmem>>, vector<1x2x16x4xf32>
      %125 = vector.shape_cast %124 : vector<1x2x16x4xf32> to vector<2x16x4xf32>
      %126 = vector.shape_cast %125 : vector<2x16x4xf32> to vector<32x4xf32>
      %127 = arith.truncf %126 : vector<32x4xf32> to vector<32x4xbf16>
      %cst_115 = arith.constant dense<0.000000e+00> : vector<32x2xf32>
      %128 = tpu.matmul %127, %1, %cst_115 {dimension_numbers = #tpu.dot_dimension_numbers<[1], [0], [0], [1], [0, 0, 1, 1], [], []>} : vector<32x4xbf16>, vector<4x2xbf16>, vector<32x2xf32> -> vector<32x2xf32>
      %129 = vector.broadcast %2 : vector<1x2xf32> to vector<32x2xf32>
      %130 = arith.mulf %128, %129 : vector<32x2xf32>
      %131 = vector.broadcast %3 : vector<1x2xf32> to vector<32x2xf32>
      %132 = arith.addf %130, %131 : vector<32x2xf32>
      %cst_116 = arith.constant 0.000000e+00 : f32
      %133 = vector.broadcast %cst_116 : f32 to vector<32x2xf32>
      %134 = arith.maximumf %132, %133 : vector<32x2xf32>
      %135 = vector.shape_cast %134 : vector<32x2xf32> to vector<2x16x2xf32>
      %c18 = arith.constant 18 : index
      %c2_117 = arith.constant 2 : index
      %c0_118 = arith.constant 0 : index
      %136 = vector.load %arg15[%c18, %c2_117, %c0_118] : memref<20x20x2xf32, #tpu.memory_space<vmem>>, vector<2x16x2xf32>
      tpu.vector_store %arg15[%c18, %c2_117, %c0_118], %135 {strides = array<i32>} : memref<20x20x2xf32, #tpu.memory_space<vmem>>, vector<2x16x2xf32>,
    } else {
    }
    %cst_19 = arith.constant 0.000000e+00 : f32
    %25 = vector.broadcast %cst_19 : f32 to vector<256x2xf32>
    %c0_20 = arith.constant 0 : index
    %c0_21 = arith.constant 0 : index
    %c0_22 = arith.constant 0 : index
    %26 = vector.load %arg15[%c0_20, %c0_21, %c0_22] : memref<20x20x2xf32, #tpu.memory_space<vmem>>, vector<16x16x2xf32>
    %27 = vector.shape_cast %26 : vector<16x16x2xf32> to vector<256x2xf32>
    %28 = arith.truncf %27 : vector<256x2xf32> to vector<256x2xbf16>
    %c0_23 = arith.constant 0 : index
    %c0_24 = arith.constant 0 : index
    %c0_25 = arith.constant 0 : index
    %c0_26 = arith.constant 0 : index
    %29 = vector.load %arg8[%c0_23, %c0_24, %c0_25, %c0_26] : memref<3x3x2x2xf32, #tpu.memory_space<vmem>>, vector<1x1x2x2xf32>
    %30 = vector.shape_cast %29 : vector<1x1x2x2xf32> to vector<2x2xf32>
    %31 = arith.truncf %30 : vector<2x2xf32> to vector<2x2xbf16>
    %cst_27 = arith.constant dense<0.000000e+00> : vector<256x2xf32>
    %32 = tpu.matmul %28, %31, %cst_27 {dimension_numbers = #tpu.dot_dimension_numbers<[1], [0], [0], [1], [0, 0, 1, 1], [], []>} : vector<256x2xbf16>, vector<2x2xbf16>, vector<256x2xf32> -> vector<256x2xf32>
    %33 = arith.addf %25, %32 : vector<256x2xf32>
    %c0_28 = arith.constant 0 : index
    %c2_29 = arith.constant 2 : index
    %c0_30 = arith.constant 0 : index
    %34 = vector.load %arg15[%c0_28, %c2_29, %c0_30] : memref<20x20x2xf32, #tpu.memory_space<vmem>>, vector<16x16x2xf32>
    %35 = vector.shape_cast %34 : vector<16x16x2xf32> to vector<256x2xf32>
    %36 = arith.truncf %35 : vector<256x2xf32> to vector<256x2xbf16>
    %c0_31 = arith.constant 0 : index
    %c1 = arith.constant 1 : index
    %c0_32 = arith.constant 0 : index
    %c0_33 = arith.constant 0 : index
    %37 = vector.load %arg8[%c0_31, %c1, %c0_32, %c0_33] : memref<3x3x2x2xf32, #tpu.memory_space<vmem>>, vector<1x1x2x2xf32>
    %38 = vector.shape_cast %37 : vector<1x1x2x2xf32> to vector<2x2xf32>
    %39 = arith.truncf %38 : vector<2x2xf32> to vector<2x2xbf16>
    %cst_34 = arith.constant dense<0.000000e+00> : vector<256x2xf32>
    %40 = tpu.matmul %36, %39, %cst_34 {dimension_numbers = #tpu.dot_dimension_numbers<[1], [0], [0], [1], [0, 0, 1, 1], [], []>} : vector<256x2xbf16>, vector<2x2xbf16>, vector<256x2xf32> -> vector<256x2xf32>
    %41 = arith.addf %33, %40 : vector<256x2xf32>
    %c0_35 = arith.constant 0 : index
    %c4 = arith.constant 4 : index
    %c0_36 = arith.constant 0 : index
    %42 = vector.load %arg15[%c0_35, %c4, %c0_36] : memref<20x20x2xf32, #tpu.memory_space<vmem>>, vector<16x16x2xf32>
    %43 = vector.shape_cast %42 : vector<16x16x2xf32> to vector<256x2xf32>
    %44 = arith.truncf %43 : vector<256x2xf32> to vector<256x2xbf16>
    %c0_37 = arith.constant 0 : index
    %c2_38 = arith.constant 2 : index
    %c0_39 = arith.constant 0 : index
    %c0_40 = arith.constant 0 : index
    %45 = vector.load %arg8[%c0_37, %c2_38, %c0_39, %c0_40] : memref<3x3x2x2xf32, #tpu.memory_space<vmem>>, vector<1x1x2x2xf32>
    %46 = vector.shape_cast %45 : vector<1x1x2x2xf32> to vector<2x2xf32>
    %47 = arith.truncf %46 : vector<2x2xf32> to vector<2x2xbf16>
    %cst_41 = arith.constant dense<0.000000e+00> : vector<256x2xf32>
    %48 = tpu.matmul %44, %47, %cst_41 {dimension_numbers = #tpu.dot_dimension_numbers<[1], [0], [0], [1], [0, 0, 1, 1], [], []>} : vector<256x2xbf16>, vector<2x2xbf16>, vector<256x2xf32> -> vector<256x2xf32>
    %49 = arith.addf %41, %48 : vector<256x2xf32>
    %c2_42 = arith.constant 2 : index
    %c0_43 = arith.constant 0 : index
    %c0_44 = arith.constant 0 : index
    %50 = vector.load %arg15[%c2_42, %c0_43, %c0_44] : memref<20x20x2xf32, #tpu.memory_space<vmem>>, vector<16x16x2xf32>
    %51 = vector.shape_cast %50 : vector<16x16x2xf32> to vector<256x2xf32>
    %52 = arith.truncf %51 : vector<256x2xf32> to vector<256x2xbf16>
    %c1_45 = arith.constant 1 : index
    %c0_46 = arith.constant 0 : index
    %c0_47 = arith.constant 0 : index
    %c0_48 = arith.constant 0 : index
    %53 = vector.load %arg8[%c1_45, %c0_46, %c0_47, %c0_48] : memref<3x3x2x2xf32, #tpu.memory_space<vmem>>, vector<1x1x2x2xf32>
    %54 = vector.shape_cast %53 : vector<1x1x2x2xf32> to vector<2x2xf32>
    %55 = arith.truncf %54 : vector<2x2xf32> to vector<2x2xbf16>
    %cst_49 = arith.constant dense<0.000000e+00> : vector<256x2xf32>
    %56 = tpu.matmul %52, %55, %cst_49 {dimension_numbers = #tpu.dot_dimension_numbers<[1], [0], [0], [1], [0, 0, 1, 1], [], []>} : vector<256x2xbf16>, vector<2x2xbf16>, vector<256x2xf32> -> vector<256x2xf32>
    %57 = arith.addf %49, %56 : vector<256x2xf32>
    %c2_50 = arith.constant 2 : index
    %c2_51 = arith.constant 2 : index
    %c0_52 = arith.constant 0 : index
    %58 = vector.load %arg15[%c2_50, %c2_51, %c0_52] : memref<20x20x2xf32, #tpu.memory_space<vmem>>, vector<16x16x2xf32>
    %59 = vector.shape_cast %58 : vector<16x16x2xf32> to vector<256x2xf32>
    %60 = arith.truncf %59 : vector<256x2xf32> to vector<256x2xbf16>
    %c1_53 = arith.constant 1 : index
    %c1_54 = arith.constant 1 : index
    %c0_55 = arith.constant 0 : index
    %c0_56 = arith.constant 0 : index
    %61 = vector.load %arg8[%c1_53, %c1_54, %c0_55, %c0_56] : memref<3x3x2x2xf32, #tpu.memory_space<vmem>>, vector<1x1x2x2xf32>
    %62 = vector.shape_cast %61 : vector<1x1x2x2xf32> to vector<2x2xf32>
    %63 = arith.truncf %62 : vector<2x2xf32> to vector<2x2xbf16>
    %cst_57 = arith.constant dense<0.000000e+00> : vector<256x2xf32>
    %64 = tpu.matmul %60, %63, %cst_57 {dimension_numbers = #tpu.dot_dimension_numbers<[1], [0], [0], [1], [0, 0, 1, 1], [], []>} : vector<256x2xbf16>, vector<2x2xbf16>, vector<256x2xf32> -> vector<256x2xf32>
    %65 = arith.addf %57, %64 : vector<256x2xf32>
    %c2_58 = arith.constant 2 : index
    %c4_59 = arith.constant 4 : index
    %c0_60 = arith.constant 0 : index
    %66 = vector.load %arg15[%c2_58, %c4_59, %c0_60] : memref<20x20x2xf32, #tpu.memory_space<vmem>>, vector<16x16x2xf32>
    %67 = vector.shape_cast %66 : vector<16x16x2xf32> to vector<256x2xf32>
    %68 = arith.truncf %67 : vector<256x2xf32> to vector<256x2xbf16>
    %c1_61 = arith.constant 1 : index
    %c2_62 = arith.constant 2 : index
    %c0_63 = arith.constant 0 : index
    %c0_64 = arith.constant 0 : index
    %69 = vector.load %arg8[%c1_61, %c2_62, %c0_63, %c0_64] : memref<3x3x2x2xf32, #tpu.memory_space<vmem>>, vector<1x1x2x2xf32>
    %70 = vector.shape_cast %69 : vector<1x1x2x2xf32> to vector<2x2xf32>
    %71 = arith.truncf %70 : vector<2x2xf32> to vector<2x2xbf16>
    %cst_65 = arith.constant dense<0.000000e+00> : vector<256x2xf32>
    %72 = tpu.matmul %68, %71, %cst_65 {dimension_numbers = #tpu.dot_dimension_numbers<[1], [0], [0], [1], [0, 0, 1, 1], [], []>} : vector<256x2xbf16>, vector<2x2xbf16>, vector<256x2xf32> -> vector<256x2xf32>
    %73 = arith.addf %65, %72 : vector<256x2xf32>
    %c4_66 = arith.constant 4 : index
    %c0_67 = arith.constant 0 : index
    %c0_68 = arith.constant 0 : index
    %74 = vector.load %arg15[%c4_66, %c0_67, %c0_68] : memref<20x20x2xf32, #tpu.memory_space<vmem>>, vector<16x16x2xf32>
    %75 = vector.shape_cast %74 : vector<16x16x2xf32> to vector<256x2xf32>
    %76 = arith.truncf %75 : vector<256x2xf32> to vector<256x2xbf16>
    %c2_69 = arith.constant 2 : index
    %c0_70 = arith.constant 0 : index
    %c0_71 = arith.constant 0 : index
    %c0_72 = arith.constant 0 : index
    %77 = vector.load %arg8[%c2_69, %c0_70, %c0_71, %c0_72] : memref<3x3x2x2xf32, #tpu.memory_space<vmem>>, vector<1x1x2x2xf32>
    %78 = vector.shape_cast %77 : vector<1x1x2x2xf32> to vector<2x2xf32>
    %79 = arith.truncf %78 : vector<2x2xf32> to vector<2x2xbf16>
    %cst_73 = arith.constant dense<0.000000e+00> : vector<256x2xf32>
    %80 = tpu.matmul %76, %79, %cst_73 {dimension_numbers = #tpu.dot_dimension_numbers<[1], [0], [0], [1], [0, 0, 1, 1], [], []>} : vector<256x2xbf16>, vector<2x2xbf16>, vector<256x2xf32> -> vector<256x2xf32>
    %81 = arith.addf %73, %80 : vector<256x2xf32>
    %c4_74 = arith.constant 4 : index
    %c2_75 = arith.constant 2 : index
    %c0_76 = arith.constant 0 : index
    %82 = vector.load %arg15[%c4_74, %c2_75, %c0_76] : memref<20x20x2xf32, #tpu.memory_space<vmem>>, vector<16x16x2xf32>
    %83 = vector.shape_cast %82 : vector<16x16x2xf32> to vector<256x2xf32>
    %84 = arith.truncf %83 : vector<256x2xf32> to vector<256x2xbf16>
    %c2_77 = arith.constant 2 : index
    %c1_78 = arith.constant 1 : index
    %c0_79 = arith.constant 0 : index
    %c0_80 = arith.constant 0 : index
    %85 = vector.load %arg8[%c2_77, %c1_78, %c0_79, %c0_80] : memref<3x3x2x2xf32, #tpu.memory_space<vmem>>, vector<1x1x2x2xf32>
    %86 = vector.shape_cast %85 : vector<1x1x2x2xf32> to vector<2x2xf32>
    %87 = arith.truncf %86 : vector<2x2xf32> to vector<2x2xbf16>
    %cst_81 = arith.constant dense<0.000000e+00> : vector<256x2xf32>
    %88 = tpu.matmul %84, %87, %cst_81 {dimension_numbers = #tpu.dot_dimension_numbers<[1], [0], [0], [1], [0, 0, 1, 1], [], []>} : vector<256x2xbf16>, vector<2x2xbf16>, vector<256x2xf32> -> vector<256x2xf32>
    %89 = arith.addf %81, %88 : vector<256x2xf32>
    %c4_82 = arith.constant 4 : index
    %c4_83 = arith.constant 4 : index
    %c0_84 = arith.constant 0 : index
    %90 = vector.load %arg15[%c4_82, %c4_83, %c0_84] : memref<20x20x2xf32, #tpu.memory_space<vmem>>, vector<16x16x2xf32>
    %91 = vector.shape_cast %90 : vector<16x16x2xf32> to vector<256x2xf32>
    %92 = arith.truncf %91 : vector<256x2xf32> to vector<256x2xbf16>
    %c2_85 = arith.constant 2 : index
    %c2_86 = arith.constant 2 : index
    %c0_87 = arith.constant 0 : index
    %c0_88 = arith.constant 0 : index
    %93 = vector.load %arg8[%c2_85, %c2_86, %c0_87, %c0_88] : memref<3x3x2x2xf32, #tpu.memory_space<vmem>>, vector<1x1x2x2xf32>
    %94 = vector.shape_cast %93 : vector<1x1x2x2xf32> to vector<2x2xf32>
    %95 = arith.truncf %94 : vector<2x2xf32> to vector<2x2xbf16>
    %cst_89 = arith.constant dense<0.000000e+00> : vector<256x2xf32>
    %96 = tpu.matmul %92, %95, %cst_89 {dimension_numbers = #tpu.dot_dimension_numbers<[1], [0], [0], [1], [0, 0, 1, 1], [], []>} : vector<256x2xbf16>, vector<2x2xbf16>, vector<256x2xf32> -> vector<256x2xf32>
    %97 = arith.addf %89, %96 : vector<256x2xf32>
    %c0_90 = arith.constant 0 : index
    %c0_91 = arith.constant 0 : index
    %98 = vector.load %arg9[%c0_90, %c0_91] : memref<1x2xf32, #tpu.memory_space<vmem>>, vector<1x2xf32>
    %99 = vector.broadcast %98 : vector<1x2xf32> to vector<256x2xf32>
    %100 = arith.mulf %97, %99 : vector<256x2xf32>
    %c0_92 = arith.constant 0 : index
    %c0_93 = arith.constant 0 : index
    %101 = vector.load %arg10[%c0_92, %c0_93] : memref<1x2xf32, #tpu.memory_space<vmem>>, vector<1x2xf32>
    %102 = vector.broadcast %101 : vector<1x2xf32> to vector<256x2xf32>
    %103 = arith.addf %100, %102 : vector<256x2xf32>
    %cst_94 = arith.constant 0.000000e+00 : f32
    %104 = vector.broadcast %cst_94 : f32 to vector<256x2xf32>
    %105 = arith.maximumf %103, %104 : vector<256x2xf32>
    %106 = arith.truncf %105 : vector<256x2xf32> to vector<256x2xbf16>
    %c0_95 = arith.constant 0 : index
    %c0_96 = arith.constant 0 : index
    %107 = vector.load %arg11[%c0_95, %c0_96] : memref<2x4xf32, #tpu.memory_space<vmem>>, vector<2x4xf32>
    %108 = arith.truncf %107 : vector<2x4xf32> to vector<2x4xbf16>
    %cst_97 = arith.constant dense<0.000000e+00> : vector<256x4xf32>
    %109 = tpu.matmul %106, %108, %cst_97 {dimension_numbers = #tpu.dot_dimension_numbers<[1], [0], [0], [1], [0, 0, 1, 1], [], []>} : vector<256x2xbf16>, vector<2x4xbf16>, vector<256x4xf32> -> vector<256x4xf32>
    %c0_98 = arith.constant 0 : index
    %c0_99 = arith.constant 0 : index
    %110 = vector.load %arg12[%c0_98, %c0_99] : memref<1x4xf32, #tpu.memory_space<vmem>>, vector<1x4xf32>
    %111 = vector.broadcast %110 : vector<1x4xf32> to vector<256x4xf32>
    %112 = arith.mulf %109, %111 : vector<256x4xf32>
    %c0_100 = arith.constant 0 : index
    %c0_101 = arith.constant 0 : index
    %113 = vector.load %arg13[%c0_100, %c0_101] : memref<1x4xf32, #tpu.memory_space<vmem>>, vector<1x4xf32>
    %114 = vector.broadcast %113 : vector<1x4xf32> to vector<256x4xf32>
    %115 = arith.addf %112, %114 : vector<256x4xf32>
    %c0_102 = arith.constant 0 : index
    %c0_103 = arith.constant 0 : index
    %c0_104 = arith.constant 0 : index
    %c0_105 = arith.constant 0 : index
    %116 = vector.load %arg2[%c0_102, %c0_103, %c0_104, %c0_105] : memref<1x16x16x4xf32, #tpu.memory_space<vmem>>, vector<1x16x16x4xf32>
    %117 = vector.shape_cast %116 : vector<1x16x16x4xf32> to vector<16x16x4xf32>
    %118 = vector.shape_cast %117 : vector<16x16x4xf32> to vector<256x4xf32>
    %119 = arith.addf %115, %118 : vector<256x4xf32>
    %cst_106 = arith.constant 0.000000e+00 : f32
    %120 = vector.broadcast %cst_106 : f32 to vector<256x4xf32>
    %121 = arith.maximumf %119, %120 : vector<256x4xf32>
    %122 = vector.shape_cast %121 : vector<256x4xf32> to vector<1x16x16x4xf32>
    %c0_107 = arith.constant 0 : index
    %c0_108 = arith.constant 0 : index
    %c0_109 = arith.constant 0 : index
    %c0_110 = arith.constant 0 : index
    %123 = vector.load %arg14[%c0_107, %c0_108, %c0_109, %c0_110] : memref<1x16x16x4xf32, #tpu.memory_space<vmem>>, vector<1x16x16x4xf32>
    tpu.vector_store %arg14[%c0_107, %c0_108, %c0_109, %c0_110], %122 {strides = array<i32>} : memref<1x16x16x4xf32, #tpu.memory_space<vmem>>, vector<1x16x16x4xf32>,
    return
  }
  func.func @transform_0(%arg0: i32, %arg1: i32) -> (i32, i32, i32, i32) {
    %c0_i32 = arith.constant 0 : i32
    %c0_i32_0 = arith.constant 0 : i32
    %c0_i32_1 = arith.constant 0 : i32
    return %arg0, %arg1, %c0_i32, %c0_i32_0 : i32, i32, i32, i32
  }
  func.func @transform_1(%arg0: i32, %arg1: i32) -> (i32, i32, i32, i32) {
    %c0_i32 = arith.constant 0 : i32
    %c0_i32_0 = arith.constant 0 : i32
    %c0_i32_1 = arith.constant 0 : i32
    %c0_i32_2 = arith.constant 0 : i32
    return %arg0, %c0_i32, %c0_i32_0, %c0_i32_1 : i32, i32, i32, i32
  }
  func.func @transform_2(%arg0: i32, %arg1: i32) -> (i32, i32, i32, i32) {
    %c0_i32 = arith.constant 0 : i32
    %c0_i32_0 = arith.constant 0 : i32
    %c0_i32_1 = arith.constant 0 : i32
    %c0_i32_2 = arith.constant 0 : i32
    return %arg0, %c0_i32, %c0_i32_0, %c0_i32_1 : i32, i32, i32, i32
  }
  func.func @transform_3(%arg0: i32, %arg1: i32) -> (i32, i32) {
    %c0_i32 = arith.constant 0 : i32
    %c0_i32_0 = arith.constant 0 : i32
    %c0_i32_1 = arith.constant 0 : i32
    return %c0_i32, %c0_i32_0 : i32, i32
  }
  func.func @transform_4(%arg0: i32, %arg1: i32) -> (i32, i32) {
    %c0_i32 = arith.constant 0 : i32
    %c0_i32_0 = arith.constant 0 : i32
    %c0_i32_1 = arith.constant 0 : i32
    return %c0_i32, %c0_i32_0 : i32, i32
  }
  func.func @transform_5(%arg0: i32, %arg1: i32) -> (i32, i32) {
    %c0_i32 = arith.constant 0 : i32
    %c0_i32_0 = arith.constant 0 : i32
    %c0_i32_1 = arith.constant 0 : i32
    return %c0_i32, %c0_i32_0 : i32, i32
  }
  func.func @transform_6(%arg0: i32, %arg1: i32) -> (i32, i32, i32, i32) {
    %c0_i32 = arith.constant 0 : i32
    %c0_i32_0 = arith.constant 0 : i32
    %c0_i32_1 = arith.constant 0 : i32
    %c0_i32_2 = arith.constant 0 : i32
    %c0_i32_3 = arith.constant 0 : i32
    return %c0_i32, %c0_i32_0, %c0_i32_1, %c0_i32_2 : i32, i32, i32, i32
  }
  func.func @transform_7(%arg0: i32, %arg1: i32) -> (i32, i32) {
    %c0_i32 = arith.constant 0 : i32
    %c0_i32_0 = arith.constant 0 : i32
    %c0_i32_1 = arith.constant 0 : i32
    return %c0_i32, %c0_i32_0 : i32, i32
  }
  func.func @transform_8(%arg0: i32, %arg1: i32) -> (i32, i32) {
    %c0_i32 = arith.constant 0 : i32
    %c0_i32_0 = arith.constant 0 : i32
    %c0_i32_1 = arith.constant 0 : i32
    return %c0_i32, %c0_i32_0 : i32, i32
  }
  func.func @transform_9(%arg0: i32, %arg1: i32) -> (i32, i32) {
    %c0_i32 = arith.constant 0 : i32
    %c0_i32_0 = arith.constant 0 : i32
    %c0_i32_1 = arith.constant 0 : i32
    return %c0_i32, %c0_i32_0 : i32, i32
  }
  func.func @transform_10(%arg0: i32, %arg1: i32) -> (i32, i32) {
    %c0_i32 = arith.constant 0 : i32
    %c0_i32_0 = arith.constant 0 : i32
    %c0_i32_1 = arith.constant 0 : i32
    return %c0_i32, %c0_i32_0 : i32, i32
  }
  func.func @transform_11(%arg0: i32, %arg1: i32) -> (i32, i32) {
    %c0_i32 = arith.constant 0 : i32
    %c0_i32_0 = arith.constant 0 : i32
    %c0_i32_1 = arith.constant 0 : i32
    return %c0_i32, %c0_i32_0 : i32, i32
  }
  func.func @transform_12(%arg0: i32, %arg1: i32) -> (i32, i32, i32, i32) {
    %c0_i32 = arith.constant 0 : i32
    %c0_i32_0 = arith.constant 0 : i32
    %c0_i32_1 = arith.constant 0 : i32
    return %arg0, %arg1, %c0_i32, %c0_i32_0 : i32, i32, i32, i32
  }
}

</mosaic_0001>

<llo_original>
// kernel: tpu_custom_call.1
$region0: #{tpu_custom_call.1}
  #allocation0 [shape = 'u32[]', space=smem, size = 0x4, offset = 0x4, fixed_abs, tag = 'smem constant byte address 0x4 - core index']
  #allocation1 [shape = 'u32[144,128]{1,0:T(1,128)}', space=vmem, size = 0x12000, scoped, tag = 'internal scratch']
  #allocation2 [shape = 'f32[20,20,2]{2,1,0:T(8,128)}', space=vmem, size = 0x3c000, scoped, tag = 'scratch operand']
  %s0 = inlined_call_operand.vmem [shape: f32[2,16,16,4], index: 0, kind: input, shape index: {}]
  %s1 = inlined_call_operand.vmem [shape: f32[2,16,16,4], index: 1, kind: input, shape index: {}]
  %s2 = inlined_call_operand.vmem [shape: f32[2,16,16,4], index: 2, kind: input, shape index: {}]
  %s3 = inlined_call_operand.vmem [shape: f32[4,2], index: 3, kind: input, shape index: {}]
  %s4 = inlined_call_operand.vmem [shape: f32[1,2], index: 4, kind: input, shape index: {}]
  %s5 = inlined_call_operand.vmem [shape: f32[1,2], index: 5, kind: input, shape index: {}]
  %s6 = inlined_call_operand.vmem [shape: f32[3,3,2,2], index: 6, kind: input, shape index: {}]
  %s7 = inlined_call_operand.vmem [shape: f32[1,2], index: 7, kind: input, shape index: {}]
  %s8 = inlined_call_operand.vmem [shape: f32[1,2], index: 8, kind: input, shape index: {}]
  %s9 = inlined_call_operand.vmem [shape: f32[2,4], index: 9, kind: input, shape index: {}]
  %s10 = inlined_call_operand.vmem [shape: f32[1,4], index: 10, kind: input, shape index: {}]
  %s11 = inlined_call_operand.vmem [shape: f32[1,4], index: 11, kind: input, shape index: {}]
  %s12 = inlined_call_operand.vmem [shape: f32[2,16,16,4], index: 12, kind: output, shape index: {}]
  %s13 = sld [smem:[#allocation0]]
  $region89: #{tpu_custom_call.1} parent=0
    _
  %s15 = ssub.s32 1, %s13
  %s16 = scalar_select 0, %s15, %s13
  loop: start=0, step=1, limit=4
  $region2: #{tpu_custom_call.1} parent=0 // loop_pre_header
    _
  $region3: #{tpu_custom_call.1} parent=0 // loop_header
    %s18 = sphi 0, %s22
    %p19 = scmp.ge.s32.totalorder %s18, 4
    %s25 = sphi 0, %s37
    %s26 = sphi 0, %s33
    %s27 = sphi 0, %s25
    %s28 = sphi 0, %s26
    %s29 = sphi 0, %s27
    %s30 = sphi 0, %s28
    %s42 = sphi 0, %s44
    %s45 = sphi 0, %s42
    %s46 = sphi 0, %s45
    %s62 = sphi 0, %s46
    %s68 = sphi 0, %s70
    %s71 = sphi 0, %s68
    %s72 = sphi 0, %s71
    %s88 = sphi 0, %s72
    %s94 = sphi 0, %s96
    %s97 = sphi 0, %s94
    %s98 = sphi 0, %s97
    %s114 = sphi 0, %s98
    %s118 = sphi 0, %s118
    %s120 = sphi 0, %s118
    %s121 = sphi 0, %s120
    %s135 = sphi 0, %s121
    %s139 = sphi 0, %s139
    %s141 = sphi 0, %s139
    %s142 = sphi 0, %s141
    %s156 = sphi 0, %s142
    %s160 = sphi 0, %s160
    %s162 = sphi 0, %s160
    %s163 = sphi 0, %s162
    %s177 = sphi 0, %s163
    %s181 = sphi 0, %s181
    %s183 = sphi 0, %s181
    %s184 = sphi 0, %s183
    %s198 = sphi 0, %s184
    %s202 = sphi 0, %s202
    %s204 = sphi 0, %s202
    %s205 = sphi 0, %s204
    %s219 = sphi 0, %s205
    %s223 = sphi 0, %s223
    %s225 = sphi 0, %s223
    %s226 = sphi 0, %s225
    %s240 = sphi 0, %s226
    %s244 = sphi 0, %s244
    %s246 = sphi 0, %s244
    %s247 = sphi 0, %s246
    %s261 = sphi 0, %s247
    %s265 = sphi 0, %s265
    %s267 = sphi 0, %s265
    %s268 = sphi 0, %s267
    %s282 = sphi 0, %s268
    %s286 = sphi 0, %s286
    %s288 = sphi 0, %s286
    %s289 = sphi 0, %s288
    %s303 = sphi 0, %s289
    %s311 = sphi 0, %s313
    %s314 = sphi 0, %s311
    %s315 = sphi 0, %s314
    %s331 = sphi 0, %s315
  $region4: #{tpu_custom_call.1} parent=0 // loop_header_branch
    %21 = sbr.rel (%p19) target = $region8
  $region5: #{tpu_custom_call.1} parent=0 // loop_body
    %s23 = ssub.s32 %s18, 1
    %s24 = ssub.s32 %s18, 2
    %s31 = sadd.s32 1, %s26
    %p32 = scmp.ge.s32.totalorder %s31, 1
    %s33 = scalar_select %p32, 0, %s31
    %s34 = sadd.s32 1, %s25
    %s35 = scalar_select %p32, %s34, %s25
    %p36 = scmp.ge.s32.totalorder %s35, 2
    %s37 = scalar_select %p36, 0, %s35
    %s38 = ssub.s32 %s25, %s37
    %s39 = ssub.s32 %s26, %s33
    %s40 = sor.u32 %s38, %s39
    %p41 = scmp.eq.s32.totalorder %s40, 0
    %s43 = sadd.s32 %s42, 1
    %s44 = scalar_select %p41, %s42, %s43
    %p47 = pneg %p41
    %p48 = scmp.eq.s32.totalorder %s18, 1
    %p49 = por %p47, %p48
    %p50 = scmp.ne.s32.totalorder %s42, %s45
    %p51 = scmp.eq.s32.totalorder %s18, 0
    %p52 = por %p50, %p51
    %p53 = scmp.ne.s32.totalorder %s42, %s45
    %p54 = scmp.eq.s32.totalorder %s23, 1
    %p55 = por %p53, %p54
    %p56 = scmp.ne.s32.totalorder %s45, %s46
    %p57 = scmp.eq.s32.totalorder %s23, 0
    %p58 = por %p56, %p57
    %p59 = scmp.ne.s32.totalorder %s45, %s46
    %p60 = scmp.eq.s32.totalorder %s24, 1
    %p61 = por %p59, %p60
    %p63 = scmp.ne.s32.totalorder %s46, %s62
    %p64 = scmp.eq.s32.totalorder %s24, 0
    %p65 = por %p63, %p64
    %s66 = ssub.s32 %s25, %s37
    %p67 = scmp.eq.s32.totalorder %s66, 0
    %s69 = sadd.s32 %s68, 1
    %s70 = scalar_select %p67, %s68, %s69
    %p73 = pneg %p67
    %p74 = scmp.eq.s32.totalorder %s18, 1
    %p75 = por %p73, %p74
    %p76 = scmp.ne.s32.totalorder %s68, %s71
    %p77 = scmp.eq.s32.totalorder %s18, 0
    %p78 = por %p76, %p77
    %p79 = scmp.ne.s32.totalorder %s68, %s71
    %p80 = scmp.eq.s32.totalorder %s23, 1
    %p81 = por %p79, %p80
    %p82 = scmp.ne.s32.totalorder %s71, %s72
    %p83 = scmp.eq.s32.totalorder %s23, 0
    %p84 = por %p82, %p83
    %p85 = scmp.ne.s32.totalorder %s71, %s72
    %p86 = scmp.eq.s32.totalorder %s24, 1
    %p87 = por %p85, %p86
    %p89 = scmp.ne.s32.totalorder %s72, %s88
    %p90 = scmp.eq.s32.totalorder %s24, 0
    %p91 = por %p89, %p90
    %s92 = ssub.s32 %s25, %s37
    %p93 = scmp.eq.s32.totalorder %s92, 0
    %s95 = sadd.s32 %s94, 1
    %s96 = scalar_select %p93, %s94, %s95
    %p99 = pneg %p93
    %p100 = scmp.eq.s32.totalorder %s18, 1
    %p101 = por %p99, %p100
    %p102 = scmp.ne.s32.totalorder %s94, %s97
    %p103 = scmp.eq.s32.totalorder %s18, 0
    %p104 = por %p102, %p103
    %p105 = scmp.ne.s32.totalorder %s94, %s97
    %p106 = scmp.eq.s32.totalorder %s23, 1
    %p107 = por %p105, %p106
    %p108 = scmp.ne.s32.totalorder %s97, %s98
    %p109 = scmp.eq.s32.totalorder %s23, 0
    %p110 = por %p108, %p109
    %p111 = scmp.ne.s32.totalorder %s97, %s98
    %p112 = scmp.eq.s32.totalorder %s24, 1
    %p113 = por %p111, %p112
    %p115 = scmp.ne.s32.totalorder %s98, %s114
    %p116 = scmp.eq.s32.totalorder %s24, 0
    %p117 = por %p115, %p116
    %s119 = sadd.s32 %s118, 1
    %p122 = scmp.eq.s32.totalorder %s18, 1
    %p123 = scmp.ne.s32.totalorder %s118, %s120
    %p124 = scmp.eq.s32.totalorder %s18, 0
    %p125 = por %p123, %p124
    %p126 = scmp.ne.s32.totalorder %s118, %s120
    %p127 = scmp.eq.s32.totalorder %s23, 1
    %p128 = por %p126, %p127
    %p129 = scmp.ne.s32.totalorder %s120, %s121
    %p130 = scmp.eq.s32.totalorder %s23, 0
    %p131 = por %p129, %p130
    %p132 = scmp.ne.s32.totalorder %s120, %s121
    %p133 = scmp.eq.s32.totalorder %s24, 1
    %p134 = por %p132, %p133
    %p136 = scmp.ne.s32.totalorder %s121, %s135
    %p137 = scmp.eq.s32.totalorder %s24, 0
    %p138 = por %p136, %p137
    %s140 = sadd.s32 %s139, 1
    %p143 = scmp.eq.s32.totalorder %s18, 1
    %p144 = scmp.ne.s32.totalorder %s139, %s141
    %p145 = scmp.eq.s32.totalorder %s18, 0
    %p146 = por %p144, %p145
    %p147 = scmp.ne.s32.totalorder %s139, %s141
    %p148 = scmp.eq.s32.totalorder %s23, 1
    %p149 = por %p147, %p148
    %p150 = scmp.ne.s32.totalorder %s141, %s142
    %p151 = scmp.eq.s32.totalorder %s23, 0
    %p152 = por %p150, %p151
    %p153 = scmp.ne.s32.totalorder %s141, %s142
    %p154 = scmp.eq.s32.totalorder %s24, 1
    %p155 = por %p153, %p154
    %p157 = scmp.ne.s32.totalorder %s142, %s156
    %p158 = scmp.eq.s32.totalorder %s24, 0
    %p159 = por %p157, %p158
    %s161 = sadd.s32 %s160, 1
    %p164 = scmp.eq.s32.totalorder %s18, 1
    %p165 = scmp.ne.s32.totalorder %s160, %s162
    %p166 = scmp.eq.s32.totalorder %s18, 0
    %p167 = por %p165, %p166
    %p168 = scmp.ne.s32.totalorder %s160, %s162
    %p169 = scmp.eq.s32.totalorder %s23, 1
    %p170 = por %p168, %p169
    %p171 = scmp.ne.s32.totalorder %s162, %s163
    %p172 = scmp.eq.s32.totalorder %s23, 0
    %p173 = por %p171, %p172
    %p174 = scmp.ne.s32.totalorder %s162, %s163
    %p175 = scmp.eq.s32.totalorder %s24, 1
    %p176 = por %p174, %p175
    %p178 = scmp.ne.s32.totalorder %s163, %s177
    %p179 = scmp.eq.s32.totalorder %s24, 0
    %p180 = por %p178, %p179
    %s182 = sadd.s32 %s181, 1
    %p185 = scmp.eq.s32.totalorder %s18, 1
    %p186 = scmp.ne.s32.totalorder %s181, %s183
    %p187 = scmp.eq.s32.totalorder %s18, 0
    %p188 = por %p186, %p187
    %p189 = scmp.ne.s32.totalorder %s181, %s183
    %p190 = scmp.eq.s32.totalorder %s23, 1
    %p191 = por %p189, %p190
    %p192 = scmp.ne.s32.totalorder %s183, %s184
    %p193 = scmp.eq.s32.totalorder %s23, 0
    %p194 = por %p192, %p193
    %p195 = scmp.ne.s32.totalorder %s183, %s184
    %p196 = scmp.eq.s32.totalorder %s24, 1
    %p197 = por %p195, %p196
    %p199 = scmp.ne.s32.totalorder %s184, %s198
    %p200 = scmp.eq.s32.totalorder %s24, 0
    %p201 = por %p199, %p200
    %s203 = sadd.s32 %s202, 1
    %p206 = scmp.eq.s32.totalorder %s18, 1
    %p207 = scmp.ne.s32.totalorder %s202, %s204
    %p208 = scmp.eq.s32.totalorder %s18, 0
    %p209 = por %p207, %p208
    %p210 = scmp.ne.s32.totalorder %s202, %s204
    %p211 = scmp.eq.s32.totalorder %s23, 1
    %p212 = por %p210, %p211
    %p213 = scmp.ne.s32.totalorder %s204, %s205
    %p214 = scmp.eq.s32.totalorder %s23, 0
    %p215 = por %p213, %p214
    %p216 = scmp.ne.s32.totalorder %s204, %s205
    %p217 = scmp.eq.s32.totalorder %s24, 1
    %p218 = por %p216, %p217
    %p220 = scmp.ne.s32.totalorder %s205, %s219
    %p221 = scmp.eq.s32.totalorder %s24, 0
    %p222 = por %p220, %p221
    %s224 = sadd.s32 %s223, 1
    %p227 = scmp.eq.s32.totalorder %s18, 1
    %p228 = scmp.ne.s32.totalorder %s223, %s225
    %p229 = scmp.eq.s32.totalorder %s18, 0
    %p230 = por %p228, %p229
    %p231 = scmp.ne.s32.totalorder %s223, %s225
    %p232 = scmp.eq.s32.totalorder %s23, 1
    %p233 = por %p231, %p232
    %p234 = scmp.ne.s32.totalorder %s225, %s226
    %p235 = scmp.eq.s32.totalorder %s23, 0
    %p236 = por %p234, %p235
    %p237 = scmp.ne.s32.totalorder %s225, %s226
    %p238 = scmp.eq.s32.totalorder %s24, 1
    %p239 = por %p237, %p238
    %p241 = scmp.ne.s32.totalorder %s226, %s240
    %p242 = scmp.eq.s32.totalorder %s24, 0
    %p243 = por %p241, %p242
    %s245 = sadd.s32 %s244, 1
    %p248 = scmp.eq.s32.totalorder %s18, 1
    %p249 = scmp.ne.s32.totalorder %s244, %s246
    %p250 = scmp.eq.s32.totalorder %s18, 0
    %p251 = por %p249, %p250
    %p252 = scmp.ne.s32.totalorder %s244, %s246
    %p253 = scmp.eq.s32.totalorder %s23, 1
    %p254 = por %p252, %p253
    %p255 = scmp.ne.s32.totalorder %s246, %s247
    %p256 = scmp.eq.s32.totalorder %s23, 0
    %p257 = por %p255, %p256
    %p258 = scmp.ne.s32.totalorder %s246, %s247
    %p259 = scmp.eq.s32.totalorder %s24, 1
    %p260 = por %p258, %p259
    %p262 = scmp.ne.s32.totalorder %s247, %s261
    %p263 = scmp.eq.s32.totalorder %s24, 0
    %p264 = por %p262, %p263
    %s266 = sadd.s32 %s265, 1
    %p269 = scmp.eq.s32.totalorder %s18, 1
    %p270 = scmp.ne.s32.totalorder %s265, %s267
    %p271 = scmp.eq.s32.totalorder %s18, 0
    %p272 = por %p270, %p271
    %p273 = scmp.ne.s32.totalorder %s265, %s267
    %p274 = scmp.eq.s32.totalorder %s23, 1
    %p275 = por %p273, %p274
    %p276 = scmp.ne.s32.totalorder %s267, %s268
    %p277 = scmp.eq.s32.totalorder %s23, 0
    %p278 = por %p276, %p277
    %p279 = scmp.ne.s32.totalorder %s267, %s268
    %p280 = scmp.eq.s32.totalorder %s24, 1
    %p281 = por %p279, %p280
    %p283 = scmp.ne.s32.totalorder %s268, %s282
    %p284 = scmp.eq.s32.totalorder %s24, 0
    %p285 = por %p283, %p284
    %s287 = sadd.s32 %s286, 1
    %p290 = scmp.eq.s32.totalorder %s18, 1
    %p291 = scmp.ne.s32.totalorder %s286, %s288
    %p292 = scmp.eq.s32.totalorder %s18, 0
    %p293 = por %p291, %p292
    %p294 = scmp.ne.s32.totalorder %s286, %s288
    %p295 = scmp.eq.s32.totalorder %s23, 1
    %p296 = por %p294, %p295
    %p297 = scmp.ne.s32.totalorder %s288, %s289
    %p298 = scmp.eq.s32.totalorder %s23, 0
    %p299 = por %p297, %p298
    %p300 = scmp.ne.s32.totalorder %s288, %s289
    %p301 = scmp.eq.s32.totalorder %s24, 1
    %p302 = por %p300, %p301
    %p304 = scmp.ne.s32.totalorder %s289, %s303
    %p305 = scmp.eq.s32.totalorder %s24, 0
    %p306 = por %p304, %p305
    %s307 = ssub.s32 %s25, %s37
    %s308 = ssub.s32 %s26, %s33
    %s309 = sor.u32 %s307, %s308
    %p310 = scmp.eq.s32.totalorder %s309, 0
    %s312 = sadd.s32 %s311, 1
    %s313 = scalar_select %p310, %s311, %s312
    %p316 = pneg %p310
    %p317 = scmp.eq.s32.totalorder %s18, 1
    %p318 = por %p316, %p317
    %p319 = scmp.ne.s32.totalorder %s311, %s314
    %p320 = scmp.eq.s32.totalorder %s18, 0
    %p321 = por %p319, %p320
    %p322 = scmp.ne.s32.totalorder %s311, %s314
    %p323 = scmp.eq.s32.totalorder %s23, 1
    %p324 = por %p322, %p323
    %p325 = scmp.ne.s32.totalorder %s314, %s315
    %p326 = scmp.eq.s32.totalorder %s23, 0
    %p327 = por %p325, %p326
    %p328 = scmp.ne.s32.totalorder %s314, %s315
    %p329 = scmp.eq.s32.totalorder %s24, 1
    %p330 = por %p328, %p329
    %p332 = scmp.ne.s32.totalorder %s315, %s331
    %p333 = scmp.eq.s32.totalorder %s24, 0
    %p334 = por %p332, %p333
    %p335 = scmp.le.s32.totalorder 1, %s18
    %p336 = scmp.lt.s32.totalorder %s18, 3
    %p337 = pnand %p335, %p336
    %p338 = pneg %p337
    // Predicated region
    $region9: #{tpu_custom_call.1} parent=5 // pred_check
      _
    $region10: #{tpu_custom_call.1} parent=5 // pred_check_branch
      %340 = sbr.rel (%p337) target = $region12
    $region11: #{tpu_custom_call.1} parent=5 // pred_region
      %s341 = ssub.s32 %s18, 1
      // Predicated region
      $region13: #{tpu_custom_call.1} parent=11 // pred_check
        %p342 = pneg %p131
      $region14: #{tpu_custom_call.1} parent=11 // pred_check_branch
        %344 = sbr.rel (%p342) target = $region16
      $region15: #{tpu_custom_call.1} parent=11 // pred_region
        _
      $region16: #{tpu_custom_call.1} parent=11 // pred_fallthru
        _
      // Predicated region
      $region17: #{tpu_custom_call.1} parent=11 // pred_check
        %p345 = pneg %p152
      $region18: #{tpu_custom_call.1} parent=11 // pred_check_branch
        %347 = sbr.rel (%p345) target = $region20
      $region19: #{tpu_custom_call.1} parent=11 // pred_region
        _
      $region20: #{tpu_custom_call.1} parent=11 // pred_fallthru
        _
      // Predicated region
      $region21: #{tpu_custom_call.1} parent=11 // pred_check
        %p348 = pneg %p173
      $region22: #{tpu_custom_call.1} parent=11 // pred_check_branch
        %350 = sbr.rel (%p348) target = $region24
      $region23: #{tpu_custom_call.1} parent=11 // pred_region
        _
      $region24: #{tpu_custom_call.1} parent=11 // pred_fallthru
        _
      // Predicated region
      $region25: #{tpu_custom_call.1} parent=11 // pred_check
        %p351 = pneg %p194
      $region26: #{tpu_custom_call.1} parent=11 // pred_check_branch
        %353 = sbr.rel (%p351) target = $region28
      $region27: #{tpu_custom_call.1} parent=11 // pred_region
        _
      $region28: #{tpu_custom_call.1} parent=11 // pred_fallthru
        _
      // Predicated region
      $region29: #{tpu_custom_call.1} parent=11 // pred_check
        %p354 = pneg %p215
      $region30: #{tpu_custom_call.1} parent=11 // pred_check_branch
        %356 = sbr.rel (%p354) target = $region32
      $region31: #{tpu_custom_call.1} parent=11 // pred_region
        _
      $region32: #{tpu_custom_call.1} parent=11 // pred_fallthru
        _
      // Predicated region
      $region33: #{tpu_custom_call.1} parent=11 // pred_check
        %p357 = pneg %p236
      $region34: #{tpu_custom_call.1} parent=11 // pred_check_branch
        %359 = sbr.rel (%p357) target = $region36
      $region35: #{tpu_custom_call.1} parent=11 // pred_region
        _
      $region36: #{tpu_custom_call.1} parent=11 // pred_fallthru
        _
      // Predicated region
      $region37: #{tpu_custom_call.1} parent=11 // pred_check
        %p360 = pneg %p257
      $region38: #{tpu_custom_call.1} parent=11 // pred_check_branch
        %362 = sbr.rel (%p360) target = $region40
      $region39: #{tpu_custom_call.1} parent=11 // pred_region
        _
      $region40: #{tpu_custom_call.1} parent=11 // pred_fallthru
        _
      // Predicated region
      $region41: #{tpu_custom_call.1} parent=11 // pred_check
        %p363 = pneg %p278
      $region42: #{tpu_custom_call.1} parent=11 // pred_check_branch
        %365 = sbr.rel (%p363) target = $region44
      $region43: #{tpu_custom_call.1} parent=11 // pred_region
        _
      $region44: #{tpu_custom_call.1} parent=11 // pred_fallthru
        _
      // Predicated region
      $region45: #{tpu_custom_call.1} parent=11 // pred_check
        %p366 = pneg %p299
      $region46: #{tpu_custom_call.1} parent=11 // pred_check_branch
        %368 = sbr.rel (%p366) target = $region48
      $region47: #{tpu_custom_call.1} parent=11 // pred_region
        _
      $region48: #{tpu_custom_call.1} parent=11 // pred_fallthru
        _
    $region12: #{tpu_custom_call.1} parent=5 // pred_fallthru
      _
    %p369 = scmp.lt.s32.totalorder %s18, 2
    // Predicated region
    $region49: #{tpu_custom_call.1} parent=5 // pred_check
      %p370 = pneg %p369
    $region50: #{tpu_custom_call.1} parent=5 // pred_check_branch
      %372 = sbr.rel (%p370) target = $region52
    $region51: #{tpu_custom_call.1} parent=5 // pred_region
      // Predicated region
      $region53: #{tpu_custom_call.1} parent=51 // pred_check
        %p373 = pneg %p52
      $region54: #{tpu_custom_call.1} parent=51 // pred_check_branch
        %375 = sbr.rel (%p373) target = $region56
      $region55: #{tpu_custom_call.1} parent=51 // pred_region
        %s376 = smul.u32 16, %s26
        %p377 = scmp.lt.s32.totalorder %s25, 1
        %s378 = scalar_select %p377, %s25, 1
        %p379 = scmp.lt.s32.totalorder %s376, 15
        %s380 = scalar_select %p379, %s376, 15
        %s381 = smul.addr %s380, 2
        %s382 = smul.addr %s378, 32
        %s383 = sadd.s32 %s381, %s382
        %s384 = smul.addr %s383, 8
        %s385 = scalar_lea.vmem %s0, %s384
        %s386 = smul.u32 16, %s26
      $region56: #{tpu_custom_call.1} parent=51 // pred_fallthru
        _
      // Predicated region
      $region57: #{tpu_custom_call.1} parent=51 // pred_check
        %p387 = pneg %p78
      $region58: #{tpu_custom_call.1} parent=51 // pred_check_branch
        %389 = sbr.rel (%p387) target = $region60
      $region59: #{tpu_custom_call.1} parent=51 // pred_region
        %p390 = scmp.lt.s32.totalorder %s25, 1
        %s391 = scalar_select %p390, %s25, 1
        %s392 = smul.addr %s391, 32
        %s393 = smul.addr %s392, 8
        %s394 = scalar_lea.vmem %s1, %s393
      $region60: #{tpu_custom_call.1} parent=51 // pred_fallthru
        _
      // Predicated region
      $region61: #{tpu_custom_call.1} parent=51 // pred_check
        %p395 = pneg %p104
      $region62: #{tpu_custom_call.1} parent=51 // pred_check_branch
        %397 = sbr.rel (%p395) target = $region64
      $region63: #{tpu_custom_call.1} parent=51 // pred_region
        %p398 = scmp.lt.s32.totalorder %s25, 1
        %s399 = scalar_select %p398, %s25, 1
        %s400 = smul.addr %s399, 32
        %s401 = smul.addr %s400, 8
        %s402 = scalar_lea.vmem %s2, %s401
      $region64: #{tpu_custom_call.1} parent=51 // pred_fallthru
        _
    $region52: #{tpu_custom_call.1} parent=5 // pred_fallthru
      _
    %p403 = scmp.le.s32.totalorder 1, %s18
    %p404 = scmp.lt.s32.totalorder %s18, 3
    %p405 = pnand %p403, %p404
    %p406 = pneg %p405
    // Predicated region
    $region65: #{tpu_custom_call.1} parent=5 // pred_check
      _
    $region66: #{tpu_custom_call.1} parent=5 // pred_check_branch
      %408 = sbr.rel (%p405) target = $region68
    $region67: #{tpu_custom_call.1} parent=5 // pred_region
      %s409 = ssub.s32 %s18, 1
      %s410 = smul.u32 16, %s28
      %p411 = scmp.lt.s32.totalorder %s27, 1
      %s412 = scalar_select %p411, %s27, 1
      %p413 = scmp.lt.s32.totalorder %s410, 15
      %s414 = scalar_select %p413, %s410, 15
      %s415 = smul.addr %s414, 2
      %s416 = smul.addr %s412, 32
      %s417 = sadd.s32 %s415, %s416
      %s418 = smul.addr %s417, 8
      %s419 = scalar_lea.vmem %s0, %s418
      %p420 = pneg %p58
      %p421 = pneg %p55
      %p422 = scmp.lt.s32.totalorder %s27, 1
      %s423 = scalar_select %p422, %s27, 1
      %s424 = smul.addr %s423, 32
      %s425 = smul.addr %s424, 8
      %s426 = scalar_lea.vmem %s1, %s425
      %p427 = pneg %p84
      %p428 = pneg %p81
      %p429 = scmp.lt.s32.totalorder %s27, 1
      %s430 = scalar_select %p429, %s27, 1
      %s431 = smul.addr %s430, 32
      %s432 = smul.addr %s431, 8
      %s433 = scalar_lea.vmem %s2, %s432
      %p434 = pneg %p110
      %p435 = pneg %p107
      %p436 = pneg %p131
      %p437 = pneg %p128
      %p438 = pneg %p152
      %p439 = pneg %p149
      %p440 = pneg %p173
      %p441 = pneg %p170
      %p442 = pneg %p194
      %p443 = pneg %p191
      %p444 = pneg %p215
      %p445 = pneg %p212
      %p446 = pneg %p236
      %p447 = pneg %p233
      %p448 = pneg %p257
      %p449 = pneg %p254
      %p450 = pneg %p278
      %p451 = pneg %p275
      %p452 = pneg %p299
      %p453 = pneg %p296
      %p454 = pneg %p327
      %p455 = pneg %p324
      %s456 = smul.u32 16, %s28
      %p457 = scmp.lt.s32.totalorder %s27, 1
      %s458 = scalar_select %p457, %s27, 1
      %p459 = scmp.lt.s32.totalorder %s456, 15
      %s460 = scalar_select %p459, %s456, 15
      %s461 = smul.addr %s460, 2
      %s462 = smul.addr %s458, 32
      %s463 = sadd.s32 %s461, %s462
      %s464 = smul.addr %s463, 8
      %s465 = scalar_lea.vmem %s12, %s464
      %s466 = smul.u32 16, %s28
      %p467 = scmp.lt.s32.totalorder %s27, 1
      %s468 = scalar_select %p467, %s27, 1
      %p469 = scmp.lt.s32.totalorder %s466, 15
      %s470 = scalar_select %p469, %s466, 15
      %s471 = smul.addr %s470, 2
      %s472 = smul.addr %s468, 32
      %s473 = sadd.s32 %s471, %s472
      %s474 = smul.addr %s473, 8
      %s475 = scalar_lea.vmem %s0, %s474
      %s476 = smul.u32 16, %s28
      %p477 = scmp.lt.s32.totalorder %s27, 1
      %s478 = scalar_select %p477, %s27, 1
      %s479 = smul.addr %s478, 32
      %s480 = smul.addr %s479, 8
      %s481 = scalar_lea.vmem %s1, %s480
      %p482 = scmp.lt.s32.totalorder %s27, 1
      %s483 = scalar_select %p482, %s27, 1
      %s484 = smul.addr %s483, 32
      %s485 = smul.addr %s484, 8
      %s486 = scalar_lea.vmem %s2, %s485
      %s487 = smul.u32 16, %s28
      %p488 = scmp.lt.s32.totalorder %s27, 1
      %s489 = scalar_select %p488, %s27, 1
      %p490 = scmp.lt.s32.totalorder %s487, 15
      %s491 = scalar_select %p490, %s487, 15
      %s492 = smul.addr %s491, 2
      %s493 = smul.addr %s489, 32
      %s494 = sadd.s32 %s492, %s493
      %s495 = smul.addr %s494, 8
      %s496 = scalar_lea.vmem %s12, %s495
      %s497 = smul.u32 16, %s28
      %v499 = vld [vmem:[%s3] sm:$0xf]
      %v500 = vpack.c.bf16 %v499, %v499
      %v501 = vld [vmem:[%s4] sm:$0x1]
      %v502 = vld [vmem:[%s5] sm:$0x1]
      %vm503 = vcmask 15360
      %504 = vst.msk [vmem:[#allocation2] sm:$0xff] %vm503, 0.0
      %505 = vst.msk [vmem:[#allocation2 + $0x8] sm:$0xff] %vm503, 0.0
      %vm506 = vcmask 11264
      %507 = vst.msk [vmem:[#allocation2 + $0x10] sm:$0xf] %vm506, 0.0
      %508 = vst.msk [vmem:[#allocation2 + $0x18] sm:$0xff] %vm503, 0.0
      %509 = vst.msk [vmem:[#allocation2 + $0x20] sm:$0xff] %vm503, 0.0
      %510 = vst.msk [vmem:[#allocation2 + $0x28] sm:$0xf] %vm506, 0.0
      %511 = vst.msk [vmem:[#allocation2 + $0x30] sm:$0xff] %vm503, 0.0
      %512 = vst.msk [vmem:[#allocation2 + $0x38] sm:$0xff] %vm503, 0.0
      %513 = vst.msk [vmem:[#allocation2 + $0x40] sm:$0xf] %vm506, 0.0
      %514 = vst.msk [vmem:[#allocation2 + $0x48] sm:$0xff] %vm503, 0.0
      %515 = vst.msk [vmem:[#allocation2 + $0x50] sm:$0xff] %vm503, 0.0
      %516 = vst.msk [vmem:[#allocation2 + $0x58] sm:$0xf] %vm506, 0.0
      %517 = vst.msk [vmem:[#allocation2 + $0x60] sm:$0xff] %vm503, 0.0
      %518 = vst.msk [vmem:[#allocation2 + $0x68] sm:$0xff] %vm503, 0.0
      %519 = vst.msk [vmem:[#allocation2 + $0x70] sm:$0xf] %vm506, 0.0
      %520 = vst.msk [vmem:[#allocation2 + $0x78] sm:$0xff] %vm503, 0.0
      %521 = vst.msk [vmem:[#allocation2 + $0x80] sm:$0xff] %vm503, 0.0
      %522 = vst.msk [vmem:[#allocation2 + $0x88] sm:$0xf] %vm506, 0.0
      %523 = vst.msk [vmem:[#allocation2 + $0x90] sm:$0xff] %vm503, 0.0
      %524 = vst.msk [vmem:[#allocation2 + $0x98] sm:$0xff] %vm503, 0.0
      %525 = vst.msk [vmem:[#allocation2 + $0xa0] sm:$0xf] %vm506, 0.0
      %526 = vst.msk [vmem:[#allocation2 + $0xa8] sm:$0xff] %vm503, 0.0
      %527 = vst.msk [vmem:[#allocation2 + $0xb0] sm:$0xff] %vm503, 0.0
      %528 = vst.msk [vmem:[#allocation2 + $0xb8] sm:$0xf] %vm506, 0.0
      %529 = vst.msk [vmem:[#allocation2 + $0xc0] sm:$0xff] %vm503, 0.0
      %530 = vst.msk [vmem:[#allocation2 + $0xc8] sm:$0xff] %vm503, 0.0
      %531 = vst.msk [vmem:[#allocation2 + $0xd0] sm:$0xf] %vm506, 0.0
      %532 = vst.msk [vmem:[#allocation2 + $0xd8] sm:$0xff] %vm503, 0.0
      %533 = vst.msk [vmem:[#allocation2 + $0xe0] sm:$0xff] %vm503, 0.0
      %534 = vst.msk [vmem:[#allocation2 + $0xe8] sm:$0xf] %vm506, 0.0
      %535 = vst.msk [vmem:[#allocation2 + $0xf0] sm:$0xff] %vm503, 0.0
      %536 = vst.msk [vmem:[#allocation2 + $0xf8] sm:$0xff] %vm503, 0.0
      %537 = vst.msk [vmem:[#allocation2 + $0x100] sm:$0xf] %vm506, 0.0
      %538 = vst.msk [vmem:[#allocation2 + $0x108] sm:$0xff] %vm503, 0.0
      %539 = vst.msk [vmem:[#allocation2 + $0x110] sm:$0xff] %vm503, 0.0
      %540 = vst.msk [vmem:[#allocation2 + $0x118] sm:$0xf] %vm506, 0.0
      %541 = vst.msk [vmem:[#allocation2 + $0x120] sm:$0xff] %vm503, 0.0
      %542 = vst.msk [vmem:[#allocation2 + $0x128] sm:$0xff] %vm503, 0.0
      %543 = vst.msk [vmem:[#allocation2 + $0x130] sm:$0xf] %vm506, 0.0
      %544 = vst.msk [vmem:[#allocation2 + $0x138] sm:$0xff] %vm503, 0.0
      %545 = vst.msk [vmem:[#allocation2 + $0x140] sm:$0xff] %vm503, 0.0
      %546 = vst.msk [vmem:[#allocation2 + $0x148] sm:$0xf] %vm506, 0.0
      %547 = vst.msk [vmem:[#allocation2 + $0x150] sm:$0xff] %vm503, 0.0
      %548 = vst.msk [vmem:[#allocation2 + $0x158] sm:$0xff] %vm503, 0.0
      %549 = vst.msk [vmem:[#allocation2 + $0x160] sm:$0xf] %vm506, 0.0
      %550 = vst.msk [vmem:[#allocation2 + $0x168] sm:$0xff] %vm503, 0.0
      %551 = vst.msk [vmem:[#allocation2 + $0x170] sm:$0xff] %vm503, 0.0
      %552 = vst.msk [vmem:[#allocation2 + $0x178] sm:$0xf] %vm506, 0.0
      %553 = vst.msk [vmem:[#allocation2 + $0x180] sm:$0xff] %vm503, 0.0
      %554 = vst.msk [vmem:[#allocation2 + $0x188] sm:$0xff] %vm503, 0.0
      %555 = vst.msk [vmem:[#allocation2 + $0x190] sm:$0xf] %vm506, 0.0
      %556 = vst.msk [vmem:[#allocation2 + $0x198] sm:$0xff] %vm503, 0.0
      %557 = vst.msk [vmem:[#allocation2 + $0x1a0] sm:$0xff] %vm503, 0.0
      %558 = vst.msk [vmem:[#allocation2 + $0x1a8] sm:$0xf] %vm506, 0.0
      %559 = vst.msk [vmem:[#allocation2 + $0x1b0] sm:$0xff] %vm503, 0.0
      %560 = vst.msk [vmem:[#allocation2 + $0x1b8] sm:$0xff] %vm503, 0.0
      %561 = vst.msk [vmem:[#allocation2 + $0x1c0] sm:$0xf] %vm506, 0.0
      %562 = vst.msk [vmem:[#allocation2 + $0x1c8] sm:$0xff] %vm503, 0.0
      %563 = vst.msk [vmem:[#allocation2 + $0x1d0] sm:$0xff] %vm503, 0.0
      %564 = vst.msk [vmem:[#allocation2 + $0x1d8] sm:$0xf] %vm506, 0.0
      %v565 = vld [vmem:[%s475] sm:$0xff]
      %v566 = vld [vmem:[%s475 + $0x8] sm:$0xff]
      %v567 = vld [vmem:[%s475 + $0x10] sm:$0xff]
      %v568 = vld [vmem:[%s475 + $0x18] sm:$0xff]
      %v569 = vld [vmem:[%s475 + $0x20] sm:$0xff]
      %v570 = vld [vmem:[%s475 + $0x28] sm:$0xff]
      %v571 = vld [vmem:[%s475 + $0x30] sm:$0xff]
      %v572 = vld [vmem:[%s475 + $0x38] sm:$0xff]
      %v573 = vld [vmem:[%s475 + $0x40] sm:$0xff]
      %v574 = vld [vmem:[%s475 + $0x48] sm:$0xff]
      %v575 = vld [vmem:[%s475 + $0x50] sm:$0xff]
      %v576 = vld [vmem:[%s475 + $0x58] sm:$0xff]
      %v577 = vld [vmem:[%s475 + $0x60] sm:$0xff]
      %v578 = vld [vmem:[%s475 + $0x68] sm:$0xff]
      %v579 = vld [vmem:[%s475 + $0x70] sm:$0xff]
      %v580 = vld [vmem:[%s475 + $0x78] sm:$0xff]
      %v581 = vld [vmem:[%s475 + $0x80] sm:$0xff]
      %v582 = vld [vmem:[%s475 + $0x88] sm:$0xff]
      %v583 = vld [vmem:[%s475 + $0x90] sm:$0xff]
      %v584 = vld [vmem:[%s475 + $0x98] sm:$0xff]
      %v585 = vld [vmem:[%s475 + $0xa0] sm:$0xff]
      %v586 = vld [vmem:[%s475 + $0xa8] sm:$0xff]
      %v587 = vld [vmem:[%s475 + $0xb0] sm:$0xff]
      %v588 = vld [vmem:[%s475 + $0xb8] sm:$0xff]
      %v589 = vld [vmem:[%s475 + $0xc0] sm:$0xff]
      %v590 = vld [vmem:[%s475 + $0xc8] sm:$0xff]
      %v591 = vld [vmem:[%s475 + $0xd0] sm:$0xff]
      %v592 = vld [vmem:[%s475 + $0xd8] sm:$0xff]
      %v593 = vld [vmem:[%s475 + $0xe0] sm:$0xff]
      %v594 = vld [vmem:[%s475 + $0xe8] sm:$0xff]
      %v595 = vld [vmem:[%s475 + $0xf0] sm:$0xff]
      %v596 = vld [vmem:[%s475 + $0xf8] sm:$0xff]
      %v597 = vpack.c.bf16 %v566, %v565
      %v598 = vpack.c.bf16 %v568, %v567
      %v599 = vpack.c.bf16 %v570, %v569
      %v600 = vpack.c.bf16 %v572, %v571
      %v601 = vpack.c.bf16 %v574, %v573
      %v602 = vpack.c.bf16 %v576, %v575
      %v603 = vpack.c.bf16 %v578, %v577
      %v604 = vpack.c.bf16 %v580, %v579
      %v605 = vpack.c.bf16 %v582, %v581
      %v606 = vpack.c.bf16 %v584, %v583
      %v607 = vpack.c.bf16 %v586, %v585
      %v608 = vpack.c.bf16 %v588, %v587
      %v609 = vpack.c.bf16 %v590, %v589
      %v610 = vpack.c.bf16 %v592, %v591
      %v611 = vpack.c.bf16 %v594, %v593
      %v612 = vpack.c.bf16 %v596, %v595
      %vm613 = vcmask 31744
      %v615 = vsel %vm613, %v597, 0
      %v618 = vsel %vm613, %v598, 0
      %v621 = vsel %vm613, %v599, 0
      %v624 = vsel %vm613, %v600, 0
      %v627 = vsel %vm613, %v601, 0
      %v630 = vsel %vm613, %v602, 0
      %v633 = vsel %vm613, %v603, 0
      %v636 = vsel %vm613, %v604, 0
      %v639 = vsel %vm613, %v605, 0
      %v642 = vsel %vm613, %v606, 0
      %v645 = vsel %vm613, %v607, 0
      %v648 = vsel %vm613, %v608, 0
      %v651 = vsel %vm613, %v609, 0
      %v654 = vsel %vm613, %v610, 0
      %v657 = vsel %vm613, %v611, 0
      %v660 = vsel %vm613, %v612, 0
      %vm662 = vcmask 1041408
      %v664 = vsel %vm662, %v500, 0
      %666 = vmatprep.subr.bf16.mxu0 0
      %667 = vmatpush1.bf16.msra.mxu0 %v664
      %668 = vmatprep.subr.bf16.mxu0 0
      %669 = vmatpush1.bf16.msra.mxu0 0
      %670 = vmatprep.subr.bf16.mxu0 0
      %671 = vmatpush1.bf16.msra.mxu0 0
      %672 = vmatprep.subr.bf16.mxu0 0
      %673 = vmatpush1.bf16.msra.mxu0 0
      %674 = vmatprep.subr.bf16.mxu0 0
      %675 = vmatpush1.bf16.msra.mxu0 0
      %676 = vmatprep.subr.bf16.mxu0 0
      %677 = vmatpush1.bf16.msra.mxu0 0
      %678 = vmatprep.subr.bf16.mxu0 0
      %679 = vmatpush1.bf16.msra.mxu0 0
      %680 = vmatprep.subr.bf16.mxu0 0
      %681 = vmatpush1.bf16.msra.mxu0 0
      %682 = vmatprep.subr.bf16.mxu0 0
      %683 = vmatpush1.bf16.msra.mxu0 0
      %684 = vmatprep.subr.bf16.mxu0 0
      %685 = vmatpush1.bf16.msra.mxu0 0
      %686 = vmatprep.subr.bf16.mxu0 0
      %687 = vmatpush1.bf16.msra.mxu0 0
      %688 = vmatprep.subr.bf16.mxu0 0
      %689 = vmatpush1.bf16.msra.mxu0 0
      %690 = vmatprep.subr.bf16.mxu0 0
      %691 = vmatpush1.bf16.msra.mxu0 0
      %692 = vmatprep.subr.bf16.mxu0 0
      %693 = vmatpush1.bf16.msra.mxu0 0
      %694 = vmatprep.subr.bf16.mxu0 0
      %695 = vmatpush1.bf16.msra.mxu0 0
      %696 = vmatprep.subr.bf16.mxu0 0
      %697 = vmatpush1.bf16.msra.mxu0 0
      %698 = vmatprep.mubr.bf16.mxu0 0
      %699 = vmatmul.mubr.bf16.gmra.mrb[0].mxu0 %v615
      %v700 = vpop.f32.mrb[0].mxu0
      %v701 = vadd.f32 0.0, %v700
      %v702 = vpop.f32.mrb[0].mxu0
      %v703 = vpop.f32.mrb[0].mxu0
      %v704 = vadd.f32 0.0, %v703
      %v705 = vpop.f32.mrb[0].mxu0
      %706 = vmatprep.mubr.bf16.mxu0 0
      %707 = vmatmul.mubr.bf16.gmra.mrb[0].mxu0 %v618
      %v708 = vpop.f32.mrb[0].mxu0
      %v709 = vadd.f32 0.0, %v708
      %v710 = vpop.f32.mrb[0].mxu0
      %v711 = vpop.f32.mrb[0].mxu0
      %v712 = vadd.f32 0.0, %v711
      %v713 = vpop.f32.mrb[0].mxu0
      %714 = vmatprep.mubr.bf16.mxu0 0
      %715 = vmatmul.mubr.bf16.gmra.mrb[0].mxu0 %v621
      %v716 = vpop.f32.mrb[0].mxu0
      %v717 = vadd.f32 0.0, %v716
      %v718 = vpop.f32.mrb[0].mxu0
      %v719 = vpop.f32.mrb[0].mxu0
      %v720 = vadd.f32 0.0, %v719
      %v721 = vpop.f32.mrb[0].mxu0
      %722 = vmatprep.mubr.bf16.mxu0 0
      %723 = vmatmul.mubr.bf16.gmra.mrb[0].mxu0 %v624
      %v724 = vpop.f32.mrb[0].mxu0
      %v725 = vadd.f32 0.0, %v724
      %v726 = vpop.f32.mrb[0].mxu0
      %v727 = vpop.f32.mrb[0].mxu0
      %v728 = vadd.f32 0.0, %v727
      %v729 = vpop.f32.mrb[0].mxu0
      %730 = vmatprep.mubr.bf16.mxu0 0
      %731 = vmatmul.mubr.bf16.gmra.mrb[0].mxu0 %v627
      %v732 = vpop.f32.mrb[0].mxu0
      %v733 = vadd.f32 0.0, %v732
      %v734 = vpop.f32.mrb[0].mxu0
      %v735 = vpop.f32.mrb[0].mxu0
      %v736 = vadd.f32 0.0, %v735
      %v737 = vpop.f32.mrb[0].mxu0
      %738 = vmatprep.mubr.bf16.mxu0 0
      %739 = vmatmul.mubr.bf16.gmra.mrb[0].mxu0 %v630
      %v740 = vpop.f32.mrb[0].mxu0
      %v741 = vadd.f32 0.0, %v740
      %v742 = vpop.f32.mrb[0].mxu0
      %v743 = vpop.f32.mrb[0].mxu0
      %v744 = vadd.f32 0.0, %v743
      %v745 = vpop.f32.mrb[0].mxu0
      %746 = vmatprep.mubr.bf16.mxu0 0
      %747 = vmatmul.mubr.bf16.gmra.mrb[0].mxu0 %v633
      %v748 = vpop.f32.mrb[0].mxu0
      %v749 = vadd.f32 0.0, %v748
      %v750 = vpop.f32.mrb[0].mxu0
      %v751 = vpop.f32.mrb[0].mxu0
      %v752 = vadd.f32 0.0, %v751
      %v753 = vpop.f32.mrb[0].mxu0
      %754 = vmatprep.mubr.bf16.mxu0 0
      %755 = vmatmul.mubr.bf16.gmra.mrb[0].mxu0 %v636
      %v756 = vpop.f32.mrb[0].mxu0
      %v757 = vadd.f32 0.0, %v756
      %v758 = vpop.f32.mrb[0].mxu0
      %v759 = vpop.f32.mrb[0].mxu0
      %v760 = vadd.f32 0.0, %v759
      %v761 = vpop.f32.mrb[0].mxu0
      %762 = vmatprep.mubr.bf16.mxu0 0
      %763 = vmatmul.mubr.bf16.gmra.mrb[0].mxu0 %v639
      %v764 = vpop.f32.mrb[0].mxu0
      %v765 = vadd.f32 0.0, %v764
      %v766 = vpop.f32.mrb[0].mxu0
      %v767 = vpop.f32.mrb[0].mxu0
      %v768 = vadd.f32 0.0, %v767
      %v769 = vpop.f32.mrb[0].mxu0
      %770 = vmatprep.mubr.bf16.mxu0 0
      %771 = vmatmul.mubr.bf16.gmra.mrb[0].mxu0 %v642
      %v772 = vpop.f32.mrb[0].mxu0
      %v773 = vadd.f32 0.0, %v772
      %v774 = vpop.f32.mrb[0].mxu0
      %v775 = vpop.f32.mrb[0].mxu0
      %v776 = vadd.f32 0.0, %v775
      %v777 = vpop.f32.mrb[0].mxu0
      %778 = vmatprep.mubr.bf16.mxu0 0
      %779 = vmatmul.mubr.bf16.gmra.mrb[0].mxu0 %v645
      %v780 = vpop.f32.mrb[0].mxu0
      %v781 = vadd.f32 0.0, %v780
      %v782 = vpop.f32.mrb[0].mxu0
      %v783 = vpop.f32.mrb[0].mxu0
      %v784 = vadd.f32 0.0, %v783
      %v785 = vpop.f32.mrb[0].mxu0
      %786 = vmatprep.mubr.bf16.mxu0 0
      %787 = vmatmul.mubr.bf16.gmra.mrb[0].mxu0 %v648
      %v788 = vpop.f32.mrb[0].mxu0
      %v789 = vadd.f32 0.0, %v788
      %v790 = vpop.f32.mrb[0].mxu0
      %v791 = vpop.f32.mrb[0].mxu0
      %v792 = vadd.f32 0.0, %v791
      %v793 = vpop.f32.mrb[0].mxu0
      %794 = vmatprep.mubr.bf16.mxu0 0
      %795 = vmatmul.mubr.bf16.gmra.mrb[0].mxu0 %v651
      %v796 = vpop.f32.mrb[0].mxu0
      %v797 = vadd.f32 0.0, %v796
      %v798 = vpop.f32.mrb[0].mxu0
      %v799 = vpop.f32.mrb[0].mxu0
      %v800 = vadd.f32 0.0, %v799
      %v801 = vpop.f32.mrb[0].mxu0
      %802 = vmatprep.mubr.bf16.mxu0 0
      %803 = vmatmul.mubr.bf16.gmra.mrb[0].mxu0 %v654
      %v804 = vpop.f32.mrb[0].mxu0
      %v805 = vadd.f32 0.0, %v804
      %v806 = vpop.f32.mrb[0].mxu0
      %v807 = vpop.f32.mrb[0].mxu0
      %v808 = vadd.f32 0.0, %v807
      %v809 = vpop.f32.mrb[0].mxu0
      %810 = vmatprep.mubr.bf16.mxu0 0
      %811 = vmatmul.mubr.bf16.gmra.mrb[0].mxu0 %v657
      %v812 = vpop.f32.mrb[0].mxu0
      %v813 = vadd.f32 0.0, %v812
      %v814 = vpop.f32.mrb[0].mxu0
      %v815 = vpop.f32.mrb[0].mxu0
      %v816 = vadd.f32 0.0, %v815
      %v817 = vpop.f32.mrb[0].mxu0
      %818 = vmatprep.mubr.bf16.mxu0 0
      %819 = vmatmul.mubr.bf16.gmra.mrb[0].mxu0 %v660
      %v820 = vpop.f32.mrb[0].mxu0
      %v821 = vadd.f32 0.0, %v820
      %v822 = vpop.f32.mrb[0].mxu0
      %v823 = vpop.f32.mrb[0].mxu0
      %v824 = vadd.f32 0.0, %v823
      %v825 = vpop.f32.mrb[0].mxu0
      %826 = vdwg.mxu0
      %v828 = vlaneseq
      %v829 = vshrl.u32 %v828, 7
      %v830 = vsub.s32 0, %v829
      %v831 = vrot.slane %v501, %v830
      %v833 = vmul.f32 %v701, %v831
      %v834 = vmul.f32 %v704, %v831
      %v835 = vmul.f32 %v709, %v831
      %v836 = vmul.f32 %v712, %v831
      %v837 = vmul.f32 %v717, %v831
      %v838 = vmul.f32 %v720, %v831
      %v839 = vmul.f32 %v725, %v831
      %v840 = vmul.f32 %v728, %v831
      %v841 = vmul.f32 %v733, %v831
      %v842 = vmul.f32 %v736, %v831
      %v843 = vmul.f32 %v741, %v831
      %v844 = vmul.f32 %v744, %v831
      %v845 = vmul.f32 %v749, %v831
      %v846 = vmul.f32 %v752, %v831
      %v847 = vmul.f32 %v757, %v831
      %v848 = vmul.f32 %v760, %v831
      %v849 = vmul.f32 %v765, %v831
      %v850 = vmul.f32 %v768, %v831
      %v851 = vmul.f32 %v773, %v831
      %v852 = vmul.f32 %v776, %v831
      %v853 = vmul.f32 %v781, %v831
      %v854 = vmul.f32 %v784, %v831
      %v855 = vmul.f32 %v789, %v831
      %v856 = vmul.f32 %v792, %v831
      %v857 = vmul.f32 %v797, %v831
      %v858 = vmul.f32 %v800, %v831
      %v859 = vmul.f32 %v805, %v831
      %v860 = vmul.f32 %v808, %v831
      %v861 = vmul.f32 %v813, %v831
      %v862 = vmul.f32 %v816, %v831
      %v863 = vmul.f32 %v821, %v831
      %v864 = vmul.f32 %v824, %v831
      %v866 = vlaneseq
      %v867 = vshrl.u32 %v866, 7
      %v868 = vsub.s32 0, %v867
      %v869 = vrot.slane %v502, %v868
      %v871 = vadd.f32 %v833, %v869
      %v872 = vadd.f32 %v834, %v869
      %v873 = vadd.f32 %v835, %v869
      %v874 = vadd.f32 %v836, %v869
      %v875 = vadd.f32 %v837, %v869
      %v876 = vadd.f32 %v838, %v869
      %v877 = vadd.f32 %v839, %v869
      %v878 = vadd.f32 %v840, %v869
      %v879 = vadd.f32 %v841, %v869
      %v880 = vadd.f32 %v842, %v869
      %v881 = vadd.f32 %v843, %v869
      %v882 = vadd.f32 %v844, %v869
      %v883 = vadd.f32 %v845, %v869
      %v884 = vadd.f32 %v846, %v869
      %v885 = vadd.f32 %v847, %v869
      %v886 = vadd.f32 %v848, %v869
      %v887 = vadd.f32 %v849, %v869
      %v888 = vadd.f32 %v850, %v869
      %v889 = vadd.f32 %v851, %v869
      %v890 = vadd.f32 %v852, %v869
      %v891 = vadd.f32 %v853, %v869
      %v892 = vadd.f32 %v854, %v869
      %v893 = vadd.f32 %v855, %v869
      %v894 = vadd.f32 %v856, %v869
      %v895 = vadd.f32 %v857, %v869
      %v896 = vadd.f32 %v858, %v869
      %v897 = vadd.f32 %v859, %v869
      %v898 = vadd.f32 %v860, %v869
      %v899 = vadd.f32 %v861, %v869
      %v900 = vadd.f32 %v862, %v869
      %v901 = vadd.f32 %v863, %v869
      %v902 = vadd.f32 %v864, %v869
      %v903 = vmax.f32 %v871, 0.0
      %v904 = vmax.f32 %v872, 0.0
      %v905 = vmax.f32 %v873, 0.0
      %v906 = vmax.f32 %v874, 0.0
      %v907 = vmax.f32 %v875, 0.0
      %v908 = vmax.f32 %v876, 0.0
      %v909 = vmax.f32 %v877, 0.0
      %v910 = vmax.f32 %v878, 0.0
      %v911 = vmax.f32 %v879, 0.0
      %v912 = vmax.f32 %v880, 0.0
      %v913 = vmax.f32 %v881, 0.0
      %v914 = vmax.f32 %v882, 0.0
      %v915 = vmax.f32 %v883, 0.0
      %v916 = vmax.f32 %v884, 0.0
      %v917 = vmax.f32 %v885, 0.0
      %v918 = vmax.f32 %v886, 0.0
      %v919 = vmax.f32 %v887, 0.0
      %v920 = vmax.f32 %v888, 0.0
      %v921 = vmax.f32 %v889, 0.0
      %v922 = vmax.f32 %v890, 0.0
      %v923 = vmax.f32 %v891, 0.0
      %v924 = vmax.f32 %v892, 0.0
      %v925 = vmax.f32 %v893, 0.0
      %v926 = vmax.f32 %v894, 0.0
      %v927 = vmax.f32 %v895, 0.0
      %v928 = vmax.f32 %v896, 0.0
      %v929 = vmax.f32 %v897, 0.0
      %v930 = vmax.f32 %v898, 0.0
      %v931 = vmax.f32 %v899, 0.0
      %v932 = vmax.f32 %v900, 0.0
      %v933 = vmax.f32 %v901, 0.0
      %v934 = vmax.f32 %v902, 0.0
      %s935 = scalar_lea.vmem [#allocation2], 48
      %936 = vst.msk [vmem:[%s935 + $0x2] sm:$0xff] %vm503, %v903
      %937 = vst.msk [vmem:[%s935 + $0xa] sm:$0xff] %vm503, %v904
      %938 = vst.msk [vmem:[%s935 + $0x1a] sm:$0xff] %vm503, %v905
      %939 = vst.msk [vmem:[%s935 + $0x22] sm:$0xff] %vm503, %v906
      %940 = vst.msk [vmem:[%s935 + $0x32] sm:$0xff] %vm503, %v907
      %941 = vst.msk [vmem:[%s935 + $0x3a] sm:$0xff] %vm503, %v908
      %942 = vst.msk [vmem:[%s935 + $0x4a] sm:$0xff] %vm503, %v909
      %943 = vst.msk [vmem:[%s935 + $0x52] sm:$0xff] %vm503, %v910
      %944 = vst.msk [vmem:[%s935 + $0x62] sm:$0xff] %vm503, %v911
      %945 = vst.msk [vmem:[%s935 + $0x6a] sm:$0xff] %vm503, %v912
      %946 = vst.msk [vmem:[%s935 + $0x7a] sm:$0xff] %vm503, %v913
      %947 = vst.msk [vmem:[%s935 + $0x82] sm:$0xff] %vm503, %v914
      %948 = vst.msk [vmem:[%s935 + $0x92] sm:$0xff] %vm503, %v915
      %949 = vst.msk [vmem:[%s935 + $0x9a] sm:$0xff] %vm503, %v916
      %950 = vst.msk [vmem:[%s935 + $0xaa] sm:$0xff] %vm503, %v917
      %951 = vst.msk [vmem:[%s935 + $0xb2] sm:$0xff] %vm503, %v918
      %952 = vst.msk [vmem:[%s935 + $0xc2] sm:$0xff] %vm503, %v919
      %953 = vst.msk [vmem:[%s935 + $0xca] sm:$0xff] %vm503, %v920
      %954 = vst.msk [vmem:[%s935 + $0xda] sm:$0xff] %vm503, %v921
      %955 = vst.msk [vmem:[%s935 + $0xe2] sm:$0xff] %vm503, %v922
      %956 = vst.msk [vmem:[%s935 + $0xf2] sm:$0xff] %vm503, %v923
      %957 = vst.msk [vmem:[%s935 + $0xfa] sm:$0xff] %vm503, %v924
      %958 = vst.msk [vmem:[%s935 + $0x10a] sm:$0xff] %vm503, %v925
      %959 = vst.msk [vmem:[%s935 + $0x112] sm:$0xff] %vm503, %v926
      %960 = vst.msk [vmem:[%s935 + $0x122] sm:$0xff] %vm503, %v927
      %961 = vst.msk [vmem:[%s935 + $0x12a] sm:$0xff] %vm503, %v928
      %962 = vst.msk [vmem:[%s935 + $0x13a] sm:$0xff] %vm503, %v929
      %963 = vst.msk [vmem:[%s935 + $0x142] sm:$0xff] %vm503, %v930
      %964 = vst.msk [vmem:[%s935 + $0x152] sm:$0xff] %vm503, %v931
      %965 = vst.msk [vmem:[%s935 + $0x15a] sm:$0xff] %vm503, %v932
      %966 = vst.msk [vmem:[%s935 + $0x16a] sm:$0xff] %vm503, %v933
      %967 = vst.msk [vmem:[%s935 + $0x172] sm:$0xff] %vm503, %v934
      %p968 = scmp.gt.s32.totalorder %s28, 0
      // Predicated region
      $region69: #{tpu_custom_call.1} parent=67 // pred_check
        %p969 = pneg %p968
      $region70: #{tpu_custom_call.1} parent=67 // pred_check_branch
        %971 = sbr.rel (%p969) target = $region72
      $region71: #{tpu_custom_call.1} parent=67 // pred_region
        %v972 = vld [vmem:[%s481] sm:$0xff]
        %v973 = vld [vmem:[%s481 + $0x8] sm:$0xff]
        %v974 = vld [vmem:[%s481 + $0x10] sm:$0xff]
        %v975 = vld [vmem:[%s481 + $0x18] sm:$0xff]
        %v976 = vpack.c.bf16 %v973, %v972
        %v977 = vpack.c.bf16 %v975, %v974
        %v979 = vsel %vm613, %v976, 0
        %v982 = vsel %vm613, %v977, 0
        %984 = vmatprep.subr.bf16.mxu0 0
        %985 = vmatpush1.bf16.msra.mxu0 %v664
        %986 = vmatprep.subr.bf16.mxu0 0
        %987 = vmatpush1.bf16.msra.mxu0 0
        %988 = vmatprep.subr.bf16.mxu0 0
        %989 = vmatpush1.bf16.msra.mxu0 0
        %990 = vmatprep.subr.bf16.mxu0 0
        %991 = vmatpush1.bf16.msra.mxu0 0
        %992 = vmatprep.subr.bf16.mxu0 0
        %993 = vmatpush1.bf16.msra.mxu0 0
        %994 = vmatprep.subr.bf16.mxu0 0
        %995 = vmatpush1.bf16.msra.mxu0 0
        %996 = vmatprep.subr.bf16.mxu0 0
        %997 = vmatpush1.bf16.msra.mxu0 0
        %998 = vmatprep.subr.bf16.mxu0 0
        %999 = vmatpush1.bf16.msra.mxu0 0
        %1000 = vmatprep.subr.bf16.mxu0 0
        %1001 = vmatpush1.bf16.msra.mxu0 0
        %1002 = vmatprep.subr.bf16.mxu0 0
        %1003 = vmatpush1.bf16.msra.mxu0 0
        %1004 = vmatprep.subr.bf16.mxu0 0
        %1005 = vmatpush1.bf16.msra.mxu0 0
        %1006 = vmatprep.subr.bf16.mxu0 0
        %1007 = vmatpush1.bf16.msra.mxu0 0
        %1008 = vmatprep.subr.bf16.mxu0 0
        %1009 = vmatpush1.bf16.msra.mxu0 0
        %1010 = vmatprep.subr.bf16.mxu0 0
        %1011 = vmatpush1.bf16.msra.mxu0 0
        %1012 = vmatprep.subr.bf16.mxu0 0
        %1013 = vmatpush1.bf16.msra.mxu0 0
        %1014 = vmatprep.subr.bf16.mxu0 0
        %1015 = vmatpush1.bf16.msra.mxu0 0
        %1016 = vmatprep.mubr.bf16.mxu0 0
        %1017 = vmatmul.mubr.bf16.gmra.mrb[0].mxu0 %v979
        %v1018 = vpop.f32.mrb[0].mxu0
        %v1019 = vadd.f32 0.0, %v1018
        %v1020 = vpop.f32.mrb[0].mxu0
        %v1021 = vpop.f32.mrb[0].mxu0
        %v1022 = vadd.f32 0.0, %v1021
        %v1023 = vpop.f32.mrb[0].mxu0
        %1024 = vmatprep.mubr.bf16.mxu0 0
        %1025 = vmatmul.mubr.bf16.gmra.mrb[0].mxu0 %v982
        %v1026 = vpop.f32.mrb[0].mxu0
        %v1027 = vadd.f32 0.0, %v1026
        %v1028 = vpop.f32.mrb[0].mxu0
        %v1029 = vpop.f32.mrb[0].mxu0
        %v1030 = vadd.f32 0.0, %v1029
        %v1031 = vpop.f32.mrb[0].mxu0
        %1032 = vdwg.mxu0
        %v1033 = vmul.f32 %v1019, %v831
        %v1034 = vmul.f32 %v1022, %v831
        %v1035 = vmul.f32 %v1027, %v831
        %v1036 = vmul.f32 %v1030, %v831
        %v1037 = vadd.f32 %v1033, %v869
        %v1038 = vadd.f32 %v1034, %v869
        %v1039 = vadd.f32 %v1035, %v869
        %v1040 = vadd.f32 %v1036, %v869
        %v1041 = vmax.f32 %v1037, 0.0
        %v1042 = vmax.f32 %v1038, 0.0
        %v1043 = vmax.f32 %v1039, 0.0
        %v1044 = vmax.f32 %v1040, 0.0
        %1045 = vst.msk [vmem:[#allocation2 + $0x2] sm:$0xff] %vm503, %v1041
        %1046 = vst.msk [vmem:[#allocation2 + $0xa] sm:$0xff] %vm503, %v1042
        %1047 = vst.msk [vmem:[#allocation2 + $0x1a] sm:$0xff] %vm503, %v1043
        %1048 = vst.msk [vmem:[#allocation2 + $0x22] sm:$0xff] %vm503, %v1044
      $region72: #{tpu_custom_call.1} parent=67 // pred_fallthru
        _
      %p1049 = scmp.lt.s32.totalorder %s28, 0
      // Predicated region
      $region73: #{tpu_custom_call.1} parent=67 // pred_check
        %p1050 = pneg %p1049
      $region74: #{tpu_custom_call.1} parent=67 // pred_check_branch
        %1052 = sbr.rel (%p1050) target = $region76
      $region75: #{tpu_custom_call.1} parent=67 // pred_region
        %v1053 = vld [vmem:[%s486] sm:$0xff]
        %v1054 = vld [vmem:[%s486 + $0x8] sm:$0xff]
        %v1055 = vld [vmem:[%s486 + $0x10] sm:$0xff]
        %v1056 = vld [vmem:[%s486 + $0x18] sm:$0xff]
        %v1057 = vpack.c.bf16 %v1054, %v1053
        %v1058 = vpack.c.bf16 %v1056, %v1055
        %v1060 = vsel %vm613, %v1057, 0
        %v1063 = vsel %vm613, %v1058, 0
        %1065 = vmatprep.subr.bf16.mxu0 0
        %1066 = vmatpush1.bf16.msra.mxu0 %v664
        %1067 = vmatprep.subr.bf16.mxu0 0
        %1068 = vmatpush1.bf16.msra.mxu0 0
        %1069 = vmatprep.subr.bf16.mxu0 0
        %1070 = vmatpush1.bf16.msra.mxu0 0
        %1071 = vmatprep.subr.bf16.mxu0 0
        %1072 = vmatpush1.bf16.msra.mxu0 0
        %1073 = vmatprep.subr.bf16.mxu0 0
        %1074 = vmatpush1.bf16.msra.mxu0 0
        %1075 = vmatprep.subr.bf16.mxu0 0
        %1076 = vmatpush1.bf16.msra.mxu0 0
        %1077 = vmatprep.subr.bf16.mxu0 0
        %1078 = vmatpush1.bf16.msra.mxu0 0
        %1079 = vmatprep.subr.bf16.mxu0 0
        %1080 = vmatpush1.bf16.msra.mxu0 0
        %1081 = vmatprep.subr.bf16.mxu0 0
        %1082 = vmatpush1.bf16.msra.mxu0 0
        %1083 = vmatprep.subr.bf16.mxu0 0
        %1084 = vmatpush1.bf16.msra.mxu0 0
        %1085 = vmatprep.subr.bf16.mxu0 0
        %1086 = vmatpush1.bf16.msra.mxu0 0
        %1087 = vmatprep.subr.bf16.mxu0 0
        %1088 = vmatpush1.bf16.msra.mxu0 0
        %1089 = vmatprep.subr.bf16.mxu0 0
        %1090 = vmatpush1.bf16.msra.mxu0 0
        %1091 = vmatprep.subr.bf16.mxu0 0
        %1092 = vmatpush1.bf16.msra.mxu0 0
        %1093 = vmatprep.subr.bf16.mxu0 0
        %1094 = vmatpush1.bf16.msra.mxu0 0
        %1095 = vmatprep.subr.bf16.mxu0 0
        %1096 = vmatpush1.bf16.msra.mxu0 0
        %1097 = vmatprep.mubr.bf16.mxu0 0
        %1098 = vmatmul.mubr.bf16.gmra.mrb[0].mxu0 %v1060
        %v1099 = vpop.f32.mrb[0].mxu0
        %v1100 = vadd.f32 0.0, %v1099
        %v1101 = vpop.f32.mrb[0].mxu0
        %v1102 = vpop.f32.mrb[0].mxu0
        %v1103 = vadd.f32 0.0, %v1102
        %v1104 = vpop.f32.mrb[0].mxu0
        %1105 = vmatprep.mubr.bf16.mxu0 0
        %1106 = vmatmul.mubr.bf16.gmra.mrb[0].mxu0 %v1063
        %v1107 = vpop.f32.mrb[0].mxu0
        %v1108 = vadd.f32 0.0, %v1107
        %v1109 = vpop.f32.mrb[0].mxu0
        %v1110 = vpop.f32.mrb[0].mxu0
        %v1111 = vadd.f32 0.0, %v1110
        %v1112 = vpop.f32.mrb[0].mxu0
        %1113 = vdwg.mxu0
        %v1114 = vmul.f32 %v1100, %v831
        %v1115 = vmul.f32 %v1103, %v831
        %v1116 = vmul.f32 %v1108, %v831
        %v1117 = vmul.f32 %v1111, %v831
        %v1118 = vadd.f32 %v1114, %v869
        %v1119 = vadd.f32 %v1115, %v869
        %v1120 = vadd.f32 %v1116, %v869
        %v1121 = vadd.f32 %v1117, %v869
        %v1122 = vmax.f32 %v1118, 0.0
        %v1123 = vmax.f32 %v1119, 0.0
        %v1124 = vmax.f32 %v1120, 0.0
        %v1125 = vmax.f32 %v1121, 0.0
        %s1126 = scalar_lea.vmem [#allocation2], 432
        %1127 = vst.msk [vmem:[%s1126 + $0x2] sm:$0xff] %vm503, %v1122
        %1128 = vst.msk [vmem:[%s1126 + $0xa] sm:$0xff] %vm503, %v1123
        %1129 = vst.msk [vmem:[%s1126 + $0x1a] sm:$0xff] %vm503, %v1124
        %1130 = vst.msk [vmem:[%s1126 + $0x22] sm:$0xff] %vm503, %v1125
      $region76: #{tpu_custom_call.1} parent=67 // pred_fallthru
        _
      %v1131 = vld [vmem:[#allocation2] sm:$0xff]
      %v1132 = vld [vmem:[#allocation2 + $0x8] sm:$0xff]
      %v1133 = vld [vmem:[#allocation2 + $0x18] sm:$0xff]
      %v1134 = vld [vmem:[#allocation2 + $0x20] sm:$0xff]
      %v1135 = vld [vmem:[#allocation2 + $0x30] sm:$0xff]
      %v1136 = vld [vmem:[#allocation2 + $0x38] sm:$0xff]
      %v1137 = vld [vmem:[#allocation2 + $0x48] sm:$0xff]
      %v1138 = vld [vmem:[#allocation2 + $0x50] sm:$0xff]
      %v1139 = vld [vmem:[#allocation2 + $0x60] sm:$0xff]
      %v1140 = vld [vmem:[#allocation2 + $0x68] sm:$0xff]
      %v1141 = vld [vmem:[#allocation2 + $0x78] sm:$0xff]
      %v1142 = vld [vmem:[#allocation2 + $0x80] sm:$0xff]
      %v1143 = vld [vmem:[#allocation2 + $0x90] sm:$0xff]
      %v1144 = vld [vmem:[#allocation2 + $0x98] sm:$0xff]
      %v1145 = vld [vmem:[#allocation2 + $0xa8] sm:$0xff]
      %v1146 = vld [vmem:[#allocation2 + $0xb0] sm:$0xff]
      %v1147 = vld [vmem:[#allocation2 + $0xc0] sm:$0xff]
      %v1148 = vld [vmem:[#allocation2 + $0xc8] sm:$0xff]
      %v1149 = vld [vmem:[#allocation2 + $0xd8] sm:$0xff]
      %v1150 = vld [vmem:[#allocation2 + $0xe0] sm:$0xff]
      %v1151 = vld [vmem:[#allocation2 + $0xf0] sm:$0xff]
      %v1152 = vld [vmem:[#allocation2 + $0xf8] sm:$0xff]
      %v1153 = vld [vmem:[#allocation2 + $0x108] sm:$0xff]
      %v1154 = vld [vmem:[#allocation2 + $0x110] sm:$0xff]
      %v1155 = vld [vmem:[#allocation2 + $0x120] sm:$0xff]
      %v1156 = vld [vmem:[#allocation2 + $0x128] sm:$0xff]
      %v1157 = vld [vmem:[#allocation2 + $0x138] sm:$0xff]
      %v1158 = vld [vmem:[#allocation2 + $0x140] sm:$0xff]
      %v1159 = vld [vmem:[#allocation2 + $0x150] sm:$0xff]
      %v1160 = vld [vmem:[#allocation2 + $0x158] sm:$0xff]
      %v1161 = vld [vmem:[#allocation2 + $0x168] sm:$0xff]
      %v1162 = vld [vmem:[#allocation2 + $0x170] sm:$0xff]
      %v1163 = vpack.c.bf16 %v1132, %v1131
      %v1164 = vpack.c.bf16 %v1134, %v1133
      %v1165 = vpack.c.bf16 %v1136, %v1135
      %v1166 = vpack.c.bf16 %v1138, %v1137
      %v1167 = vpack.c.bf16 %v1140, %v1139
      %v1168 = vpack.c.bf16 %v1142, %v1141
      %v1169 = vpack.c.bf16 %v1144, %v1143
      %v1170 = vpack.c.bf16 %v1146, %v1145
      %v1171 = vpack.c.bf16 %v1148, %v1147
      %v1172 = vpack.c.bf16 %v1150, %v1149
      %v1173 = vpack.c.bf16 %v1152, %v1151
      %v1174 = vpack.c.bf16 %v1154, %v1153
      %v1175 = vpack.c.bf16 %v1156, %v1155
      %v1176 = vpack.c.bf16 %v1158, %v1157
      %v1177 = vpack.c.bf16 %v1160, %v1159
      %v1178 = vpack.c.bf16 %v1162, %v1161
      %v1179 = vld [vmem:[%s6] sm:$0x3]
      %v1180 = vpack.c.bf16 %v1179, %v1179
      %v1181 = vld [vmem:[#allocation2 + $0x2] sm:$0xff]
      %v1182 = vld [vmem:[#allocation2 + $0xa] sm:$0xff]
      %v1183 = vld [vmem:[#allocation2 + $0x1a] sm:$0xff]
      %v1184 = vld [vmem:[#allocation2 + $0x22] sm:$0xff]
      %v1185 = vld [vmem:[#allocation2 + $0x32] sm:$0xff]
      %v1186 = vld [vmem:[#allocation2 + $0x3a] sm:$0xff]
      %v1187 = vld [vmem:[#allocation2 + $0x4a] sm:$0xff]
      %v1188 = vld [vmem:[#allocation2 + $0x52] sm:$0xff]
      %v1189 = vld [vmem:[#allocation2 + $0x62] sm:$0xff]
      %v1190 = vld [vmem:[#allocation2 + $0x6a] sm:$0xff]
      %v1191 = vld [vmem:[#allocation2 + $0x7a] sm:$0xff]
      %v1192 = vld [vmem:[#allocation2 + $0x82] sm:$0xff]
      %v1193 = vld [vmem:[#allocation2 + $0x92] sm:$0xff]
      %v1194 = vld [vmem:[#allocation2 + $0x9a] sm:$0xff]
      %v1195 = vld [vmem:[#allocation2 + $0xaa] sm:$0xff]
      %v1196 = vld [vmem:[#allocation2 + $0xb2] sm:$0xff]
      %v1197 = vld [vmem:[#allocation2 + $0xc2] sm:$0xff]
      %v1198 = vld [vmem:[#allocation2 + $0xca] sm:$0xff]
      %v1199 = vld [vmem:[#allocation2 + $0xda] sm:$0xff]
      %v1200 = vld [vmem:[#allocation2 + $0xe2] sm:$0xff]
      %v1201 = vld [vmem:[#allocation2 + $0xf2] sm:$0xff]
      %v1202 = vld [vmem:[#allocation2 + $0xfa] sm:$0xff]
      %v1203 = vld [vmem:[#allocation2 + $0x10a] sm:$0xff]
      %v1204 = vld [vmem:[#allocation2 + $0x112] sm:$0xff]
      %v1205 = vld [vmem:[#allocation2 + $0x122] sm:$0xff]
      %v1206 = vld [vmem:[#allocation2 + $0x12a] sm:$0xff]
      %v1207 = vld [vmem:[#allocation2 + $0x13a] sm:$0xff]
      %v1208 = vld [vmem:[#allocation2 + $0x142] sm:$0xff]
      %v1209 = vld [vmem:[#allocation2 + $0x152] sm:$0xff]
      %v1210 = vld [vmem:[#allocation2 + $0x15a] sm:$0xff]
      %v1211 = vld [vmem:[#allocation2 + $0x16a] sm:$0xff]
      %v1212 = vld [vmem:[#allocation2 + $0x172] sm:$0xff]
      %v1213 = vpack.c.bf16 %v1182, %v1181
      %v1214 = vpack.c.bf16 %v1184, %v1183
      %v1215 = vpack.c.bf16 %v1186, %v1185
      %v1216 = vpack.c.bf16 %v1188, %v1187
      %v1217 = vpack.c.bf16 %v1190, %v1189
      %v1218 = vpack.c.bf16 %v1192, %v1191
      %v1219 = vpack.c.bf16 %v1194, %v1193
      %v1220 = vpack.c.bf16 %v1196, %v1195
      %v1221 = vpack.c.bf16 %v1198, %v1197
      %v1222 = vpack.c.bf16 %v1200, %v1199
      %v1223 = vpack.c.bf16 %v1202, %v1201
      %v1224 = vpack.c.bf16 %v1204, %v1203
      %v1225 = vpack.c.bf16 %v1206, %v1205
      %v1226 = vpack.c.bf16 %v1208, %v1207
      %v1227 = vpack.c.bf16 %v1210, %v1209
      %v1228 = vpack.c.bf16 %v1212, %v1211
      %s1229 = scalar_lea.vmem %s6, 2
      %v1230 = vld [vmem:[%s1229] sm:$0x3]
      %v1231 = vpack.c.bf16 %v1230, %v1230
      %v1233 = vsel %vm503, %v1213, 0
      %v1236 = vsel %vm503, %v1214, 0
      %v1239 = vsel %vm503, %v1215, 0
      %v1242 = vsel %vm503, %v1216, 0
      %v1245 = vsel %vm503, %v1217, 0
      %v1248 = vsel %vm503, %v1218, 0
      %v1251 = vsel %vm503, %v1219, 0
      %v1254 = vsel %vm503, %v1220, 0
      %v1257 = vsel %vm503, %v1221, 0
      %v1260 = vsel %vm503, %v1222, 0
      %v1263 = vsel %vm503, %v1223, 0
      %v1266 = vsel %vm503, %v1224, 0
      %v1269 = vsel %vm503, %v1225, 0
      %v1272 = vsel %vm503, %v1226, 0
      %v1275 = vsel %vm503, %v1227, 0
      %v1278 = vsel %vm503, %v1228, 0
      %vm1280 = vcmask 1040384
      %v1282 = vsel %vm1280, %v1231, 0
      %1284 = vmatprep.subr.bf16.mxu0 0
      %1285 = vmatpush1.bf16.msra.mxu0 %v1282
      %1286 = vmatprep.subr.bf16.mxu0 0
      %1287 = vmatpush1.bf16.msra.mxu0 0
      %1288 = vmatprep.subr.bf16.mxu0 0
      %1289 = vmatpush1.bf16.msra.mxu0 0
      %1290 = vmatprep.subr.bf16.mxu0 0
      %1291 = vmatpush1.bf16.msra.mxu0 0
      %1292 = vmatprep.subr.bf16.mxu0 0
      %1293 = vmatpush1.bf16.msra.mxu0 0
      %1294 = vmatprep.subr.bf16.mxu0 0
      %1295 = vmatpush1.bf16.msra.mxu0 0
      %1296 = vmatprep.subr.bf16.mxu0 0
      %1297 = vmatpush1.bf16.msra.mxu0 0
      %1298 = vmatprep.subr.bf16.mxu0 0
      %1299 = vmatpush1.bf16.msra.mxu0 0
      %1300 = vmatprep.subr.bf16.mxu0 0
      %1301 = vmatpush1.bf16.msra.mxu0 0
      %1302 = vmatprep.subr.bf16.mxu0 0
      %1303 = vmatpush1.bf16.msra.mxu0 0
      %1304 = vmatprep.subr.bf16.mxu0 0
      %1305 = vmatpush1.bf16.msra.mxu0 0
      %1306 = vmatprep.subr.bf16.mxu0 0
      %1307 = vmatpush1.bf16.msra.mxu0 0
      %1308 = vmatprep.subr.bf16.mxu0 0
      %1309 = vmatpush1.bf16.msra.mxu0 0
      %1310 = vmatprep.subr.bf16.mxu0 0
      %1311 = vmatpush1.bf16.msra.mxu0 0
      %1312 = vmatprep.subr.bf16.mxu0 0
      %1313 = vmatpush1.bf16.msra.mxu0 0
      %1314 = vmatprep.subr.bf16.mxu0 0
      %1315 = vmatpush1.bf16.msra.mxu0 0
      %1316 = vmatprep.mubr.bf16.mxu0 0
      %1317 = vmatmul.mubr.bf16.gmra.mrb[0].mxu0 %v1233
      %v1318 = vpop.f32.mrb[0].mxu0
      %v1319 = vadd.f32 0.0, %v1318
      %v1320 = vpop.f32.mrb[0].mxu0
      %v1321 = vpop.f32.mrb[0].mxu0
      %v1322 = vadd.f32 0.0, %v1321
      %v1323 = vpop.f32.mrb[0].mxu0
      %1324 = vmatprep.mubr.bf16.mxu0 0
      %1325 = vmatmul.mubr.bf16.gmra.mrb[0].mxu0 %v1236
      %v1326 = vpop.f32.mrb[0].mxu0
      %v1327 = vadd.f32 0.0, %v1326
      %v1328 = vpop.f32.mrb[0].mxu0
      %v1329 = vpop.f32.mrb[0].mxu0
      %v1330 = vadd.f32 0.0, %v1329
      %v1331 = vpop.f32.mrb[0].mxu0
      %1332 = vmatprep.mubr.bf16.mxu0 0
      %1333 = vmatmul.mubr.bf16.gmra.mrb[0].mxu0 %v1239
      %v1334 = vpop.f32.mrb[0].mxu0
      %v1335 = vadd.f32 0.0, %v1334
      %v1336 = vpop.f32.mrb[0].mxu0
      %v1337 = vpop.f32.mrb[0].mxu0
      %v1338 = vadd.f32 0.0, %v1337
      %v1339 = vpop.f32.mrb[0].mxu0
      %1340 = vmatprep.mubr.bf16.mxu0 0
      %1341 = vmatmul.mubr.bf16.gmra.mrb[0].mxu0 %v1242
      %v1342 = vpop.f32.mrb[0].mxu0
      %v1343 = vadd.f32 0.0, %v1342
      %v1344 = vpop.f32.mrb[0].mxu0
      %v1345 = vpop.f32.mrb[0].mxu0
      %v1346 = vadd.f32 0.0, %v1345
      %v1347 = vpop.f32.mrb[0].mxu0
      %1348 = vmatprep.mubr.bf16.mxu0 0
      %1349 = vmatmul.mubr.bf16.gmra.mrb[0].mxu0 %v1245
      %v1350 = vpop.f32.mrb[0].mxu0
      %v1351 = vadd.f32 0.0, %v1350
      %v1352 = vpop.f32.mrb[0].mxu0
      %v1353 = vpop.f32.mrb[0].mxu0
      %v1354 = vadd.f32 0.0, %v1353
      %v1355 = vpop.f32.mrb[0].mxu0
      %1356 = vmatprep.mubr.bf16.mxu0 0
      %1357 = vmatmul.mubr.bf16.gmra.mrb[0].mxu0 %v1248
      %v1358 = vpop.f32.mrb[0].mxu0
      %v1359 = vadd.f32 0.0, %v1358
      %v1360 = vpop.f32.mrb[0].mxu0
      %v1361 = vpop.f32.mrb[0].mxu0
      %v1362 = vadd.f32 0.0, %v1361
      %v1363 = vpop.f32.mrb[0].mxu0
      %1364 = vmatprep.mubr.bf16.mxu0 0
      %1365 = vmatmul.mubr.bf16.gmra.mrb[0].mxu0 %v1251
      %v1366 = vpop.f32.mrb[0].mxu0
      %v1367 = vadd.f32 0.0, %v1366
      %v1368 = vpop.f32.mrb[0].mxu0
      %v1369 = vpop.f32.mrb[0].mxu0
      %v1370 = vadd.f32 0.0, %v1369
      %v1371 = vpop.f32.mrb[0].mxu0
      %1372 = vmatprep.mubr.bf16.mxu0 0
      %1373 = vmatmul.mubr.bf16.gmra.mrb[0].mxu0 %v1254
      %v1374 = vpop.f32.mrb[0].mxu0
      %v1375 = vadd.f32 0.0, %v1374
      %v1376 = vpop.f32.mrb[0].mxu0
      %v1377 = vpop.f32.mrb[0].mxu0
      %v1378 = vadd.f32 0.0, %v1377
      %v1379 = vpop.f32.mrb[0].mxu0
      %1380 = vmatprep.mubr.bf16.mxu0 0
      %1381 = vmatmul.mubr.bf16.gmra.mrb[0].mxu0 %v1257
      %v1382 = vpop.f32.mrb[0].mxu0
      %v1383 = vadd.f32 0.0, %v1382
      %v1384 = vpop.f32.mrb[0].mxu0
      %v1385 = vpop.f32.mrb[0].mxu0
      %v1386 = vadd.f32 0.0, %v1385
      %v1387 = vpop.f32.mrb[0].mxu0
      %1388 = vmatprep.mubr.bf16.mxu0 0
      %1389 = vmatmul.mubr.bf16.gmra.mrb[0].mxu0 %v1260
      %v1390 = vpop.f32.mrb[0].mxu0
      %v1391 = vadd.f32 0.0, %v1390
      %v1392 = vpop.f32.mrb[0].mxu0
      %v1393 = vpop.f32.mrb[0].mxu0
      %v1394 = vadd.f32 0.0, %v1393
      %v1395 = vpop.f32.mrb[0].mxu0
      %1396 = vmatprep.mubr.bf16.mxu0 0
      %1397 = vmatmul.mubr.bf16.gmra.mrb[0].mxu0 %v1263
      %v1398 = vpop.f32.mrb[0].mxu0
      %v1399 = vadd.f32 0.0, %v1398
      %v1400 = vpop.f32.mrb[0].mxu0
      %v1401 = vpop.f32.mrb[0].mxu0
      %v1402 = vadd.f32 0.0, %v1401
      %v1403 = vpop.f32.mrb[0].mxu0
      %1404 = vmatprep.mubr.bf16.mxu0 0
      %1405 = vmatmul.mubr.bf16.gmra.mrb[0].mxu0 %v1266
      %v1406 = vpop.f32.mrb[0].mxu0
      %v1407 = vadd.f32 0.0, %v1406
      %v1408 = vpop.f32.mrb[0].mxu0
      %v1409 = vpop.f32.mrb[0].mxu0
      %v1410 = vadd.f32 0.0, %v1409
      %v1411 = vpop.f32.mrb[0].mxu0
      %1412 = vmatprep.mubr.bf16.mxu0 0
      %1413 = vmatmul.mubr.bf16.gmra.mrb[0].mxu0 %v1269
      %v1414 = vpop.f32.mrb[0].mxu0
      %v1415 = vadd.f32 0.0, %v1414
      %v1416 = vpop.f32.mrb[0].mxu0
      %v1417 = vpop.f32.mrb[0].mxu0
      %v1418 = vadd.f32 0.0, %v1417
      %v1419 = vpop.f32.mrb[0].mxu0
      %1420 = vmatprep.mubr.bf16.mxu0 0
      %1421 = vmatmul.mubr.bf16.gmra.mrb[0].mxu0 %v1272
      %v1422 = vpop.f32.mrb[0].mxu0
      %v1423 = vadd.f32 0.0, %v1422
      %v1424 = vpop.f32.mrb[0].mxu0
      %v1425 = vpop.f32.mrb[0].mxu0
      %v1426 = vadd.f32 0.0, %v1425
      %v1427 = vpop.f32.mrb[0].mxu0
      %1428 = vmatprep.mubr.bf16.mxu0 0
      %1429 = vmatmul.mubr.bf16.gmra.mrb[0].mxu0 %v1275
      %v1430 = vpop.f32.mrb[0].mxu0
      %v1431 = vadd.f32 0.0, %v1430
      %v1432 = vpop.f32.mrb[0].mxu0
      %v1433 = vpop.f32.mrb[0].mxu0
      %v1434 = vadd.f32 0.0, %v1433
      %v1435 = vpop.f32.mrb[0].mxu0
      %1436 = vmatprep.mubr.bf16.mxu0 0
      %1437 = vmatmul.mubr.bf16.gmra.mrb[0].mxu0 %v1278
      %v1438 = vpop.f32.mrb[0].mxu0
      %v1439 = vadd.f32 0.0, %v1438
      %v1440 = vpop.f32.mrb[0].mxu0
      %v1441 = vpop.f32.mrb[0].mxu0
      %v1442 = vadd.f32 0.0, %v1441
      %v1443 = vpop.f32.mrb[0].mxu0
      %1444 = vdwg.mxu0
      %v1446 = vsel %vm503, %v1163, 0
      %v1449 = vsel %vm503, %v1164, 0
      %v1452 = vsel %vm503, %v1165, 0
      %v1455 = vsel %vm503, %v1166, 0
      %v1458 = vsel %vm503, %v1167, 0
      %v1461 = vsel %vm503, %v1168, 0
      %v1464 = vsel %vm503, %v1169, 0
      %v1467 = vsel %vm503, %v1170, 0
      %v1470 = vsel %vm503, %v1171, 0
      %v1473 = vsel %vm503, %v1172, 0
      %v1476 = vsel %vm503, %v1173, 0
      %v1479 = vsel %vm503, %v1174, 0
      %v1482 = vsel %vm503, %v1175, 0
      %v1485 = vsel %vm503, %v1176, 0
      %v1488 = vsel %vm503, %v1177, 0
      %v1491 = vsel %vm503, %v1178, 0
      %v1494 = vsel %vm1280, %v1180, 0
      %1496 = vmatprep.subr.bf16.mxu0 0
      %1497 = vmatpush1.bf16.msra.mxu0 %v1494
      %1498 = vmatprep.subr.bf16.mxu0 0
      %1499 = vmatpush1.bf16.msra.mxu0 0
      %1500 = vmatprep.subr.bf16.mxu0 0
      %1501 = vmatpush1.bf16.msra.mxu0 0
      %1502 = vmatprep.subr.bf16.mxu0 0
      %1503 = vmatpush1.bf16.msra.mxu0 0
      %1504 = vmatprep.subr.bf16.mxu0 0
      %1505 = vmatpush1.bf16.msra.mxu0 0
      %1506 = vmatprep.subr.bf16.mxu0 0
      %1507 = vmatpush1.bf16.msra.mxu0 0
      %1508 = vmatprep.subr.bf16.mxu0 0
      %1509 = vmatpush1.bf16.msra.mxu0 0
      %1510 = vmatprep.subr.bf16.mxu0 0
      %1511 = vmatpush1.bf16.msra.mxu0 0
      %1512 = vmatprep.subr.bf16.mxu0 0
      %1513 = vmatpush1.bf16.msra.mxu0 0
      %1514 = vmatprep.subr.bf16.mxu0 0
      %1515 = vmatpush1.bf16.msra.mxu0 0
      %1516 = vmatprep.subr.bf16.mxu0 0
      %1517 = vmatpush1.bf16.msra.mxu0 0
      %1518 = vmatprep.subr.bf16.mxu0 0
      %1519 = vmatpush1.bf16.msra.mxu0 0
      %1520 = vmatprep.subr.bf16.mxu0 0
      %1521 = vmatpush1.bf16.msra.mxu0 0
      %1522 = vmatprep.subr.bf16.mxu0 0
      %1523 = vmatpush1.bf16.msra.mxu0 0
      %1524 = vmatprep.subr.bf16.mxu0 0
      %1525 = vmatpush1.bf16.msra.mxu0 0
      %1526 = vmatprep.subr.bf16.mxu0 0
      %1527 = vmatpush1.bf16.msra.mxu0 0
      %1528 = vmatprep.mubr.bf16.mxu0 0
      %1529 = vmatmul.mubr.bf16.gmra.mrb[0].mxu0 %v1446
      %v1530 = vpop.f32.mrb[0].mxu0
      %v1531 = vadd.f32 %v1319, %v1530
      %v1532 = vpop.f32.mrb[0].mxu0
      %v1533 = vpop.f32.mrb[0].mxu0
      %v1534 = vadd.f32 %v1322, %v1533
      %v1535 = vpop.f32.mrb[0].mxu0
      %1536 = vmatprep.mubr.bf16.mxu0 0
      %1537 = vmatmul.mubr.bf16.gmra.mrb[0].mxu0 %v1449
      %v1538 = vpop.f32.mrb[0].mxu0
      %v1539 = vadd.f32 %v1327, %v1538
      %v1540 = vpop.f32.mrb[0].mxu0
      %v1541 = vpop.f32.mrb[0].mxu0
      %v1542 = vadd.f32 %v1330, %v1541
      %v1543 = vpop.f32.mrb[0].mxu0
      %1544 = vmatprep.mubr.bf16.mxu0 0
      %1545 = vmatmul.mubr.bf16.gmra.mrb[0].mxu0 %v1452
      %v1546 = vpop.f32.mrb[0].mxu0
      %v1547 = vadd.f32 %v1335, %v1546
      %v1548 = vpop.f32.mrb[0].mxu0
      %v1549 = vpop.f32.mrb[0].mxu0
      %v1550 = vadd.f32 %v1338, %v1549
      %v1551 = vpop.f32.mrb[0].mxu0
      %1552 = vmatprep.mubr.bf16.mxu0 0
      %1553 = vmatmul.mubr.bf16.gmra.mrb[0].mxu0 %v1455
      %v1554 = vpop.f32.mrb[0].mxu0
      %v1555 = vadd.f32 %v1343, %v1554
      %v1556 = vpop.f32.mrb[0].mxu0
      %v1557 = vpop.f32.mrb[0].mxu0
      %v1558 = vadd.f32 %v1346, %v1557
      %v1559 = vpop.f32.mrb[0].mxu0
      %1560 = vmatprep.mubr.bf16.mxu0 0
      %1561 = vmatmul.mubr.bf16.gmra.mrb[0].mxu0 %v1458
      %v1562 = vpop.f32.mrb[0].mxu0
      %v1563 = vadd.f32 %v1351, %v1562
      %v1564 = vpop.f32.mrb[0].mxu0
      %v1565 = vpop.f32.mrb[0].mxu0
      %v1566 = vadd.f32 %v1354, %v1565
      %v1567 = vpop.f32.mrb[0].mxu0
      %1568 = vmatprep.mubr.bf16.mxu0 0
      %1569 = vmatmul.mubr.bf16.gmra.mrb[0].mxu0 %v1461
      %v1570 = vpop.f32.mrb[0].mxu0
      %v1571 = vadd.f32 %v1359, %v1570
      %v1572 = vpop.f32.mrb[0].mxu0
      %v1573 = vpop.f32.mrb[0].mxu0
      %v1574 = vadd.f32 %v1362, %v1573
      %v1575 = vpop.f32.mrb[0].mxu0
      %1576 = vmatprep.mubr.bf16.mxu0 0
      %1577 = vmatmul.mubr.bf16.gmra.mrb[0].mxu0 %v1464
      %v1578 = vpop.f32.mrb[0].mxu0
      %v1579 = vadd.f32 %v1367, %v1578
      %v1580 = vpop.f32.mrb[0].mxu0
      %v1581 = vpop.f32.mrb[0].mxu0
      %v1582 = vadd.f32 %v1370, %v1581
      %v1583 = vpop.f32.mrb[0].mxu0
      %1584 = vmatprep.mubr.bf16.mxu0 0
      %1585 = vmatmul.mubr.bf16.gmra.mrb[0].mxu0 %v1467
      %v1586 = vpop.f32.mrb[0].mxu0
      %v1587 = vadd.f32 %v1375, %v1586
      %v1588 = vpop.f32.mrb[0].mxu0
      %v1589 = vpop.f32.mrb[0].mxu0
      %v1590 = vadd.f32 %v1378, %v1589
      %v1591 = vpop.f32.mrb[0].mxu0
      %1592 = vmatprep.mubr.bf16.mxu0 0
      %1593 = vmatmul.mubr.bf16.gmra.mrb[0].mxu0 %v1470
      %v1594 = vpop.f32.mrb[0].mxu0
      %v1595 = vadd.f32 %v1383, %v1594
      %v1596 = vpop.f32.mrb[0].mxu0
      %v1597 = vpop.f32.mrb[0].mxu0
      %v1598 = vadd.f32 %v1386, %v1597
      %v1599 = vpop.f32.mrb[0].mxu0
      %1600 = vmatprep.mubr.bf16.mxu0 0
      %1601 = vmatmul.mubr.bf16.gmra.mrb[0].mxu0 %v1473
      %v1602 = vpop.f32.mrb[0].mxu0
      %v1603 = vadd.f32 %v1391, %v1602
      %v1604 = vpop.f32.mrb[0].mxu0
      %v1605 = vpop.f32.mrb[0].mxu0
      %v1606 = vadd.f32 %v1394, %v1605
      %v1607 = vpop.f32.mrb[0].mxu0
      %1608 = vmatprep.mubr.bf16.mxu0 0
      %1609 = vmatmul.mubr.bf16.gmra.mrb[0].mxu0 %v1476
      %v1610 = vpop.f32.mrb[0].mxu0
      %v1611 = vadd.f32 %v1399, %v1610
      %v1612 = vpop.f32.mrb[0].mxu0
      %v1613 = vpop.f32.mrb[0].mxu0
      %v1614 = vadd.f32 %v1402, %v1613
      %v1615 = vpop.f32.mrb[0].mxu0
      %1616 = vmatprep.mubr.bf16.mxu0 0
      %1617 = vmatmul.mubr.bf16.gmra.mrb[0].mxu0 %v1479
      %v1618 = vpop.f32.mrb[0].mxu0
      %v1619 = vadd.f32 %v1407, %v1618
      %v1620 = vpop.f32.mrb[0].mxu0
      %v1621 = vpop.f32.mrb[0].mxu0
      %v1622 = vadd.f32 %v1410, %v1621
      %v1623 = vpop.f32.mrb[0].mxu0
      %1624 = vmatprep.mubr.bf16.mxu0 0
      %1625 = vmatmul.mubr.bf16.gmra.mrb[0].mxu0 %v1482
      %v1626 = vpop.f32.mrb[0].mxu0
      %v1627 = vadd.f32 %v1415, %v1626
      %v1628 = vpop.f32.mrb[0].mxu0
      %v1629 = vpop.f32.mrb[0].mxu0
      %v1630 = vadd.f32 %v1418, %v1629
      %v1631 = vpop.f32.mrb[0].mxu0
      %1632 = vmatprep.mubr.bf16.mxu0 0
      %1633 = vmatmul.mubr.bf16.gmra.mrb[0].mxu0 %v1485
      %v1634 = vpop.f32.mrb[0].mxu0
      %v1635 = vadd.f32 %v1423, %v1634
      %v1636 = vpop.f32.mrb[0].mxu0
      %v1637 = vpop.f32.mrb[0].mxu0
      %v1638 = vadd.f32 %v1426, %v1637
      %v1639 = vpop.f32.mrb[0].mxu0
      %1640 = vmatprep.mubr.bf16.mxu0 0
      %1641 = vmatmul.mubr.bf16.gmra.mrb[0].mxu0 %v1488
      %v1642 = vpop.f32.mrb[0].mxu0
      %v1643 = vadd.f32 %v1431, %v1642
      %v1644 = vpop.f32.mrb[0].mxu0
      %v1645 = vpop.f32.mrb[0].mxu0
      %v1646 = vadd.f32 %v1434, %v1645
      %v1647 = vpop.f32.mrb[0].mxu0
      %1648 = vmatprep.mubr.bf16.mxu0 0
      %1649 = vmatmul.mubr.bf16.gmra.mrb[0].mxu0 %v1491
      %v1650 = vpop.f32.mrb[0].mxu0
      %v1651 = vadd.f32 %v1439, %v1650
      %v1652 = vpop.f32.mrb[0].mxu0
      %v1653 = vpop.f32.mrb[0].mxu0
      %v1654 = vadd.f32 %v1442, %v1653
      %v1655 = vpop.f32.mrb[0].mxu0
      %1656 = vdwg.mxu0
      %v1657 = vld [vmem:[#allocation2 + $0x4] sm:$0xff]
      %v1658 = vld [vmem:[#allocation2 + $0xc] sm:$0xff]
      %v1659 = vld [vmem:[#allocation2 + $0x1c] sm:$0xff]
      %v1660 = vld [vmem:[#allocation2 + $0x24] sm:$0xff]
      %v1661 = vld [vmem:[#allocation2 + $0x34] sm:$0xff]
      %v1662 = vld [vmem:[#allocation2 + $0x3c] sm:$0xff]
      %v1663 = vld [vmem:[#allocation2 + $0x4c] sm:$0xff]
      %v1664 = vld [vmem:[#allocation2 + $0x54] sm:$0xff]
      %v1665 = vld [vmem:[#allocation2 + $0x64] sm:$0xff]
      %v1666 = vld [vmem:[#allocation2 + $0x6c] sm:$0xff]
      %v1667 = vld [vmem:[#allocation2 + $0x7c] sm:$0xff]
      %v1668 = vld [vmem:[#allocation2 + $0x84] sm:$0xff]
      %v1669 = vld [vmem:[#allocation2 + $0x94] sm:$0xff]
      %v1670 = vld [vmem:[#allocation2 + $0x9c] sm:$0xff]
      %v1671 = vld [vmem:[#allocation2 + $0xac] sm:$0xff]
      %v1672 = vld [vmem:[#allocation2 + $0xb4] sm:$0xff]
      %v1673 = vld [vmem:[#allocation2 + $0xc4] sm:$0xff]
      %v1674 = vld [vmem:[#allocation2 + $0xcc] sm:$0xff]
      %v1675 = vld [vmem:[#allocation2 + $0xdc] sm:$0xff]
      %v1676 = vld [vmem:[#allocation2 + $0xe4] sm:$0xff]
      %v1677 = vld [vmem:[#allocation2 + $0xf4] sm:$0xff]
      %v1678 = vld [vmem:[#allocation2 + $0xfc] sm:$0xff]
      %v1679 = vld [vmem:[#allocation2 + $0x10c] sm:$0xff]
      %v1680 = vld [vmem:[#allocation2 + $0x114] sm:$0xff]
      %v1681 = vld [vmem:[#allocation2 + $0x124] sm:$0xff]
      %v1682 = vld [vmem:[#allocation2 + $0x12c] sm:$0xff]
      %v1683 = vld [vmem:[#allocation2 + $0x13c] sm:$0xff]
      %v1684 = vld [vmem:[#allocation2 + $0x144] sm:$0xff]
      %v1685 = vld [vmem:[#allocation2 + $0x154] sm:$0xff]
      %v1686 = vld [vmem:[#allocation2 + $0x15c] sm:$0xff]
      %v1687 = vld [vmem:[#allocation2 + $0x16c] sm:$0xff]
      %v1688 = vld [vmem:[#allocation2 + $0x174] sm:$0xff]
      %v1689 = vpack.c.bf16 %v1658, %v1657
      %v1690 = vpack.c.bf16 %v1660, %v1659
      %v1691 = vpack.c.bf16 %v1662, %v1661
      %v1692 = vpack.c.bf16 %v1664, %v1663
      %v1693 = vpack.c.bf16 %v1666, %v1665
      %v1694 = vpack.c.bf16 %v1668, %v1667
      %v1695 = vpack.c.bf16 %v1670, %v1669
      %v1696 = vpack.c.bf16 %v1672, %v1671
      %v1697 = vpack.c.bf16 %v1674, %v1673
      %v1698 = vpack.c.bf16 %v1676, %v1675
      %v1699 = vpack.c.bf16 %v1678, %v1677
      %v1700 = vpack.c.bf16 %v1680, %v1679
      %v1701 = vpack.c.bf16 %v1682, %v1681
      %v1702 = vpack.c.bf16 %v1684, %v1683
      %v1703 = vpack.c.bf16 %v1686, %v1685
      %v1704 = vpack.c.bf16 %v1688, %v1687
      %s1705 = scalar_lea.vmem %s6, 4
      %v1706 = vld [vmem:[%s1705] sm:$0x3]
      %v1707 = vpack.c.bf16 %v1706, %v1706
      %v1709 = vsel %vm503, %v1689, 0
      %v1712 = vsel %vm503, %v1690, 0
      %v1715 = vsel %vm503, %v1691, 0
      %v1718 = vsel %vm503, %v1692, 0
      %v1721 = vsel %vm503, %v1693, 0
      %v1724 = vsel %vm503, %v1694, 0
      %v1727 = vsel %vm503, %v1695, 0
      %v1730 = vsel %vm503, %v1696, 0
      %v1733 = vsel %vm503, %v1697, 0
      %v1736 = vsel %vm503, %v1698, 0
      %v1739 = vsel %vm503, %v1699, 0
      %v1742 = vsel %vm503, %v1700, 0
      %v1745 = vsel %vm503, %v1701, 0
      %v1748 = vsel %vm503, %v1702, 0
      %v1751 = vsel %vm503, %v1703, 0
      %v1754 = vsel %vm503, %v1704, 0
      %v1757 = vsel %vm1280, %v1707, 0
      %1759 = vmatprep.subr.bf16.mxu0 0
      %1760 = vmatpush1.bf16.msra.mxu0 %v1757
      %1761 = vmatprep.subr.bf16.mxu0 0
      %1762 = vmatpush1.bf16.msra.mxu0 0
      %1763 = vmatprep.subr.bf16.mxu0 0
      %1764 = vmatpush1.bf16.msra.mxu0 0
      %1765 = vmatprep.subr.bf16.mxu0 0
      %1766 = vmatpush1.bf16.msra.mxu0 0
      %1767 = vmatprep.subr.bf16.mxu0 0
      %1768 = vmatpush1.bf16.msra.mxu0 0
      %1769 = vmatprep.subr.bf16.mxu0 0
      %1770 = vmatpush1.bf16.msra.mxu0 0
      %1771 = vmatprep.subr.bf16.mxu0 0
      %1772 = vmatpush1.bf16.msra.mxu0 0
      %1773 = vmatprep.subr.bf16.mxu0 0
      %1774 = vmatpush1.bf16.msra.mxu0 0
      %1775 = vmatprep.subr.bf16.mxu0 0
      %1776 = vmatpush1.bf16.msra.mxu0 0
      %1777 = vmatprep.subr.bf16.mxu0 0
      %1778 = vmatpush1.bf16.msra.mxu0 0
      %1779 = vmatprep.subr.bf16.mxu0 0
      %1780 = vmatpush1.bf16.msra.mxu0 0
      %1781 = vmatprep.subr.bf16.mxu0 0
      %1782 = vmatpush1.bf16.msra.mxu0 0
      %1783 = vmatprep.subr.bf16.mxu0 0
      %1784 = vmatpush1.bf16.msra.mxu0 0
      %1785 = vmatprep.subr.bf16.mxu0 0
      %1786 = vmatpush1.bf16.msra.mxu0 0
      %1787 = vmatprep.subr.bf16.mxu0 0
      %1788 = vmatpush1.bf16.msra.mxu0 0
      %1789 = vmatprep.subr.bf16.mxu0 0
      %1790 = vmatpush1.bf16.msra.mxu0 0
      %1791 = vmatprep.mubr.bf16.mxu0 0
      %1792 = vmatmul.mubr.bf16.gmra.mrb[0].mxu0 %v1709
      %v1793 = vpop.f32.mrb[0].mxu0
      %v1794 = vadd.f32 0.0, %v1793
      %v1795 = vpop.f32.mrb[0].mxu0
      %v1796 = vpop.f32.mrb[0].mxu0
      %v1797 = vadd.f32 0.0, %v1796
      %v1798 = vpop.f32.mrb[0].mxu0
      %1799 = vmatprep.mubr.bf16.mxu0 0
      %1800 = vmatmul.mubr.bf16.gmra.mrb[0].mxu0 %v1712
      %v1801 = vpop.f32.mrb[0].mxu0
      %v1802 = vadd.f32 0.0, %v1801
      %v1803 = vpop.f32.mrb[0].mxu0
      %v1804 = vpop.f32.mrb[0].mxu0
      %v1805 = vadd.f32 0.0, %v1804
      %v1806 = vpop.f32.mrb[0].mxu0
      %1807 = vmatprep.mubr.bf16.mxu0 0
      %1808 = vmatmul.mubr.bf16.gmra.mrb[0].mxu0 %v1715
      %v1809 = vpop.f32.mrb[0].mxu0
      %v1810 = vadd.f32 0.0, %v1809
      %v1811 = vpop.f32.mrb[0].mxu0
      %v1812 = vpop.f32.mrb[0].mxu0
      %v1813 = vadd.f32 0.0, %v1812
      %v1814 = vpop.f32.mrb[0].mxu0
      %1815 = vmatprep.mubr.bf16.mxu0 0
      %1816 = vmatmul.mubr.bf16.gmra.mrb[0].mxu0 %v1718
      %v1817 = vpop.f32.mrb[0].mxu0
      %v1818 = vadd.f32 0.0, %v1817
      %v1819 = vpop.f32.mrb[0].mxu0
      %v1820 = vpop.f32.mrb[0].mxu0
      %v1821 = vadd.f32 0.0, %v1820
      %v1822 = vpop.f32.mrb[0].mxu0
      %1823 = vmatprep.mubr.bf16.mxu0 0
      %1824 = vmatmul.mubr.bf16.gmra.mrb[0].mxu0 %v1721
      %v1825 = vpop.f32.mrb[0].mxu0
      %v1826 = vadd.f32 0.0, %v1825
      %v1827 = vpop.f32.mrb[0].mxu0
      %v1828 = vpop.f32.mrb[0].mxu0
      %v1829 = vadd.f32 0.0, %v1828
      %v1830 = vpop.f32.mrb[0].mxu0
      %1831 = vmatprep.mubr.bf16.mxu0 0
      %1832 = vmatmul.mubr.bf16.gmra.mrb[0].mxu0 %v1724
      %v1833 = vpop.f32.mrb[0].mxu0
      %v1834 = vadd.f32 0.0, %v1833
      %v1835 = vpop.f32.mrb[0].mxu0
      %v1836 = vpop.f32.mrb[0].mxu0
      %v1837 = vadd.f32 0.0, %v1836
      %v1838 = vpop.f32.mrb[0].mxu0
      %1839 = vmatprep.mubr.bf16.mxu0 0
      %1840 = vmatmul.mubr.bf16.gmra.mrb[0].mxu0 %v1727
      %v1841 = vpop.f32.mrb[0].mxu0
      %v1842 = vadd.f32 0.0, %v1841
      %v1843 = vpop.f32.mrb[0].mxu0
      %v1844 = vpop.f32.mrb[0].mxu0
      %v1845 = vadd.f32 0.0, %v1844
      %v1846 = vpop.f32.mrb[0].mxu0
      %1847 = vmatprep.mubr.bf16.mxu0 0
      %1848 = vmatmul.mubr.bf16.gmra.mrb[0].mxu0 %v1730
      %v1849 = vpop.f32.mrb[0].mxu0
      %v1850 = vadd.f32 0.0, %v1849
      %v1851 = vpop.f32.mrb[0].mxu0
      %v1852 = vpop.f32.mrb[0].mxu0
      %v1853 = vadd.f32 0.0, %v1852
      %v1854 = vpop.f32.mrb[0].mxu0
      %1855 = vmatprep.mubr.bf16.mxu0 0
      %1856 = vmatmul.mubr.bf16.gmra.mrb[0].mxu0 %v1733
      %v1857 = vpop.f32.mrb[0].mxu0
      %v1858 = vadd.f32 0.0, %v1857
      %v1859 = vpop.f32.mrb[0].mxu0
      %v1860 = vpop.f32.mrb[0].mxu0
      %v1861 = vadd.f32 0.0, %v1860
      %v1862 = vpop.f32.mrb[0].mxu0
      %1863 = vmatprep.mubr.bf16.mxu0 0
      %1864 = vmatmul.mubr.bf16.gmra.mrb[0].mxu0 %v1736
      %v1865 = vpop.f32.mrb[0].mxu0
      %v1866 = vadd.f32 0.0, %v1865
      %v1867 = vpop.f32.mrb[0].mxu0
      %v1868 = vpop.f32.mrb[0].mxu0
      %v1869 = vadd.f32 0.0, %v1868
      %v1870 = vpop.f32.mrb[0].mxu0
      %1871 = vmatprep.mubr.bf16.mxu0 0
      %1872 = vmatmul.mubr.bf16.gmra.mrb[0].mxu0 %v1739
      %v1873 = vpop.f32.mrb[0].mxu0
      %v1874 = vadd.f32 0.0, %v1873
      %v1875 = vpop.f32.mrb[0].mxu0
      %v1876 = vpop.f32.mrb[0].mxu0
      %v1877 = vadd.f32 0.0, %v1876
      %v1878 = vpop.f32.mrb[0].mxu0
      %1879 = vmatprep.mubr.bf16.mxu0 0
      %1880 = vmatmul.mubr.bf16.gmra.mrb[0].mxu0 %v1742
      %v1881 = vpop.f32.mrb[0].mxu0
      %v1882 = vadd.f32 0.0, %v1881
      %v1883 = vpop.f32.mrb[0].mxu0
      %v1884 = vpop.f32.mrb[0].mxu0
      %v1885 = vadd.f32 0.0, %v1884
      %v1886 = vpop.f32.mrb[0].mxu0
      %1887 = vmatprep.mubr.bf16.mxu0 0
      %1888 = vmatmul.mubr.bf16.gmra.mrb[0].mxu0 %v1745
      %v1889 = vpop.f32.mrb[0].mxu0
      %v1890 = vadd.f32 0.0, %v1889
      %v1891 = vpop.f32.mrb[0].mxu0
      %v1892 = vpop.f32.mrb[0].mxu0
      %v1893 = vadd.f32 0.0, %v1892
      %v1894 = vpop.f32.mrb[0].mxu0
      %1895 = vmatprep.mubr.bf16.mxu0 0
      %1896 = vmatmul.mubr.bf16.gmra.mrb[0].mxu0 %v1748
      %v1897 = vpop.f32.mrb[0].mxu0
      %v1898 = vadd.f32 0.0, %v1897
      %v1899 = vpop.f32.mrb[0].mxu0
      %v1900 = vpop.f32.mrb[0].mxu0
      %v1901 = vadd.f32 0.0, %v1900
      %v1902 = vpop.f32.mrb[0].mxu0
      %1903 = vmatprep.mubr.bf16.mxu0 0
      %1904 = vmatmul.mubr.bf16.gmra.mrb[0].mxu0 %v1751
      %v1905 = vpop.f32.mrb[0].mxu0
      %v1906 = vadd.f32 0.0, %v1905
      %v1907 = vpop.f32.mrb[0].mxu0
      %v1908 = vpop.f32.mrb[0].mxu0
      %v1909 = vadd.f32 0.0, %v1908
      %v1910 = vpop.f32.mrb[0].mxu0
      %1911 = vmatprep.mubr.bf16.mxu0 0
      %1912 = vmatmul.mubr.bf16.gmra.mrb[0].mxu0 %v1754
      %v1913 = vpop.f32.mrb[0].mxu0
      %v1914 = vadd.f32 0.0, %v1913
      %v1915 = vpop.f32.mrb[0].mxu0
      %v1916 = vpop.f32.mrb[0].mxu0
      %v1917 = vadd.f32 0.0, %v1916
      %v1918 = vpop.f32.mrb[0].mxu0
      %1919 = vdwg.mxu0
      %v1920 = vadd.f32 %v1531, %v1794
      %v1921 = vadd.f32 %v1534, %v1797
      %v1922 = vadd.f32 %v1539, %v1802
      %v1923 = vadd.f32 %v1542, %v1805
      %v1924 = vadd.f32 %v1547, %v1810
      %v1925 = vadd.f32 %v1550, %v1813
      %v1926 = vadd.f32 %v1555, %v1818
      %v1927 = vadd.f32 %v1558, %v1821
      %v1928 = vadd.f32 %v1563, %v1826
      %v1929 = vadd.f32 %v1566, %v1829
      %v1930 = vadd.f32 %v1571, %v1834
      %v1931 = vadd.f32 %v1574, %v1837
      %v1932 = vadd.f32 %v1579, %v1842
      %v1933 = vadd.f32 %v1582, %v1845
      %v1934 = vadd.f32 %v1587, %v1850
      %v1935 = vadd.f32 %v1590, %v1853
      %v1936 = vadd.f32 %v1595, %v1858
      %v1937 = vadd.f32 %v1598, %v1861
      %v1938 = vadd.f32 %v1603, %v1866
      %v1939 = vadd.f32 %v1606, %v1869
      %v1940 = vadd.f32 %v1611, %v1874
      %v1941 = vadd.f32 %v1614, %v1877
      %v1942 = vadd.f32 %v1619, %v1882
      %v1943 = vadd.f32 %v1622, %v1885
      %v1944 = vadd.f32 %v1627, %v1890
      %v1945 = vadd.f32 %v1630, %v1893
      %v1946 = vadd.f32 %v1635, %v1898
      %v1947 = vadd.f32 %v1638, %v1901
      %v1948 = vadd.f32 %v1643, %v1906
      %v1949 = vadd.f32 %v1646, %v1909
      %v1950 = vadd.f32 %v1651, %v1914
      %v1951 = vadd.f32 %v1654, %v1917
      %v1952 = vld [vmem:[%s935] sm:$0xff]
      %v1953 = vld [vmem:[%s935 + $0x8] sm:$0xff]
      %v1954 = vld [vmem:[%s935 + $0x18] sm:$0xff]
      %v1955 = vld [vmem:[%s935 + $0x20] sm:$0xff]
      %v1956 = vld [vmem:[%s935 + $0x30] sm:$0xff]
      %v1957 = vld [vmem:[%s935 + $0x38] sm:$0xff]
      %v1958 = vld [vmem:[%s935 + $0x48] sm:$0xff]
      %v1959 = vld [vmem:[%s935 + $0x50] sm:$0xff]
      %v1960 = vld [vmem:[%s935 + $0x60] sm:$0xff]
      %v1961 = vld [vmem:[%s935 + $0x68] sm:$0xff]
      %v1962 = vld [vmem:[%s935 + $0x78] sm:$0xff]
      %v1963 = vld [vmem:[%s935 + $0x80] sm:$0xff]
      %v1964 = vld [vmem:[%s935 + $0x90] sm:$0xff]
      %v1965 = vld [vmem:[%s935 + $0x98] sm:$0xff]
      %v1966 = vld [vmem:[%s935 + $0xa8] sm:$0xff]
      %v1967 = vld [vmem:[%s935 + $0xb0] sm:$0xff]
      %v1968 = vld [vmem:[%s935 + $0xc0] sm:$0xff]
      %v1969 = vld [vmem:[%s935 + $0xc8] sm:$0xff]
      %v1970 = vld [vmem:[%s935 + $0xd8] sm:$0xff]
      %v1971 = vld [vmem:[%s935 + $0xe0] sm:$0xff]
      %v1972 = vld [vmem:[%s935 + $0xf0] sm:$0xff]
      %v1973 = vld [vmem:[%s935 + $0xf8] sm:$0xff]
      %v1974 = vld [vmem:[%s935 + $0x108] sm:$0xff]
      %v1975 = vld [vmem:[%s935 + $0x110] sm:$0xff]
      %v1976 = vld [vmem:[%s935 + $0x120] sm:$0xff]
      %v1977 = vld [vmem:[%s935 + $0x128] sm:$0xff]
      %v1978 = vld [vmem:[%s935 + $0x138] sm:$0xff]
      %v1979 = vld [vmem:[%s935 + $0x140] sm:$0xff]
      %v1980 = vld [vmem:[%s935 + $0x150] sm:$0xff]
      %v1981 = vld [vmem:[%s935 + $0x158] sm:$0xff]
      %v1982 = vld [vmem:[%s935 + $0x168] sm:$0xff]
      %v1983 = vld [vmem:[%s935 + $0x170] sm:$0xff]
      %v1984 = vpack.c.bf16 %v1953, %v1952
      %v1985 = vpack.c.bf16 %v1955, %v1954
      %v1986 = vpack.c.bf16 %v1957, %v1956
      %v1987 = vpack.c.bf16 %v1959, %v1958
      %v1988 = vpack.c.bf16 %v1961, %v1960
      %v1989 = vpack.c.bf16 %v1963, %v1962
      %v1990 = vpack.c.bf16 %v1965, %v1964
      %v1991 = vpack.c.bf16 %v1967, %v1966
      %v1992 = vpack.c.bf16 %v1969, %v1968
      %v1993 = vpack.c.bf16 %v1971, %v1970
      %v1994 = vpack.c.bf16 %v1973, %v1972
      %v1995 = vpack.c.bf16 %v1975, %v1974
      %v1996 = vpack.c.bf16 %v1977, %v1976
      %v1997 = vpack.c.bf16 %v1979, %v1978
      %v1998 = vpack.c.bf16 %v1981, %v1980
      %v1999 = vpack.c.bf16 %v1983, %v1982
      %s2000 = scalar_lea.vmem %s6, 6
      %v2001 = vld [vmem:[%s2000] sm:$0x3]
      %v2002 = vpack.c.bf16 %v2001, %v2001
      %v2004 = vsel %vm503, %v1984, 0
      %v2007 = vsel %vm503, %v1985, 0
      %v2010 = vsel %vm503, %v1986, 0
      %v2013 = vsel %vm503, %v1987, 0
      %v2016 = vsel %vm503, %v1988, 0
      %v2019 = vsel %vm503, %v1989, 0
      %v2022 = vsel %vm503, %v1990, 0
      %v2025 = vsel %vm503, %v1991, 0
      %v2028 = vsel %vm503, %v1992, 0
      %v2031 = vsel %vm503, %v1993, 0
      %v2034 = vsel %vm503, %v1994, 0
      %v2037 = vsel %vm503, %v1995, 0
      %v2040 = vsel %vm503, %v1996, 0
      %v2043 = vsel %vm503, %v1997, 0
      %v2046 = vsel %vm503, %v1998, 0
      %v2049 = vsel %vm503, %v1999, 0
      %v2052 = vsel %vm1280, %v2002, 0
      %2054 = vmatprep.subr.bf16.mxu0 0
      %2055 = vmatpush1.bf16.msra.mxu0 %v2052
      %2056 = vmatprep.subr.bf16.mxu0 0
      %2057 = vmatpush1.bf16.msra.mxu0 0
      %2058 = vmatprep.subr.bf16.mxu0 0
      %2059 = vmatpush1.bf16.msra.mxu0 0
      %2060 = vmatprep.subr.bf16.mxu0 0
      %2061 = vmatpush1.bf16.msra.mxu0 0
      %2062 = vmatprep.subr.bf16.mxu0 0
      %2063 = vmatpush1.bf16.msra.mxu0 0
      %2064 = vmatprep.subr.bf16.mxu0 0
      %2065 = vmatpush1.bf16.msra.mxu0 0
      %2066 = vmatprep.subr.bf16.mxu0 0
      %2067 = vmatpush1.bf16.msra.mxu0 0
      %2068 = vmatprep.subr.bf16.mxu0 0
      %2069 = vmatpush1.bf16.msra.mxu0 0
      %2070 = vmatprep.subr.bf16.mxu0 0
      %2071 = vmatpush1.bf16.msra.mxu0 0
      %2072 = vmatprep.subr.bf16.mxu0 0
      %2073 = vmatpush1.bf16.msra.mxu0 0
      %2074 = vmatprep.subr.bf16.mxu0 0
      %2075 = vmatpush1.bf16.msra.mxu0 0
      %2076 = vmatprep.subr.bf16.mxu0 0
      %2077 = vmatpush1.bf16.msra.mxu0 0
      %2078 = vmatprep.subr.bf16.mxu0 0
      %2079 = vmatpush1.bf16.msra.mxu0 0
      %2080 = vmatprep.subr.bf16.mxu0 0
      %2081 = vmatpush1.bf16.msra.mxu0 0
      %2082 = vmatprep.subr.bf16.mxu0 0
      %2083 = vmatpush1.bf16.msra.mxu0 0
      %2084 = vmatprep.subr.bf16.mxu0 0
      %2085 = vmatpush1.bf16.msra.mxu0 0
      %2086 = vmatprep.mubr.bf16.mxu0 0
      %2087 = vmatmul.mubr.bf16.gmra.mrb[0].mxu0 %v2004
      %v2088 = vpop.f32.mrb[0].mxu0
      %v2089 = vadd.f32 0.0, %v2088
      %v2090 = vpop.f32.mrb[0].mxu0
      %v2091 = vpop.f32.mrb[0].mxu0
      %v2092 = vadd.f32 0.0, %v2091
      %v2093 = vpop.f32.mrb[0].mxu0
      %2094 = vmatprep.mubr.bf16.mxu0 0
      %2095 = vmatmul.mubr.bf16.gmra.mrb[0].mxu0 %v2007
      %v2096 = vpop.f32.mrb[0].mxu0
      %v2097 = vadd.f32 0.0, %v2096
      %v2098 = vpop.f32.mrb[0].mxu0
      %v2099 = vpop.f32.mrb[0].mxu0
      %v2100 = vadd.f32 0.0, %v2099
      %v2101 = vpop.f32.mrb[0].mxu0
      %2102 = vmatprep.mubr.bf16.mxu0 0
      %2103 = vmatmul.mubr.bf16.gmra.mrb[0].mxu0 %v2010
      %v2104 = vpop.f32.mrb[0].mxu0
      %v2105 = vadd.f32 0.0, %v2104
      %v2106 = vpop.f32.mrb[0].mxu0
      %v2107 = vpop.f32.mrb[0].mxu0
      %v2108 = vadd.f32 0.0, %v2107
      %v2109 = vpop.f32.mrb[0].mxu0
      %2110 = vmatprep.mubr.bf16.mxu0 0
      %2111 = vmatmul.mubr.bf16.gmra.mrb[0].mxu0 %v2013
      %v2112 = vpop.f32.mrb[0].mxu0
      %v2113 = vadd.f32 0.0, %v2112
      %v2114 = vpop.f32.mrb[0].mxu0
      %v2115 = vpop.f32.mrb[0].mxu0
      %v2116 = vadd.f32 0.0, %v2115
      %v2117 = vpop.f32.mrb[0].mxu0
      %2118 = vmatprep.mubr.bf16.mxu0 0
      %2119 = vmatmul.mubr.bf16.gmra.mrb[0].mxu0 %v2016
      %v2120 = vpop.f32.mrb[0].mxu0
      %v2121 = vadd.f32 0.0, %v2120
      %v2122 = vpop.f32.mrb[0].mxu0
      %v2123 = vpop.f32.mrb[0].mxu0
      %v2124 = vadd.f32 0.0, %v2123
      %v2125 = vpop.f32.mrb[0].mxu0
      %2126 = vmatprep.mubr.bf16.mxu0 0
      %2127 = vmatmul.mubr.bf16.gmra.mrb[0].mxu0 %v2019
      %v2128 = vpop.f32.mrb[0].mxu0
      %v2129 = vadd.f32 0.0, %v2128
      %v2130 = vpop.f32.mrb[0].mxu0
      %v2131 = vpop.f32.mrb[0].mxu0
      %v2132 = vadd.f32 0.0, %v2131
      %v2133 = vpop.f32.mrb[0].mxu0
      %2134 = vmatprep.mubr.bf16.mxu0 0
      %2135 = vmatmul.mubr.bf16.gmra.mrb[0].mxu0 %v2022
      %v2136 = vpop.f32.mrb[0].mxu0
      %v2137 = vadd.f32 0.0, %v2136
      %v2138 = vpop.f32.mrb[0].mxu0
      %v2139 = vpop.f32.mrb[0].mxu0
      %v2140 = vadd.f32 0.0, %v2139
      %v2141 = vpop.f32.mrb[0].mxu0
      %2142 = vmatprep.mubr.bf16.mxu0 0
      %2143 = vmatmul.mubr.bf16.gmra.mrb[0].mxu0 %v2025
      %v2144 = vpop.f32.mrb[0].mxu0
      %v2145 = vadd.f32 0.0, %v2144
      %v2146 = vpop.f32.mrb[0].mxu0
      %v2147 = vpop.f32.mrb[0].mxu0
      %v2148 = vadd.f32 0.0, %v2147
      %v2149 = vpop.f32.mrb[0].mxu0
      %2150 = vmatprep.mubr.bf16.mxu0 0
      %2151 = vmatmul.mubr.bf16.gmra.mrb[0].mxu0 %v2028
      %v2152 = vpop.f32.mrb[0].mxu0
      %v2153 = vadd.f32 0.0, %v2152
      %v2154 = vpop.f32.mrb[0].mxu0
      %v2155 = vpop.f32.mrb[0].mxu0
      %v2156 = vadd.f32 0.0, %v2155
      %v2157 = vpop.f32.mrb[0].mxu0
      %2158 = vmatprep.mubr.bf16.mxu0 0
      %2159 = vmatmul.mubr.bf16.gmra.mrb[0].mxu0 %v2031
      %v2160 = vpop.f32.mrb[0].mxu0
      %v2161 = vadd.f32 0.0, %v2160
      %v2162 = vpop.f32.mrb[0].mxu0
      %v2163 = vpop.f32.mrb[0].mxu0
      %v2164 = vadd.f32 0.0, %v2163
      %v2165 = vpop.f32.mrb[0].mxu0
      %2166 = vmatprep.mubr.bf16.mxu0 0
      %2167 = vmatmul.mubr.bf16.gmra.mrb[0].mxu0 %v2034
      %v2168 = vpop.f32.mrb[0].mxu0
      %v2169 = vadd.f32 0.0, %v2168
      %v2170 = vpop.f32.mrb[0].mxu0
      %v2171 = vpop.f32.mrb[0].mxu0
      %v2172 = vadd.f32 0.0, %v2171
      %v2173 = vpop.f32.mrb[0].mxu0
      %2174 = vmatprep.mubr.bf16.mxu0 0
      %2175 = vmatmul.mubr.bf16.gmra.mrb[0].mxu0 %v2037
      %v2176 = vpop.f32.mrb[0].mxu0
      %v2177 = vadd.f32 0.0, %v2176
      %v2178 = vpop.f32.mrb[0].mxu0
      %v2179 = vpop.f32.mrb[0].mxu0
      %v2180 = vadd.f32 0.0, %v2179
      %v2181 = vpop.f32.mrb[0].mxu0
      %2182 = vmatprep.mubr.bf16.mxu0 0
      %2183 = vmatmul.mubr.bf16.gmra.mrb[0].mxu0 %v2040
      %v2184 = vpop.f32.mrb[0].mxu0
      %v2185 = vadd.f32 0.0, %v2184
      %v2186 = vpop.f32.mrb[0].mxu0
      %v2187 = vpop.f32.mrb[0].mxu0
      %v2188 = vadd.f32 0.0, %v2187
      %v2189 = vpop.f32.mrb[0].mxu0
      %2190 = vmatprep.mubr.bf16.mxu0 0
      %2191 = vmatmul.mubr.bf16.gmra.mrb[0].mxu0 %v2043
      %v2192 = vpop.f32.mrb[0].mxu0
      %v2193 = vadd.f32 0.0, %v2192
      %v2194 = vpop.f32.mrb[0].mxu0
      %v2195 = vpop.f32.mrb[0].mxu0
      %v2196 = vadd.f32 0.0, %v2195
      %v2197 = vpop.f32.mrb[0].mxu0
      %2198 = vmatprep.mubr.bf16.mxu0 0
      %2199 = vmatmul.mubr.bf16.gmra.mrb[0].mxu0 %v2046
      %v2200 = vpop.f32.mrb[0].mxu0
      %v2201 = vadd.f32 0.0, %v2200
      %v2202 = vpop.f32.mrb[0].mxu0
      %v2203 = vpop.f32.mrb[0].mxu0
      %v2204 = vadd.f32 0.0, %v2203
      %v2205 = vpop.f32.mrb[0].mxu0
      %2206 = vmatprep.mubr.bf16.mxu0 0
      %2207 = vmatmul.mubr.bf16.gmra.mrb[0].mxu0 %v2049
      %v2208 = vpop.f32.mrb[0].mxu0
      %v2209 = vadd.f32 0.0, %v2208
      %v2210 = vpop.f32.mrb[0].mxu0
      %v2211 = vpop.f32.mrb[0].mxu0
      %v2212 = vadd.f32 0.0, %v2211
      %v2213 = vpop.f32.mrb[0].mxu0
      %2214 = vdwg.mxu0
      %v2215 = vadd.f32 %v1920, %v2089
      %v2216 = vadd.f32 %v1921, %v2092
      %v2217 = vadd.f32 %v1922, %v2097
      %v2218 = vadd.f32 %v1923, %v2100
      %v2219 = vadd.f32 %v1924, %v2105
      %v2220 = vadd.f32 %v1925, %v2108
      %v2221 = vadd.f32 %v1926, %v2113
      %v2222 = vadd.f32 %v1927, %v2116
      %v2223 = vadd.f32 %v1928, %v2121
      %v2224 = vadd.f32 %v1929, %v2124
      %v2225 = vadd.f32 %v1930, %v2129
      %v2226 = vadd.f32 %v1931, %v2132
      %v2227 = vadd.f32 %v1932, %v2137
      %v2228 = vadd.f32 %v1933, %v2140
      %v2229 = vadd.f32 %v1934, %v2145
      %v2230 = vadd.f32 %v1935, %v2148
      %v2231 = vadd.f32 %v1936, %v2153
      %v2232 = vadd.f32 %v1937, %v2156
      %v2233 = vadd.f32 %v1938, %v2161
      %v2234 = vadd.f32 %v1939, %v2164
      %v2235 = vadd.f32 %v1940, %v2169
      %v2236 = vadd.f32 %v1941, %v2172
      %v2237 = vadd.f32 %v1942, %v2177
      %v2238 = vadd.f32 %v1943, %v2180
      %v2239 = vadd.f32 %v1944, %v2185
      %v2240 = vadd.f32 %v1945, %v2188
      %v2241 = vadd.f32 %v1946, %v2193
      %v2242 = vadd.f32 %v1947, %v2196
      %v2243 = vadd.f32 %v1948, %v2201
      %v2244 = vadd.f32 %v1949, %v2204
      %v2245 = vadd.f32 %v1950, %v2209
      %v2246 = vadd.f32 %v1951, %v2212
      %v2247 = vld [vmem:[%s935 + $0x2] sm:$0xff]
      %v2248 = vld [vmem:[%s935 + $0xa] sm:$0xff]
      %v2249 = vld [vmem:[%s935 + $0x1a] sm:$0xff]
      %v2250 = vld [vmem:[%s935 + $0x22] sm:$0xff]
      %v2251 = vld [vmem:[%s935 + $0x32] sm:$0xff]
      %v2252 = vld [vmem:[%s935 + $0x3a] sm:$0xff]
      %v2253 = vld [vmem:[%s935 + $0x4a] sm:$0xff]
      %v2254 = vld [vmem:[%s935 + $0x52] sm:$0xff]
      %v2255 = vld [vmem:[%s935 + $0x62] sm:$0xff]
      %v2256 = vld [vmem:[%s935 + $0x6a] sm:$0xff]
      %v2257 = vld [vmem:[%s935 + $0x7a] sm:$0xff]
      %v2258 = vld [vmem:[%s935 + $0x82] sm:$0xff]
      %v2259 = vld [vmem:[%s935 + $0x92] sm:$0xff]
      %v2260 = vld [vmem:[%s935 + $0x9a] sm:$0xff]
      %v2261 = vld [vmem:[%s935 + $0xaa] sm:$0xff]
      %v2262 = vld [vmem:[%s935 + $0xb2] sm:$0xff]
      %v2263 = vld [vmem:[%s935 + $0xc2] sm:$0xff]
      %v2264 = vld [vmem:[%s935 + $0xca] sm:$0xff]
      %v2265 = vld [vmem:[%s935 + $0xda] sm:$0xff]
      %v2266 = vld [vmem:[%s935 + $0xe2] sm:$0xff]
      %v2267 = vld [vmem:[%s935 + $0xf2] sm:$0xff]
      %v2268 = vld [vmem:[%s935 + $0xfa] sm:$0xff]
      %v2269 = vld [vmem:[%s935 + $0x10a] sm:$0xff]
      %v2270 = vld [vmem:[%s935 + $0x112] sm:$0xff]
      %v2271 = vld [vmem:[%s935 + $0x122] sm:$0xff]
      %v2272 = vld [vmem:[%s935 + $0x12a] sm:$0xff]
      %v2273 = vld [vmem:[%s935 + $0x13a] sm:$0xff]
      %v2274 = vld [vmem:[%s935 + $0x142] sm:$0xff]
      %v2275 = vld [vmem:[%s935 + $0x152] sm:$0xff]
      %v2276 = vld [vmem:[%s935 + $0x15a] sm:$0xff]
      %v2277 = vld [vmem:[%s935 + $0x16a] sm:$0xff]
      %v2278 = vld [vmem:[%s935 + $0x172] sm:$0xff]
      %v2279 = vpack.c.bf16 %v2248, %v2247
      %v2280 = vpack.c.bf16 %v2250, %v2249
      %v2281 = vpack.c.bf16 %v2252, %v2251
      %v2282 = vpack.c.bf16 %v2254, %v2253
      %v2283 = vpack.c.bf16 %v2256, %v2255
      %v2284 = vpack.c.bf16 %v2258, %v2257
      %v2285 = vpack.c.bf16 %v2260, %v2259
      %v2286 = vpack.c.bf16 %v2262, %v2261
      %v2287 = vpack.c.bf16 %v2264, %v2263
      %v2288 = vpack.c.bf16 %v2266, %v2265
      %v2289 = vpack.c.bf16 %v2268, %v2267
      %v2290 = vpack.c.bf16 %v2270, %v2269
      %v2291 = vpack.c.bf16 %v2272, %v2271
      %v2292 = vpack.c.bf16 %v2274, %v2273
      %v2293 = vpack.c.bf16 %v2276, %v2275
      %v2294 = vpack.c.bf16 %v2278, %v2277
      %s2295 = scalar_lea.vmem %s6, 8
      %v2296 = vld [vmem:[%s2295] sm:$0x3]
      %v2297 = vpack.c.bf16 %v2296, %v2296
      %v2299 = vsel %vm503, %v2279, 0
      %v2302 = vsel %vm503, %v2280, 0
      %v2305 = vsel %vm503, %v2281, 0
      %v2308 = vsel %vm503, %v2282, 0
      %v2311 = vsel %vm503, %v2283, 0
      %v2314 = vsel %vm503, %v2284, 0
      %v2317 = vsel %vm503, %v2285, 0
      %v2320 = vsel %vm503, %v2286, 0
      %v2323 = vsel %vm503, %v2287, 0
      %v2326 = vsel %vm503, %v2288, 0
      %v2329 = vsel %vm503, %v2289, 0
      %v2332 = vsel %vm503, %v2290, 0
      %v2335 = vsel %vm503, %v2291, 0
      %v2338 = vsel %vm503, %v2292, 0
      %v2341 = vsel %vm503, %v2293, 0
      %v2344 = vsel %vm503, %v2294, 0
      %v2347 = vsel %vm1280, %v2297, 0
      %2349 = vmatprep.subr.bf16.mxu0 0
      %2350 = vmatpush1.bf16.msra.mxu0 %v2347
      %2351 = vmatprep.subr.bf16.mxu0 0
      %2352 = vmatpush1.bf16.msra.mxu0 0
      %2353 = vmatprep.subr.bf16.mxu0 0
      %2354 = vmatpush1.bf16.msra.mxu0 0
      %2355 = vmatprep.subr.bf16.mxu0 0
      %2356 = vmatpush1.bf16.msra.mxu0 0
      %2357 = vmatprep.subr.bf16.mxu0 0
      %2358 = vmatpush1.bf16.msra.mxu0 0
      %2359 = vmatprep.subr.bf16.mxu0 0
      %2360 = vmatpush1.bf16.msra.mxu0 0
      %2361 = vmatprep.subr.bf16.mxu0 0
      %2362 = vmatpush1.bf16.msra.mxu0 0
      %2363 = vmatprep.subr.bf16.mxu0 0
      %2364 = vmatpush1.bf16.msra.mxu0 0
      %2365 = vmatprep.subr.bf16.mxu0 0
      %2366 = vmatpush1.bf16.msra.mxu0 0
      %2367 = vmatprep.subr.bf16.mxu0 0
      %2368 = vmatpush1.bf16.msra.mxu0 0
      %2369 = vmatprep.subr.bf16.mxu0 0
      %2370 = vmatpush1.bf16.msra.mxu0 0
      %2371 = vmatprep.subr.bf16.mxu0 0
      %2372 = vmatpush1.bf16.msra.mxu0 0
      %2373 = vmatprep.subr.bf16.mxu0 0
      %2374 = vmatpush1.bf16.msra.mxu0 0
      %2375 = vmatprep.subr.bf16.mxu0 0
      %2376 = vmatpush1.bf16.msra.mxu0 0
      %2377 = vmatprep.subr.bf16.mxu0 0
      %2378 = vmatpush1.bf16.msra.mxu0 0
      %2379 = vmatprep.subr.bf16.mxu0 0
      %2380 = vmatpush1.bf16.msra.mxu0 0
      %2381 = vmatprep.mubr.bf16.mxu0 0
      %2382 = vmatmul.mubr.bf16.gmra.mrb[0].mxu0 %v2299
      %v2383 = vpop.f32.mrb[0].mxu0
      %v2384 = vadd.f32 0.0, %v2383
      %v2385 = vpop.f32.mrb[0].mxu0
      %v2386 = vpop.f32.mrb[0].mxu0
      %v2387 = vadd.f32 0.0, %v2386
      %v2388 = vpop.f32.mrb[0].mxu0
      %2389 = vmatprep.mubr.bf16.mxu0 0
      %2390 = vmatmul.mubr.bf16.gmra.mrb[0].mxu0 %v2302
      %v2391 = vpop.f32.mrb[0].mxu0
      %v2392 = vadd.f32 0.0, %v2391
      %v2393 = vpop.f32.mrb[0].mxu0
      %v2394 = vpop.f32.mrb[0].mxu0
      %v2395 = vadd.f32 0.0, %v2394
      %v2396 = vpop.f32.mrb[0].mxu0
      %2397 = vmatprep.mubr.bf16.mxu0 0
      %2398 = vmatmul.mubr.bf16.gmra.mrb[0].mxu0 %v2305
      %v2399 = vpop.f32.mrb[0].mxu0
      %v2400 = vadd.f32 0.0, %v2399
      %v2401 = vpop.f32.mrb[0].mxu0
      %v2402 = vpop.f32.mrb[0].mxu0
      %v2403 = vadd.f32 0.0, %v2402
      %v2404 = vpop.f32.mrb[0].mxu0
      %2405 = vmatprep.mubr.bf16.mxu0 0
      %2406 = vmatmul.mubr.bf16.gmra.mrb[0].mxu0 %v2308
      %v2407 = vpop.f32.mrb[0].mxu0
      %v2408 = vadd.f32 0.0, %v2407
      %v2409 = vpop.f32.mrb[0].mxu0
      %v2410 = vpop.f32.mrb[0].mxu0
      %v2411 = vadd.f32 0.0, %v2410
      %v2412 = vpop.f32.mrb[0].mxu0
      %2413 = vmatprep.mubr.bf16.mxu0 0
      %2414 = vmatmul.mubr.bf16.gmra.mrb[0].mxu0 %v2311
      %v2415 = vpop.f32.mrb[0].mxu0
      %v2416 = vadd.f32 0.0, %v2415
      %v2417 = vpop.f32.mrb[0].mxu0
      %v2418 = vpop.f32.mrb[0].mxu0
      %v2419 = vadd.f32 0.0, %v2418
      %v2420 = vpop.f32.mrb[0].mxu0
      %2421 = vmatprep.mubr.bf16.mxu0 0
      %2422 = vmatmul.mubr.bf16.gmra.mrb[0].mxu0 %v2314
      %v2423 = vpop.f32.mrb[0].mxu0
      %v2424 = vadd.f32 0.0, %v2423
      %v2425 = vpop.f32.mrb[0].mxu0
      %v2426 = vpop.f32.mrb[0].mxu0
      %v2427 = vadd.f32 0.0, %v2426
      %v2428 = vpop.f32.mrb[0].mxu0
      %2429 = vmatprep.mubr.bf16.mxu0 0
      %2430 = vmatmul.mubr.bf16.gmra.mrb[0].mxu0 %v2317
      %v2431 = vpop.f32.mrb[0].mxu0
      %v2432 = vadd.f32 0.0, %v2431
      %v2433 = vpop.f32.mrb[0].mxu0
      %v2434 = vpop.f32.mrb[0].mxu0
      %v2435 = vadd.f32 0.0, %v2434
      %v2436 = vpop.f32.mrb[0].mxu0
      %2437 = vmatprep.mubr.bf16.mxu0 0
      %2438 = vmatmul.mubr.bf16.gmra.mrb[0].mxu0 %v2320
      %v2439 = vpop.f32.mrb[0].mxu0
      %v2440 = vadd.f32 0.0, %v2439
      %v2441 = vpop.f32.mrb[0].mxu0
      %v2442 = vpop.f32.mrb[0].mxu0
      %v2443 = vadd.f32 0.0, %v2442
      %v2444 = vpop.f32.mrb[0].mxu0
      %2445 = vmatprep.mubr.bf16.mxu0 0
      %2446 = vmatmul.mubr.bf16.gmra.mrb[0].mxu0 %v2323
      %v2447 = vpop.f32.mrb[0].mxu0
      %v2448 = vadd.f32 0.0, %v2447
      %v2449 = vpop.f32.mrb[0].mxu0
      %v2450 = vpop.f32.mrb[0].mxu0
      %v2451 = vadd.f32 0.0, %v2450
      %v2452 = vpop.f32.mrb[0].mxu0
      %2453 = vmatprep.mubr.bf16.mxu0 0
      %2454 = vmatmul.mubr.bf16.gmra.mrb[0].mxu0 %v2326
      %v2455 = vpop.f32.mrb[0].mxu0
      %v2456 = vadd.f32 0.0, %v2455
      %v2457 = vpop.f32.mrb[0].mxu0
      %v2458 = vpop.f32.mrb[0].mxu0
      %v2459 = vadd.f32 0.0, %v2458
      %v2460 = vpop.f32.mrb[0].mxu0
      %2461 = vmatprep.mubr.bf16.mxu0 0
      %2462 = vmatmul.mubr.bf16.gmra.mrb[0].mxu0 %v2329
      %v2463 = vpop.f32.mrb[0].mxu0
      %v2464 = vadd.f32 0.0, %v2463
      %v2465 = vpop.f32.mrb[0].mxu0
      %v2466 = vpop.f32.mrb[0].mxu0
      %v2467 = vadd.f32 0.0, %v2466
      %v2468 = vpop.f32.mrb[0].mxu0
      %2469 = vmatprep.mubr.bf16.mxu0 0
      %2470 = vmatmul.mubr.bf16.gmra.mrb[0].mxu0 %v2332
      %v2471 = vpop.f32.mrb[0].mxu0
      %v2472 = vadd.f32 0.0, %v2471
      %v2473 = vpop.f32.mrb[0].mxu0
      %v2474 = vpop.f32.mrb[0].mxu0
      %v2475 = vadd.f32 0.0, %v2474
      %v2476 = vpop.f32.mrb[0].mxu0
      %2477 = vmatprep.mubr.bf16.mxu0 0
      %2478 = vmatmul.mubr.bf16.gmra.mrb[0].mxu0 %v2335
      %v2479 = vpop.f32.mrb[0].mxu0
      %v2480 = vadd.f32 0.0, %v2479
      %v2481 = vpop.f32.mrb[0].mxu0
      %v2482 = vpop.f32.mrb[0].mxu0
      %v2483 = vadd.f32 0.0, %v2482
      %v2484 = vpop.f32.mrb[0].mxu0
      %2485 = vmatprep.mubr.bf16.mxu0 0
      %2486 = vmatmul.mubr.bf16.gmra.mrb[0].mxu0 %v2338
      %v2487 = vpop.f32.mrb[0].mxu0
      %v2488 = vadd.f32 0.0, %v2487
      %v2489 = vpop.f32.mrb[0].mxu0
      %v2490 = vpop.f32.mrb[0].mxu0
      %v2491 = vadd.f32 0.0, %v2490
      %v2492 = vpop.f32.mrb[0].mxu0
      %2493 = vmatprep.mubr.bf16.mxu0 0
      %2494 = vmatmul.mubr.bf16.gmra.mrb[0].mxu0 %v2341
      %v2495 = vpop.f32.mrb[0].mxu0
      %v2496 = vadd.f32 0.0, %v2495
      %v2497 = vpop.f32.mrb[0].mxu0
      %v2498 = vpop.f32.mrb[0].mxu0
      %v2499 = vadd.f32 0.0, %v2498
      %v2500 = vpop.f32.mrb[0].mxu0
      %2501 = vmatprep.mubr.bf16.mxu0 0
      %2502 = vmatmul.mubr.bf16.gmra.mrb[0].mxu0 %v2344
      %v2503 = vpop.f32.mrb[0].mxu0
      %v2504 = vadd.f32 0.0, %v2503
      %v2505 = vpop.f32.mrb[0].mxu0
      %v2506 = vpop.f32.mrb[0].mxu0
      %v2507 = vadd.f32 0.0, %v2506
      %v2508 = vpop.f32.mrb[0].mxu0
      %2509 = vdwg.mxu0
      %v2510 = vadd.f32 %v2215, %v2384
      %v2511 = vadd.f32 %v2216, %v2387
      %v2512 = vadd.f32 %v2217, %v2392
      %v2513 = vadd.f32 %v2218, %v2395
      %v2514 = vadd.f32 %v2219, %v2400
      %v2515 = vadd.f32 %v2220, %v2403
      %v2516 = vadd.f32 %v2221, %v2408
      %v2517 = vadd.f32 %v2222, %v2411
      %v2518 = vadd.f32 %v2223, %v2416
      %v2519 = vadd.f32 %v2224, %v2419
      %v2520 = vadd.f32 %v2225, %v2424
      %v2521 = vadd.f32 %v2226, %v2427
      %v2522 = vadd.f32 %v2227, %v2432
      %v2523 = vadd.f32 %v2228, %v2435
      %v2524 = vadd.f32 %v2229, %v2440
      %v2525 = vadd.f32 %v2230, %v2443
      %v2526 = vadd.f32 %v2231, %v2448
      %v2527 = vadd.f32 %v2232, %v2451
      %v2528 = vadd.f32 %v2233, %v2456
      %v2529 = vadd.f32 %v2234, %v2459
      %v2530 = vadd.f32 %v2235, %v2464
      %v2531 = vadd.f32 %v2236, %v2467
      %v2532 = vadd.f32 %v2237, %v2472
      %v2533 = vadd.f32 %v2238, %v2475
      %v2534 = vadd.f32 %v2239, %v2480
      %v2535 = vadd.f32 %v2240, %v2483
      %v2536 = vadd.f32 %v2241, %v2488
      %v2537 = vadd.f32 %v2242, %v2491
      %v2538 = vadd.f32 %v2243, %v2496
      %v2539 = vadd.f32 %v2244, %v2499
      %v2540 = vadd.f32 %v2245, %v2504
      %v2541 = vadd.f32 %v2246, %v2507
      %v2542 = vld [vmem:[%s935 + $0x4] sm:$0xff]
      %v2543 = vld [vmem:[%s935 + $0xc] sm:$0xff]
      %v2544 = vld [vmem:[%s935 + $0x1c] sm:$0xff]
      %v2545 = vld [vmem:[%s935 + $0x24] sm:$0xff]
      %v2546 = vld [vmem:[%s935 + $0x34] sm:$0xff]
      %v2547 = vld [vmem:[%s935 + $0x3c] sm:$0xff]
      %v2548 = vld [vmem:[%s935 + $0x4c] sm:$0xff]
      %v2549 = vld [vmem:[%s935 + $0x54] sm:$0xff]
      %v2550 = vld [vmem:[%s935 + $0x64] sm:$0xff]
      %v2551 = vld [vmem:[%s935 + $0x6c] sm:$0xff]
      %v2552 = vld [vmem:[%s935 + $0x7c] sm:$0xff]
      %v2553 = vld [vmem:[%s935 + $0x84] sm:$0xff]
      %v2554 = vld [vmem:[%s935 + $0x94] sm:$0xff]
      %v2555 = vld [vmem:[%s935 + $0x9c] sm:$0xff]
      %v2556 = vld [vmem:[%s935 + $0xac] sm:$0xff]
      %v2557 = vld [vmem:[%s935 + $0xb4] sm:$0xff]
      %v2558 = vld [vmem:[%s935 + $0xc4] sm:$0xff]
      %v2559 = vld [vmem:[%s935 + $0xcc] sm:$0xff]
      %v2560 = vld [vmem:[%s935 + $0xdc] sm:$0xff]
      %v2561 = vld [vmem:[%s935 + $0xe4] sm:$0xff]
      %v2562 = vld [vmem:[%s935 + $0xf4] sm:$0xff]
      %v2563 = vld [vmem:[%s935 + $0xfc] sm:$0xff]
      %v2564 = vld [vmem:[%s935 + $0x10c] sm:$0xff]
      %v2565 = vld [vmem:[%s935 + $0x114] sm:$0xff]
      %v2566 = vld [vmem:[%s935 + $0x124] sm:$0xff]
      %v2567 = vld [vmem:[%s935 + $0x12c] sm:$0xff]
      %v2568 = vld [vmem:[%s935 + $0x13c] sm:$0xff]
      %v2569 = vld [vmem:[%s935 + $0x144] sm:$0xff]
      %v2570 = vld [vmem:[%s935 + $0x154] sm:$0xff]
      %v2571 = vld [vmem:[%s935 + $0x15c] sm:$0xff]
      %v2572 = vld [vmem:[%s935 + $0x16c] sm:$0xff]
      %v2573 = vld [vmem:[%s935 + $0x174] sm:$0xff]
      %v2574 = vpack.c.bf16 %v2543, %v2542
      %v2575 = vpack.c.bf16 %v2545, %v2544
      %v2576 = vpack.c.bf16 %v2547, %v2546
      %v2577 = vpack.c.bf16 %v2549, %v2548
      %v2578 = vpack.c.bf16 %v2551, %v2550
      %v2579 = vpack.c.bf16 %v2553, %v2552
      %v2580 = vpack.c.bf16 %v2555, %v2554
      %v2581 = vpack.c.bf16 %v2557, %v2556
      %v2582 = vpack.c.bf16 %v2559, %v2558
      %v2583 = vpack.c.bf16 %v2561, %v2560
      %v2584 = vpack.c.bf16 %v2563, %v2562
      %v2585 = vpack.c.bf16 %v2565, %v2564
      %v2586 = vpack.c.bf16 %v2567, %v2566
      %v2587 = vpack.c.bf16 %v2569, %v2568
      %v2588 = vpack.c.bf16 %v2571, %v2570
      %v2589 = vpack.c.bf16 %v2573, %v2572
      %s2590 = scalar_lea.vmem %s6, 10
      %v2591 = vld [vmem:[%s2590] sm:$0x3]
      %v2592 = vpack.c.bf16 %v2591, %v2591
      %v2594 = vsel %vm503, %v2574, 0
      %v2597 = vsel %vm503, %v2575, 0
      %v2600 = vsel %vm503, %v2576, 0
      %v2603 = vsel %vm503, %v2577, 0
      %v2606 = vsel %vm503, %v2578, 0
      %v2609 = vsel %vm503, %v2579, 0
      %v2612 = vsel %vm503, %v2580, 0
      %v2615 = vsel %vm503, %v2581, 0
      %v2618 = vsel %vm503, %v2582, 0
      %v2621 = vsel %vm503, %v2583, 0
      %v2624 = vsel %vm503, %v2584, 0
      %v2627 = vsel %vm503, %v2585, 0
      %v2630 = vsel %vm503, %v2586, 0
      %v2633 = vsel %vm503, %v2587, 0
      %v2636 = vsel %vm503, %v2588, 0
      %v2639 = vsel %vm503, %v2589, 0
      %v2642 = vsel %vm1280, %v2592, 0
      %2644 = vmatprep.subr.bf16.mxu0 0
      %2645 = vmatpush1.bf16.msra.mxu0 %v2642
      %2646 = vmatprep.subr.bf16.mxu0 0
      %2647 = vmatpush1.bf16.msra.mxu0 0
      %2648 = vmatprep.subr.bf16.mxu0 0
      %2649 = vmatpush1.bf16.msra.mxu0 0
      %2650 = vmatprep.subr.bf16.mxu0 0
      %2651 = vmatpush1.bf16.msra.mxu0 0
      %2652 = vmatprep.subr.bf16.mxu0 0
      %2653 = vmatpush1.bf16.msra.mxu0 0
      %2654 = vmatprep.subr.bf16.mxu0 0
      %2655 = vmatpush1.bf16.msra.mxu0 0
      %2656 = vmatprep.subr.bf16.mxu0 0
      %2657 = vmatpush1.bf16.msra.mxu0 0
      %2658 = vmatprep.subr.bf16.mxu0 0
      %2659 = vmatpush1.bf16.msra.mxu0 0
      %2660 = vmatprep.subr.bf16.mxu0 0
      %2661 = vmatpush1.bf16.msra.mxu0 0
      %2662 = vmatprep.subr.bf16.mxu0 0
      %2663 = vmatpush1.bf16.msra.mxu0 0
      %2664 = vmatprep.subr.bf16.mxu0 0
      %2665 = vmatpush1.bf16.msra.mxu0 0
      %2666 = vmatprep.subr.bf16.mxu0 0
      %2667 = vmatpush1.bf16.msra.mxu0 0
      %2668 = vmatprep.subr.bf16.mxu0 0
      %2669 = vmatpush1.bf16.msra.mxu0 0
      %2670 = vmatprep.subr.bf16.mxu0 0
      %2671 = vmatpush1.bf16.msra.mxu0 0
      %2672 = vmatprep.subr.bf16.mxu0 0
      %2673 = vmatpush1.bf16.msra.mxu0 0
      %2674 = vmatprep.subr.bf16.mxu0 0
      %2675 = vmatpush1.bf16.msra.mxu0 0
      %2676 = vmatprep.mubr.bf16.mxu0 0
      %2677 = vmatmul.mubr.bf16.gmra.mrb[0].mxu0 %v2594
      %v2678 = vpop.f32.mrb[0].mxu0
      %v2679 = vadd.f32 0.0, %v2678
      %v2680 = vpop.f32.mrb[0].mxu0
      %v2681 = vpop.f32.mrb[0].mxu0
      %v2682 = vadd.f32 0.0, %v2681
      %v2683 = vpop.f32.mrb[0].mxu0
      %2684 = vmatprep.mubr.bf16.mxu0 0
      %2685 = vmatmul.mubr.bf16.gmra.mrb[0].mxu0 %v2597
      %v2686 = vpop.f32.mrb[0].mxu0
      %v2687 = vadd.f32 0.0, %v2686
      %v2688 = vpop.f32.mrb[0].mxu0
      %v2689 = vpop.f32.mrb[0].mxu0
      %v2690 = vadd.f32 0.0, %v2689
      %v2691 = vpop.f32.mrb[0].mxu0
      %2692 = vmatprep.mubr.bf16.mxu0 0
      %2693 = vmatmul.mubr.bf16.gmra.mrb[0].mxu0 %v2600
      %v2694 = vpop.f32.mrb[0].mxu0
      %v2695 = vadd.f32 0.0, %v2694
      %v2696 = vpop.f32.mrb[0].mxu0
      %v2697 = vpop.f32.mrb[0].mxu0
      %v2698 = vadd.f32 0.0, %v2697
      %v2699 = vpop.f32.mrb[0].mxu0
      %2700 = vmatprep.mubr.bf16.mxu0 0
      %2701 = vmatmul.mubr.bf16.gmra.mrb[0].mxu0 %v2603
      %v2702 = vpop.f32.mrb[0].mxu0
      %v2703 = vadd.f32 0.0, %v2702
      %v2704 = vpop.f32.mrb[0].mxu0
      %v2705 = vpop.f32.mrb[0].mxu0
      %v2706 = vadd.f32 0.0, %v2705
      %v2707 = vpop.f32.mrb[0].mxu0
      %2708 = vmatprep.mubr.bf16.mxu0 0
      %2709 = vmatmul.mubr.bf16.gmra.mrb[0].mxu0 %v2606
      %v2710 = vpop.f32.mrb[0].mxu0
      %v2711 = vadd.f32 0.0, %v2710
      %v2712 = vpop.f32.mrb[0].mxu0
      %v2713 = vpop.f32.mrb[0].mxu0
      %v2714 = vadd.f32 0.0, %v2713
      %v2715 = vpop.f32.mrb[0].mxu0
      %2716 = vmatprep.mubr.bf16.mxu0 0
      %2717 = vmatmul.mubr.bf16.gmra.mrb[0].mxu0 %v2609
      %v2718 = vpop.f32.mrb[0].mxu0
      %v2719 = vadd.f32 0.0, %v2718
      %v2720 = vpop.f32.mrb[0].mxu0
      %v2721 = vpop.f32.mrb[0].mxu0
      %v2722 = vadd.f32 0.0, %v2721
      %v2723 = vpop.f32.mrb[0].mxu0
      %2724 = vmatprep.mubr.bf16.mxu0 0
      %2725 = vmatmul.mubr.bf16.gmra.mrb[0].mxu0 %v2612
      %v2726 = vpop.f32.mrb[0].mxu0
      %v2727 = vadd.f32 0.0, %v2726
      %v2728 = vpop.f32.mrb[0].mxu0
      %v2729 = vpop.f32.mrb[0].mxu0
      %v2730 = vadd.f32 0.0, %v2729
      %v2731 = vpop.f32.mrb[0].mxu0
      %2732 = vmatprep.mubr.bf16.mxu0 0
      %2733 = vmatmul.mubr.bf16.gmra.mrb[0].mxu0 %v2615
      %v2734 = vpop.f32.mrb[0].mxu0
      %v2735 = vadd.f32 0.0, %v2734
      %v2736 = vpop.f32.mrb[0].mxu0
      %v2737 = vpop.f32.mrb[0].mxu0
      %v2738 = vadd.f32 0.0, %v2737
      %v2739 = vpop.f32.mrb[0].mxu0
      %2740 = vmatprep.mubr.bf16.mxu0 0
      %2741 = vmatmul.mubr.bf16.gmra.mrb[0].mxu0 %v2618
      %v2742 = vpop.f32.mrb[0].mxu0
      %v2743 = vadd.f32 0.0, %v2742
      %v2744 = vpop.f32.mrb[0].mxu0
      %v2745 = vpop.f32.mrb[0].mxu0
      %v2746 = vadd.f32 0.0, %v2745
      %v2747 = vpop.f32.mrb[0].mxu0
      %2748 = vmatprep.mubr.bf16.mxu0 0
      %2749 = vmatmul.mubr.bf16.gmra.mrb[0].mxu0 %v2621
      %v2750 = vpop.f32.mrb[0].mxu0
      %v2751 = vadd.f32 0.0, %v2750
      %v2752 = vpop.f32.mrb[0].mxu0
      %v2753 = vpop.f32.mrb[0].mxu0
      %v2754 = vadd.f32 0.0, %v2753
      %v2755 = vpop.f32.mrb[0].mxu0
      %2756 = vmatprep.mubr.bf16.mxu0 0
      %2757 = vmatmul.mubr.bf16.gmra.mrb[0].mxu0 %v2624
      %v2758 = vpop.f32.mrb[0].mxu0
      %v2759 = vadd.f32 0.0, %v2758
      %v2760 = vpop.f32.mrb[0].mxu0
      %v2761 = vpop.f32.mrb[0].mxu0
      %v2762 = vadd.f32 0.0, %v2761
      %v2763 = vpop.f32.mrb[0].mxu0
      %2764 = vmatprep.mubr.bf16.mxu0 0
      %2765 = vmatmul.mubr.bf16.gmra.mrb[0].mxu0 %v2627
      %v2766 = vpop.f32.mrb[0].mxu0
      %v2767 = vadd.f32 0.0, %v2766
      %v2768 = vpop.f32.mrb[0].mxu0
      %v2769 = vpop.f32.mrb[0].mxu0
      %v2770 = vadd.f32 0.0, %v2769
      %v2771 = vpop.f32.mrb[0].mxu0
      %2772 = vmatprep.mubr.bf16.mxu0 0
      %2773 = vmatmul.mubr.bf16.gmra.mrb[0].mxu0 %v2630
      %v2774 = vpop.f32.mrb[0].mxu0
      %v2775 = vadd.f32 0.0, %v2774
      %v2776 = vpop.f32.mrb[0].mxu0
      %v2777 = vpop.f32.mrb[0].mxu0
      %v2778 = vadd.f32 0.0, %v2777
      %v2779 = vpop.f32.mrb[0].mxu0
      %2780 = vmatprep.mubr.bf16.mxu0 0
      %2781 = vmatmul.mubr.bf16.gmra.mrb[0].mxu0 %v2633
      %v2782 = vpop.f32.mrb[0].mxu0
      %v2783 = vadd.f32 0.0, %v2782
      %v2784 = vpop.f32.mrb[0].mxu0
      %v2785 = vpop.f32.mrb[0].mxu0
      %v2786 = vadd.f32 0.0, %v2785
      %v2787 = vpop.f32.mrb[0].mxu0
      %2788 = vmatprep.mubr.bf16.mxu0 0
      %2789 = vmatmul.mubr.bf16.gmra.mrb[0].mxu0 %v2636
      %v2790 = vpop.f32.mrb[0].mxu0
      %v2791 = vadd.f32 0.0, %v2790
      %v2792 = vpop.f32.mrb[0].mxu0
      %v2793 = vpop.f32.mrb[0].mxu0
      %v2794 = vadd.f32 0.0, %v2793
      %v2795 = vpop.f32.mrb[0].mxu0
      %2796 = vmatprep.mubr.bf16.mxu0 0
      %2797 = vmatmul.mubr.bf16.gmra.mrb[0].mxu0 %v2639
      %v2798 = vpop.f32.mrb[0].mxu0
      %v2799 = vadd.f32 0.0, %v2798
      %v2800 = vpop.f32.mrb[0].mxu0
      %v2801 = vpop.f32.mrb[0].mxu0
      %v2802 = vadd.f32 0.0, %v2801
      %v2803 = vpop.f32.mrb[0].mxu0
      %2804 = vdwg.mxu0
      %v2805 = vadd.f32 %v2510, %v2679
      %v2806 = vadd.f32 %v2511, %v2682
      %v2807 = vadd.f32 %v2512, %v2687
      %v2808 = vadd.f32 %v2513, %v2690
      %v2809 = vadd.f32 %v2514, %v2695
      %v2810 = vadd.f32 %v2515, %v2698
      %v2811 = vadd.f32 %v2516, %v2703
      %v2812 = vadd.f32 %v2517, %v2706
      %v2813 = vadd.f32 %v2518, %v2711
      %v2814 = vadd.f32 %v2519, %v2714
      %v2815 = vadd.f32 %v2520, %v2719
      %v2816 = vadd.f32 %v2521, %v2722
      %v2817 = vadd.f32 %v2522, %v2727
      %v2818 = vadd.f32 %v2523, %v2730
      %v2819 = vadd.f32 %v2524, %v2735
      %v2820 = vadd.f32 %v2525, %v2738
      %v2821 = vadd.f32 %v2526, %v2743
      %v2822 = vadd.f32 %v2527, %v2746
      %v2823 = vadd.f32 %v2528, %v2751
      %v2824 = vadd.f32 %v2529, %v2754
      %v2825 = vadd.f32 %v2530, %v2759
      %v2826 = vadd.f32 %v2531, %v2762
      %v2827 = vadd.f32 %v2532, %v2767
      %v2828 = vadd.f32 %v2533, %v2770
      %v2829 = vadd.f32 %v2534, %v2775
      %v2830 = vadd.f32 %v2535, %v2778
      %v2831 = vadd.f32 %v2536, %v2783
      %v2832 = vadd.f32 %v2537, %v2786
      %v2833 = vadd.f32 %v2538, %v2791
      %v2834 = vadd.f32 %v2539, %v2794
      %v2835 = vadd.f32 %v2540, %v2799
      %v2836 = vadd.f32 %v2541, %v2802
      %s2837 = scalar_lea.vmem [#allocation2], 96
      %v2838 = vld [vmem:[%s2837] sm:$0xff]
      %v2839 = vld [vmem:[%s2837 + $0x8] sm:$0xff]
      %v2840 = vld [vmem:[%s2837 + $0x18] sm:$0xff]
      %v2841 = vld [vmem:[%s2837 + $0x20] sm:$0xff]
      %v2842 = vld [vmem:[%s2837 + $0x30] sm:$0xff]
      %v2843 = vld [vmem:[%s2837 + $0x38] sm:$0xff]
      %v2844 = vld [vmem:[%s2837 + $0x48] sm:$0xff]
      %v2845 = vld [vmem:[%s2837 + $0x50] sm:$0xff]
      %v2846 = vld [vmem:[%s2837 + $0x60] sm:$0xff]
      %v2847 = vld [vmem:[%s2837 + $0x68] sm:$0xff]
      %v2848 = vld [vmem:[%s2837 + $0x78] sm:$0xff]
      %v2849 = vld [vmem:[%s2837 + $0x80] sm:$0xff]
      %v2850 = vld [vmem:[%s2837 + $0x90] sm:$0xff]
      %v2851 = vld [vmem:[%s2837 + $0x98] sm:$0xff]
      %v2852 = vld [vmem:[%s2837 + $0xa8] sm:$0xff]
      %v2853 = vld [vmem:[%s2837 + $0xb0] sm:$0xff]
      %v2854 = vld [vmem:[%s2837 + $0xc0] sm:$0xff]
      %v2855 = vld [vmem:[%s2837 + $0xc8] sm:$0xff]
      %v2856 = vld [vmem:[%s2837 + $0xd8] sm:$0xff]
      %v2857 = vld [vmem:[%s2837 + $0xe0] sm:$0xff]
      %v2858 = vld [vmem:[%s2837 + $0xf0] sm:$0xff]
      %v2859 = vld [vmem:[%s2837 + $0xf8] sm:$0xff]
      %v2860 = vld [vmem:[%s2837 + $0x108] sm:$0xff]
      %v2861 = vld [vmem:[%s2837 + $0x110] sm:$0xff]
      %v2862 = vld [vmem:[%s2837 + $0x120] sm:$0xff]
      %v2863 = vld [vmem:[%s2837 + $0x128] sm:$0xff]
      %v2864 = vld [vmem:[%s2837 + $0x138] sm:$0xff]
      %v2865 = vld [vmem:[%s2837 + $0x140] sm:$0xff]
      %v2866 = vld [vmem:[%s2837 + $0x150] sm:$0xff]
      %v2867 = vld [vmem:[%s2837 + $0x158] sm:$0xff]
      %v2868 = vld [vmem:[%s2837 + $0x168] sm:$0xff]
      %v2869 = vld [vmem:[%s2837 + $0x170] sm:$0xff]
      %v2870 = vpack.c.bf16 %v2839, %v2838
      %v2871 = vpack.c.bf16 %v2841, %v2840
      %v2872 = vpack.c.bf16 %v2843, %v2842
      %v2873 = vpack.c.bf16 %v2845, %v2844
      %v2874 = vpack.c.bf16 %v2847, %v2846
      %v2875 = vpack.c.bf16 %v2849, %v2848
      %v2876 = vpack.c.bf16 %v2851, %v2850
      %v2877 = vpack.c.bf16 %v2853, %v2852
      %v2878 = vpack.c.bf16 %v2855, %v2854
      %v2879 = vpack.c.bf16 %v2857, %v2856
      %v2880 = vpack.c.bf16 %v2859, %v2858
      %v2881 = vpack.c.bf16 %v2861, %v2860
      %v2882 = vpack.c.bf16 %v2863, %v2862
      %v2883 = vpack.c.bf16 %v2865, %v2864
      %v2884 = vpack.c.bf16 %v2867, %v2866
      %v2885 = vpack.c.bf16 %v2869, %v2868
      %s2886 = scalar_lea.vmem %s6, 12
      %v2887 = vld [vmem:[%s2886] sm:$0x3]
      %v2888 = vpack.c.bf16 %v2887, %v2887
      %v2890 = vsel %vm503, %v2870, 0
      %v2893 = vsel %vm503, %v2871, 0
      %v2896 = vsel %vm503, %v2872, 0
      %v2899 = vsel %vm503, %v2873, 0
      %v2902 = vsel %vm503, %v2874, 0
      %v2905 = vsel %vm503, %v2875, 0
      %v2908 = vsel %vm503, %v2876, 0
      %v2911 = vsel %vm503, %v2877, 0
      %v2914 = vsel %vm503, %v2878, 0
      %v2917 = vsel %vm503, %v2879, 0
      %v2920 = vsel %vm503, %v2880, 0
      %v2923 = vsel %vm503, %v2881, 0
      %v2926 = vsel %vm503, %v2882, 0
      %v2929 = vsel %vm503, %v2883, 0
      %v2932 = vsel %vm503, %v2884, 0
      %v2935 = vsel %vm503, %v2885, 0
      %v2938 = vsel %vm1280, %v2888, 0
      %2940 = vmatprep.subr.bf16.mxu0 0
      %2941 = vmatpush1.bf16.msra.mxu0 %v2938
      %2942 = vmatprep.subr.bf16.mxu0 0
      %2943 = vmatpush1.bf16.msra.mxu0 0
      %2944 = vmatprep.subr.bf16.mxu0 0
      %2945 = vmatpush1.bf16.msra.mxu0 0
      %2946 = vmatprep.subr.bf16.mxu0 0
      %2947 = vmatpush1.bf16.msra.mxu0 0
      %2948 = vmatprep.subr.bf16.mxu0 0
      %2949 = vmatpush1.bf16.msra.mxu0 0
      %2950 = vmatprep.subr.bf16.mxu0 0
      %2951 = vmatpush1.bf16.msra.mxu0 0
      %2952 = vmatprep.subr.bf16.mxu0 0
      %2953 = vmatpush1.bf16.msra.mxu0 0
      %2954 = vmatprep.subr.bf16.mxu0 0
      %2955 = vmatpush1.bf16.msra.mxu0 0
      %2956 = vmatprep.subr.bf16.mxu0 0
      %2957 = vmatpush1.bf16.msra.mxu0 0
      %2958 = vmatprep.subr.bf16.mxu0 0
      %2959 = vmatpush1.bf16.msra.mxu0 0
      %2960 = vmatprep.subr.bf16.mxu0 0
      %2961 = vmatpush1.bf16.msra.mxu0 0
      %2962 = vmatprep.subr.bf16.mxu0 0
      %2963 = vmatpush1.bf16.msra.mxu0 0
      %2964 = vmatprep.subr.bf16.mxu0 0
      %2965 = vmatpush1.bf16.msra.mxu0 0
      %2966 = vmatprep.subr.bf16.mxu0 0
      %2967 = vmatpush1.bf16.msra.mxu0 0
      %2968 = vmatprep.subr.bf16.mxu0 0
      %2969 = vmatpush1.bf16.msra.mxu0 0
      %2970 = vmatprep.subr.bf16.mxu0 0
      %2971 = vmatpush1.bf16.msra.mxu0 0
      %2972 = vmatprep.mubr.bf16.mxu0 0
      %2973 = vmatmul.mubr.bf16.gmra.mrb[0].mxu0 %v2890
      %v2974 = vpop.f32.mrb[0].mxu0
      %v2975 = vadd.f32 0.0, %v2974
      %v2976 = vpop.f32.mrb[0].mxu0
      %v2977 = vpop.f32.mrb[0].mxu0
      %v2978 = vadd.f32 0.0, %v2977
      %v2979 = vpop.f32.mrb[0].mxu0
      %2980 = vmatprep.mubr.bf16.mxu0 0
      %2981 = vmatmul.mubr.bf16.gmra.mrb[0].mxu0 %v2893
      %v2982 = vpop.f32.mrb[0].mxu0
      %v2983 = vadd.f32 0.0, %v2982
      %v2984 = vpop.f32.mrb[0].mxu0
      %v2985 = vpop.f32.mrb[0].mxu0
      %v2986 = vadd.f32 0.0, %v2985
      %v2987 = vpop.f32.mrb[0].mxu0
      %2988 = vmatprep.mubr.bf16.mxu0 0
      %2989 = vmatmul.mubr.bf16.gmra.mrb[0].mxu0 %v2896
      %v2990 = vpop.f32.mrb[0].mxu0
      %v2991 = vadd.f32 0.0, %v2990
      %v2992 = vpop.f32.mrb[0].mxu0
      %v2993 = vpop.f32.mrb[0].mxu0
      %v2994 = vadd.f32 0.0, %v2993
      %v2995 = vpop.f32.mrb[0].mxu0
      %2996 = vmatprep.mubr.bf16.mxu0 0
      %2997 = vmatmul.mubr.bf16.gmra.mrb[0].mxu0 %v2899
      %v2998 = vpop.f32.mrb[0].mxu0
      %v2999 = vadd.f32 0.0, %v2998
      %v3000 = vpop.f32.mrb[0].mxu0
      %v3001 = vpop.f32.mrb[0].mxu0
      %v3002 = vadd.f32 0.0, %v3001
      %v3003 = vpop.f32.mrb[0].mxu0
      %3004 = vmatprep.mubr.bf16.mxu0 0
      %3005 = vmatmul.mubr.bf16.gmra.mrb[0].mxu0 %v2902
      %v3006 = vpop.f32.mrb[0].mxu0
      %v3007 = vadd.f32 0.0, %v3006
      %v3008 = vpop.f32.mrb[0].mxu0
      %v3009 = vpop.f32.mrb[0].mxu0
      %v3010 = vadd.f32 0.0, %v3009
      %v3011 = vpop.f32.mrb[0].mxu0
      %3012 = vmatprep.mubr.bf16.mxu0 0
      %3013 = vmatmul.mubr.bf16.gmra.mrb[0].mxu0 %v2905
      %v3014 = vpop.f32.mrb[0].mxu0
      %v3015 = vadd.f32 0.0, %v3014
      %v3016 = vpop.f32.mrb[0].mxu0
      %v3017 = vpop.f32.mrb[0].mxu0
      %v3018 = vadd.f32 0.0, %v3017
      %v3019 = vpop.f32.mrb[0].mxu0
      %3020 = vmatprep.mubr.bf16.mxu0 0
      %3021 = vmatmul.mubr.bf16.gmra.mrb[0].mxu0 %v2908
      %v3022 = vpop.f32.mrb[0].mxu0
      %v3023 = vadd.f32 0.0, %v3022
      %v3024 = vpop.f32.mrb[0].mxu0
      %v3025 = vpop.f32.mrb[0].mxu0
      %v3026 = vadd.f32 0.0, %v3025
      %v3027 = vpop.f32.mrb[0].mxu0
      %3028 = vmatprep.mubr.bf16.mxu0 0
      %3029 = vmatmul.mubr.bf16.gmra.mrb[0].mxu0 %v2911
      %v3030 = vpop.f32.mrb[0].mxu0
      %v3031 = vadd.f32 0.0, %v3030
      %v3032 = vpop.f32.mrb[0].mxu0
      %v3033 = vpop.f32.mrb[0].mxu0
      %v3034 = vadd.f32 0.0, %v3033
      %v3035 = vpop.f32.mrb[0].mxu0
      %3036 = vmatprep.mubr.bf16.mxu0 0
      %3037 = vmatmul.mubr.bf16.gmra.mrb[0].mxu0 %v2914
      %v3038 = vpop.f32.mrb[0].mxu0
      %v3039 = vadd.f32 0.0, %v3038
      %v3040 = vpop.f32.mrb[0].mxu0
      %v3041 = vpop.f32.mrb[0].mxu0
      %v3042 = vadd.f32 0.0, %v3041
      %v3043 = vpop.f32.mrb[0].mxu0
      %3044 = vmatprep.mubr.bf16.mxu0 0
      %3045 = vmatmul.mubr.bf16.gmra.mrb[0].mxu0 %v2917
      %v3046 = vpop.f32.mrb[0].mxu0
      %v3047 = vadd.f32 0.0, %v3046
      %v3048 = vpop.f32.mrb[0].mxu0
      %v3049 = vpop.f32.mrb[0].mxu0
      %v3050 = vadd.f32 0.0, %v3049
      %v3051 = vpop.f32.mrb[0].mxu0
      %3052 = vmatprep.mubr.bf16.mxu0 0
      %3053 = vmatmul.mubr.bf16.gmra.mrb[0].mxu0 %v2920
      %v3054 = vpop.f32.mrb[0].mxu0
      %v3055 = vadd.f32 0.0, %v3054
      %v3056 = vpop.f32.mrb[0].mxu0
      %v3057 = vpop.f32.mrb[0].mxu0
      %v3058 = vadd.f32 0.0, %v3057
      %v3059 = vpop.f32.mrb[0].mxu0
      %3060 = vmatprep.mubr.bf16.mxu0 0
      %3061 = vmatmul.mubr.bf16.gmra.mrb[0].mxu0 %v2923
      %v3062 = vpop.f32.mrb[0].mxu0
      %v3063 = vadd.f32 0.0, %v3062
      %v3064 = vpop.f32.mrb[0].mxu0
      %v3065 = vpop.f32.mrb[0].mxu0
      %v3066 = vadd.f32 0.0, %v3065
      %v3067 = vpop.f32.mrb[0].mxu0
      %3068 = vmatprep.mubr.bf16.mxu0 0
      %3069 = vmatmul.mubr.bf16.gmra.mrb[0].mxu0 %v2926
      %v3070 = vpop.f32.mrb[0].mxu0
      %v3071 = vadd.f32 0.0, %v3070
      %v3072 = vpop.f32.mrb[0].mxu0
      %v3073 = vpop.f32.mrb[0].mxu0
      %v3074 = vadd.f32 0.0, %v3073
      %v3075 = vpop.f32.mrb[0].mxu0
      %3076 = vmatprep.mubr.bf16.mxu0 0
      %3077 = vmatmul.mubr.bf16.gmra.mrb[0].mxu0 %v2929
      %v3078 = vpop.f32.mrb[0].mxu0
      %v3079 = vadd.f32 0.0, %v3078
      %v3080 = vpop.f32.mrb[0].mxu0
      %v3081 = vpop.f32.mrb[0].mxu0
      %v3082 = vadd.f32 0.0, %v3081
      %v3083 = vpop.f32.mrb[0].mxu0
      %3084 = vmatprep.mubr.bf16.mxu0 0
      %3085 = vmatmul.mubr.bf16.gmra.mrb[0].mxu0 %v2932
      %v3086 = vpop.f32.mrb[0].mxu0
      %v3087 = vadd.f32 0.0, %v3086
      %v3088 = vpop.f32.mrb[0].mxu0
      %v3089 = vpop.f32.mrb[0].mxu0
      %v3090 = vadd.f32 0.0, %v3089
      %v3091 = vpop.f32.mrb[0].mxu0
      %3092 = vmatprep.mubr.bf16.mxu0 0
      %3093 = vmatmul.mubr.bf16.gmra.mrb[0].mxu0 %v2935
      %v3094 = vpop.f32.mrb[0].mxu0
      %v3095 = vadd.f32 0.0, %v3094
      %v3096 = vpop.f32.mrb[0].mxu0
      %v3097 = vpop.f32.mrb[0].mxu0
      %v3098 = vadd.f32 0.0, %v3097
      %v3099 = vpop.f32.mrb[0].mxu0
      %3100 = vdwg.mxu0
      %v3101 = vadd.f32 %v2805, %v2975
      %v3102 = vadd.f32 %v2806, %v2978
      %v3103 = vadd.f32 %v2807, %v2983
      %v3104 = vadd.f32 %v2808, %v2986
      %v3105 = vadd.f32 %v2809, %v2991
      %v3106 = vadd.f32 %v2810, %v2994
      %v3107 = vadd.f32 %v2811, %v2999
      %v3108 = vadd.f32 %v2812, %v3002
      %v3109 = vadd.f32 %v2813, %v3007
      %v3110 = vadd.f32 %v2814, %v3010
      %v3111 = vadd.f32 %v2815, %v3015
      %v3112 = vadd.f32 %v2816, %v3018
      %v3113 = vadd.f32 %v2817, %v3023
      %v3114 = vadd.f32 %v2818, %v3026
      %v3115 = vadd.f32 %v2819, %v3031
      %v3116 = vadd.f32 %v2820, %v3034
      %v3117 = vadd.f32 %v2821, %v3039
      %v3118 = vadd.f32 %v2822, %v3042
      %v3119 = vadd.f32 %v2823, %v3047
      %v3120 = vadd.f32 %v2824, %v3050
      %v3121 = vadd.f32 %v2825, %v3055
      %v3122 = vadd.f32 %v2826, %v3058
      %v3123 = vadd.f32 %v2827, %v3063
      %v3124 = vadd.f32 %v2828, %v3066
      %v3125 = vadd.f32 %v2829, %v3071
      %v3126 = vadd.f32 %v2830, %v3074
      %v3127 = vadd.f32 %v2831, %v3079
      %v3128 = vadd.f32 %v2832, %v3082
      %v3129 = vadd.f32 %v2833, %v3087
      %v3130 = vadd.f32 %v2834, %v3090
      %v3131 = vadd.f32 %v2835, %v3095
      %v3132 = vadd.f32 %v2836, %v3098
      %v3133 = vld [vmem:[%s2837 + $0x2] sm:$0xff]
      %v3134 = vld [vmem:[%s2837 + $0xa] sm:$0xff]
      %v3135 = vld [vmem:[%s2837 + $0x1a] sm:$0xff]
      %v3136 = vld [vmem:[%s2837 + $0x22] sm:$0xff]
      %v3137 = vld [vmem:[%s2837 + $0x32] sm:$0xff]
      %v3138 = vld [vmem:[%s2837 + $0x3a] sm:$0xff]
      %v3139 = vld [vmem:[%s2837 + $0x4a] sm:$0xff]
      %v3140 = vld [vmem:[%s2837 + $0x52] sm:$0xff]
      %v3141 = vld [vmem:[%s2837 + $0x62] sm:$0xff]
      %v3142 = vld [vmem:[%s2837 + $0x6a] sm:$0xff]
      %v3143 = vld [vmem:[%s2837 + $0x7a] sm:$0xff]
      %v3144 = vld [vmem:[%s2837 + $0x82] sm:$0xff]
      %v3145 = vld [vmem:[%s2837 + $0x92] sm:$0xff]
      %v3146 = vld [vmem:[%s2837 + $0x9a] sm:$0xff]
      %v3147 = vld [vmem:[%s2837 + $0xaa] sm:$0xff]
      %v3148 = vld [vmem:[%s2837 + $0xb2] sm:$0xff]
      %v3149 = vld [vmem:[%s2837 + $0xc2] sm:$0xff]
      %v3150 = vld [vmem:[%s2837 + $0xca] sm:$0xff]
      %v3151 = vld [vmem:[%s2837 + $0xda] sm:$0xff]
      %v3152 = vld [vmem:[%s2837 + $0xe2] sm:$0xff]
      %v3153 = vld [vmem:[%s2837 + $0xf2] sm:$0xff]
      %v3154 = vld [vmem:[%s2837 + $0xfa] sm:$0xff]
      %v3155 = vld [vmem:[%s2837 + $0x10a] sm:$0xff]
      %v3156 = vld [vmem:[%s2837 + $0x112] sm:$0xff]
      %v3157 = vld [vmem:[%s2837 + $0x122] sm:$0xff]
      %v3158 = vld [vmem:[%s2837 + $0x12a] sm:$0xff]
      %v3159 = vld [vmem:[%s2837 + $0x13a] sm:$0xff]
      %v3160 = vld [vmem:[%s2837 + $0x142] sm:$0xff]
      %v3161 = vld [vmem:[%s2837 + $0x152] sm:$0xff]
      %v3162 = vld [vmem:[%s2837 + $0x15a] sm:$0xff]
      %v3163 = vld [vmem:[%s2837 + $0x16a] sm:$0xff]
      %v3164 = vld [vmem:[%s2837 + $0x172] sm:$0xff]
      %v3165 = vpack.c.bf16 %v3134, %v3133
      %v3166 = vpack.c.bf16 %v3136, %v3135
      %v3167 = vpack.c.bf16 %v3138, %v3137
      %v3168 = vpack.c.bf16 %v3140, %v3139
      %v3169 = vpack.c.bf16 %v3142, %v3141
      %v3170 = vpack.c.bf16 %v3144, %v3143
      %v3171 = vpack.c.bf16 %v3146, %v3145
      %v3172 = vpack.c.bf16 %v3148, %v3147
      %v3173 = vpack.c.bf16 %v3150, %v3149
      %v3174 = vpack.c.bf16 %v3152, %v3151
      %v3175 = vpack.c.bf16 %v3154, %v3153
      %v3176 = vpack.c.bf16 %v3156, %v3155
      %v3177 = vpack.c.bf16 %v3158, %v3157
      %v3178 = vpack.c.bf16 %v3160, %v3159
      %v3179 = vpack.c.bf16 %v3162, %v3161
      %v3180 = vpack.c.bf16 %v3164, %v3163
      %s3181 = scalar_lea.vmem %s6, 14
      %v3182 = vld [vmem:[%s3181] sm:$0x3]
      %v3183 = vpack.c.bf16 %v3182, %v3182
      %v3185 = vsel %vm503, %v3165, 0
      %v3188 = vsel %vm503, %v3166, 0
      %v3191 = vsel %vm503, %v3167, 0
      %v3194 = vsel %vm503, %v3168, 0
      %v3197 = vsel %vm503, %v3169, 0
      %v3200 = vsel %vm503, %v3170, 0
      %v3203 = vsel %vm503, %v3171, 0
      %v3206 = vsel %vm503, %v3172, 0
      %v3209 = vsel %vm503, %v3173, 0
      %v3212 = vsel %vm503, %v3174, 0
      %v3215 = vsel %vm503, %v3175, 0
      %v3218 = vsel %vm503, %v3176, 0
      %v3221 = vsel %vm503, %v3177, 0
      %v3224 = vsel %vm503, %v3178, 0
      %v3227 = vsel %vm503, %v3179, 0
      %v3230 = vsel %vm503, %v3180, 0
      %v3233 = vsel %vm1280, %v3183, 0
      %3235 = vmatprep.subr.bf16.mxu0 0
      %3236 = vmatpush1.bf16.msra.mxu0 %v3233
      %3237 = vmatprep.subr.bf16.mxu0 0
      %3238 = vmatpush1.bf16.msra.mxu0 0
      %3239 = vmatprep.subr.bf16.mxu0 0
      %3240 = vmatpush1.bf16.msra.mxu0 0
      %3241 = vmatprep.subr.bf16.mxu0 0
      %3242 = vmatpush1.bf16.msra.mxu0 0
      %3243 = vmatprep.subr.bf16.mxu0 0
      %3244 = vmatpush1.bf16.msra.mxu0 0
      %3245 = vmatprep.subr.bf16.mxu0 0
      %3246 = vmatpush1.bf16.msra.mxu0 0
      %3247 = vmatprep.subr.bf16.mxu0 0
      %3248 = vmatpush1.bf16.msra.mxu0 0
      %3249 = vmatprep.subr.bf16.mxu0 0
      %3250 = vmatpush1.bf16.msra.mxu0 0
      %3251 = vmatprep.subr.bf16.mxu0 0
      %3252 = vmatpush1.bf16.msra.mxu0 0
      %3253 = vmatprep.subr.bf16.mxu0 0
      %3254 = vmatpush1.bf16.msra.mxu0 0
      %3255 = vmatprep.subr.bf16.mxu0 0
      %3256 = vmatpush1.bf16.msra.mxu0 0
      %3257 = vmatprep.subr.bf16.mxu0 0
      %3258 = vmatpush1.bf16.msra.mxu0 0
      %3259 = vmatprep.subr.bf16.mxu0 0
      %3260 = vmatpush1.bf16.msra.mxu0 0
      %3261 = vmatprep.subr.bf16.mxu0 0
      %3262 = vmatpush1.bf16.msra.mxu0 0
      %3263 = vmatprep.subr.bf16.mxu0 0
      %3264 = vmatpush1.bf16.msra.mxu0 0
      %3265 = vmatprep.subr.bf16.mxu0 0
      %3266 = vmatpush1.bf16.msra.mxu0 0
      %3267 = vmatprep.mubr.bf16.mxu0 0
      %3268 = vmatmul.mubr.bf16.gmra.mrb[0].mxu0 %v3185
      %v3269 = vpop.f32.mrb[0].mxu0
      %v3270 = vadd.f32 0.0, %v3269
      %v3271 = vpop.f32.mrb[0].mxu0
      %v3272 = vpop.f32.mrb[0].mxu0
      %v3273 = vadd.f32 0.0, %v3272
      %v3274 = vpop.f32.mrb[0].mxu0
      %3275 = vmatprep.mubr.bf16.mxu0 0
      %3276 = vmatmul.mubr.bf16.gmra.mrb[0].mxu0 %v3188
      %v3277 = vpop.f32.mrb[0].mxu0
      %v3278 = vadd.f32 0.0, %v3277
      %v3279 = vpop.f32.mrb[0].mxu0
      %v3280 = vpop.f32.mrb[0].mxu0
      %v3281 = vadd.f32 0.0, %v3280
      %v3282 = vpop.f32.mrb[0].mxu0
      %3283 = vmatprep.mubr.bf16.mxu0 0
      %3284 = vmatmul.mubr.bf16.gmra.mrb[0].mxu0 %v3191
      %v3285 = vpop.f32.mrb[0].mxu0
      %v3286 = vadd.f32 0.0, %v3285
      %v3287 = vpop.f32.mrb[0].mxu0
      %v3288 = vpop.f32.mrb[0].mxu0
      %v3289 = vadd.f32 0.0, %v3288
      %v3290 = vpop.f32.mrb[0].mxu0
      %3291 = vmatprep.mubr.bf16.mxu0 0
      %3292 = vmatmul.mubr.bf16.gmra.mrb[0].mxu0 %v3194
      %v3293 = vpop.f32.mrb[0].mxu0
      %v3294 = vadd.f32 0.0, %v3293
      %v3295 = vpop.f32.mrb[0].mxu0
      %v3296 = vpop.f32.mrb[0].mxu0
      %v3297 = vadd.f32 0.0, %v3296
      %v3298 = vpop.f32.mrb[0].mxu0
      %3299 = vmatprep.mubr.bf16.mxu0 0
      %3300 = vmatmul.mubr.bf16.gmra.mrb[0].mxu0 %v3197
      %v3301 = vpop.f32.mrb[0].mxu0
      %v3302 = vadd.f32 0.0, %v3301
      %v3303 = vpop.f32.mrb[0].mxu0
      %v3304 = vpop.f32.mrb[0].mxu0
      %v3305 = vadd.f32 0.0, %v3304
      %v3306 = vpop.f32.mrb[0].mxu0
      %3307 = vmatprep.mubr.bf16.mxu0 0
      %3308 = vmatmul.mubr.bf16.gmra.mrb[0].mxu0 %v3200
      %v3309 = vpop.f32.mrb[0].mxu0
      %v3310 = vadd.f32 0.0, %v3309
      %v3311 = vpop.f32.mrb[0].mxu0
      %v3312 = vpop.f32.mrb[0].mxu0
      %v3313 = vadd.f32 0.0, %v3312
      %v3314 = vpop.f32.mrb[0].mxu0
      %3315 = vmatprep.mubr.bf16.mxu0 0
      %3316 = vmatmul.mubr.bf16.gmra.mrb[0].mxu0 %v3203
      %v3317 = vpop.f32.mrb[0].mxu0
      %v3318 = vadd.f32 0.0, %v3317
      %v3319 = vpop.f32.mrb[0].mxu0
      %v3320 = vpop.f32.mrb[0].mxu0
      %v3321 = vadd.f32 0.0, %v3320
      %v3322 = vpop.f32.mrb[0].mxu0
      %3323 = vmatprep.mubr.bf16.mxu0 0
      %3324 = vmatmul.mubr.bf16.gmra.mrb[0].mxu0 %v3206
      %v3325 = vpop.f32.mrb[0].mxu0
      %v3326 = vadd.f32 0.0, %v3325
      %v3327 = vpop.f32.mrb[0].mxu0
      %v3328 = vpop.f32.mrb[0].mxu0
      %v3329 = vadd.f32 0.0, %v3328
      %v3330 = vpop.f32.mrb[0].mxu0
      %3331 = vmatprep.mubr.bf16.mxu0 0
      %3332 = vmatmul.mubr.bf16.gmra.mrb[0].mxu0 %v3209
      %v3333 = vpop.f32.mrb[0].mxu0
      %v3334 = vadd.f32 0.0, %v3333
      %v3335 = vpop.f32.mrb[0].mxu0
      %v3336 = vpop.f32.mrb[0].mxu0
      %v3337 = vadd.f32 0.0, %v3336
      %v3338 = vpop.f32.mrb[0].mxu0
      %3339 = vmatprep.mubr.bf16.mxu0 0
      %3340 = vmatmul.mubr.bf16.gmra.mrb[0].mxu0 %v3212
      %v3341 = vpop.f32.mrb[0].mxu0
      %v3342 = vadd.f32 0.0, %v3341
      %v3343 = vpop.f32.mrb[0].mxu0
      %v3344 = vpop.f32.mrb[0].mxu0
      %v3345 = vadd.f32 0.0, %v3344
      %v3346 = vpop.f32.mrb[0].mxu0
      %3347 = vmatprep.mubr.bf16.mxu0 0
      %3348 = vmatmul.mubr.bf16.gmra.mrb[0].mxu0 %v3215
      %v3349 = vpop.f32.mrb[0].mxu0
      %v3350 = vadd.f32 0.0, %v3349
      %v3351 = vpop.f32.mrb[0].mxu0
      %v3352 = vpop.f32.mrb[0].mxu0
      %v3353 = vadd.f32 0.0, %v3352
      %v3354 = vpop.f32.mrb[0].mxu0
      %3355 = vmatprep.mubr.bf16.mxu0 0
      %3356 = vmatmul.mubr.bf16.gmra.mrb[0].mxu0 %v3218
      %v3357 = vpop.f32.mrb[0].mxu0
      %v3358 = vadd.f32 0.0, %v3357
      %v3359 = vpop.f32.mrb[0].mxu0
      %v3360 = vpop.f32.mrb[0].mxu0
      %v3361 = vadd.f32 0.0, %v3360
      %v3362 = vpop.f32.mrb[0].mxu0
      %3363 = vmatprep.mubr.bf16.mxu0 0
      %3364 = vmatmul.mubr.bf16.gmra.mrb[0].mxu0 %v3221
      %v3365 = vpop.f32.mrb[0].mxu0
      %v3366 = vadd.f32 0.0, %v3365
      %v3367 = vpop.f32.mrb[0].mxu0
      %v3368 = vpop.f32.mrb[0].mxu0
      %v3369 = vadd.f32 0.0, %v3368
      %v3370 = vpop.f32.mrb[0].mxu0
      %3371 = vmatprep.mubr.bf16.mxu0 0
      %3372 = vmatmul.mubr.bf16.gmra.mrb[0].mxu0 %v3224
      %v3373 = vpop.f32.mrb[0].mxu0
      %v3374 = vadd.f32 0.0, %v3373
      %v3375 = vpop.f32.mrb[0].mxu0
      %v3376 = vpop.f32.mrb[0].mxu0
      %v3377 = vadd.f32 0.0, %v3376
      %v3378 = vpop.f32.mrb[0].mxu0
      %3379 = vmatprep.mubr.bf16.mxu0 0
      %3380 = vmatmul.mubr.bf16.gmra.mrb[0].mxu0 %v3227
      %v3381 = vpop.f32.mrb[0].mxu0
      %v3382 = vadd.f32 0.0, %v3381
      %v3383 = vpop.f32.mrb[0].mxu0
      %v3384 = vpop.f32.mrb[0].mxu0
      %v3385 = vadd.f32 0.0, %v3384
      %v3386 = vpop.f32.mrb[0].mxu0
      %3387 = vmatprep.mubr.bf16.mxu0 0
      %3388 = vmatmul.mubr.bf16.gmra.mrb[0].mxu0 %v3230
      %v3389 = vpop.f32.mrb[0].mxu0
      %v3390 = vadd.f32 0.0, %v3389
      %v3391 = vpop.f32.mrb[0].mxu0
      %v3392 = vpop.f32.mrb[0].mxu0
      %v3393 = vadd.f32 0.0, %v3392
      %v3394 = vpop.f32.mrb[0].mxu0
      %3395 = vdwg.mxu0
      %v3396 = vadd.f32 %v3101, %v3270
      %v3397 = vadd.f32 %v3102, %v3273
      %v3398 = vadd.f32 %v3103, %v3278
      %v3399 = vadd.f32 %v3104, %v3281
      %v3400 = vadd.f32 %v3105, %v3286
      %v3401 = vadd.f32 %v3106, %v3289
      %v3402 = vadd.f32 %v3107, %v3294
      %v3403 = vadd.f32 %v3108, %v3297
      %v3404 = vadd.f32 %v3109, %v3302
      %v3405 = vadd.f32 %v3110, %v3305
      %v3406 = vadd.f32 %v3111, %v3310
      %v3407 = vadd.f32 %v3112, %v3313
      %v3408 = vadd.f32 %v3113, %v3318
      %v3409 = vadd.f32 %v3114, %v3321
      %v3410 = vadd.f32 %v3115, %v3326
      %v3411 = vadd.f32 %v3116, %v3329
      %v3412 = vadd.f32 %v3117, %v3334
      %v3413 = vadd.f32 %v3118, %v3337
      %v3414 = vadd.f32 %v3119, %v3342
      %v3415 = vadd.f32 %v3120, %v3345
      %v3416 = vadd.f32 %v3121, %v3350
      %v3417 = vadd.f32 %v3122, %v3353
      %v3418 = vadd.f32 %v3123, %v3358
      %v3419 = vadd.f32 %v3124, %v3361
      %v3420 = vadd.f32 %v3125, %v3366
      %v3421 = vadd.f32 %v3126, %v3369
      %v3422 = vadd.f32 %v3127, %v3374
      %v3423 = vadd.f32 %v3128, %v3377
      %v3424 = vadd.f32 %v3129, %v3382
      %v3425 = vadd.f32 %v3130, %v3385
      %v3426 = vadd.f32 %v3131, %v3390
      %v3427 = vadd.f32 %v3132, %v3393
      %v3428 = vld [vmem:[%s2837 + $0x4] sm:$0xff]
      %v3429 = vld [vmem:[%s2837 + $0xc] sm:$0xff]
      %v3430 = vld [vmem:[%s2837 + $0x1c] sm:$0xff]
      %v3431 = vld [vmem:[%s2837 + $0x24] sm:$0xff]
      %v3432 = vld [vmem:[%s2837 + $0x34] sm:$0xff]
      %v3433 = vld [vmem:[%s2837 + $0x3c] sm:$0xff]
      %v3434 = vld [vmem:[%s2837 + $0x4c] sm:$0xff]
      %v3435 = vld [vmem:[%s2837 + $0x54] sm:$0xff]
      %v3436 = vld [vmem:[%s2837 + $0x64] sm:$0xff]
      %v3437 = vld [vmem:[%s2837 + $0x6c] sm:$0xff]
      %v3438 = vld [vmem:[%s2837 + $0x7c] sm:$0xff]
      %v3439 = vld [vmem:[%s2837 + $0x84] sm:$0xff]
      %v3440 = vld [vmem:[%s2837 + $0x94] sm:$0xff]
      %v3441 = vld [vmem:[%s2837 + $0x9c] sm:$0xff]
      %v3442 = vld [vmem:[%s2837 + $0xac] sm:$0xff]
      %v3443 = vld [vmem:[%s2837 + $0xb4] sm:$0xff]
      %v3444 = vld [vmem:[%s2837 + $0xc4] sm:$0xff]
      %v3445 = vld [vmem:[%s2837 + $0xcc] sm:$0xff]
      %v3446 = vld [vmem:[%s2837 + $0xdc] sm:$0xff]
      %v3447 = vld [vmem:[%s2837 + $0xe4] sm:$0xff]
      %v3448 = vld [vmem:[%s2837 + $0xf4] sm:$0xff]
      %v3449 = vld [vmem:[%s2837 + $0xfc] sm:$0xff]
      %v3450 = vld [vmem:[%s2837 + $0x10c] sm:$0xff]
      %v3451 = vld [vmem:[%s2837 + $0x114] sm:$0xff]
      %v3452 = vld [vmem:[%s2837 + $0x124] sm:$0xff]
      %v3453 = vld [vmem:[%s2837 + $0x12c] sm:$0xff]
      %v3454 = vld [vmem:[%s2837 + $0x13c] sm:$0xff]
      %v3455 = vld [vmem:[%s2837 + $0x144] sm:$0xff]
      %v3456 = vld [vmem:[%s2837 + $0x154] sm:$0xff]
      %v3457 = vld [vmem:[%s2837 + $0x15c] sm:$0xff]
      %v3458 = vld [vmem:[%s2837 + $0x16c] sm:$0xff]
      %v3459 = vld [vmem:[%s2837 + $0x174] sm:$0xff]
      %v3460 = vpack.c.bf16 %v3429, %v3428
      %v3461 = vpack.c.bf16 %v3431, %v3430
      %v3462 = vpack.c.bf16 %v3433, %v3432
      %v3463 = vpack.c.bf16 %v3435, %v3434
      %v3464 = vpack.c.bf16 %v3437, %v3436
      %v3465 = vpack.c.bf16 %v3439, %v3438
      %v3466 = vpack.c.bf16 %v3441, %v3440
      %v3467 = vpack.c.bf16 %v3443, %v3442
      %v3468 = vpack.c.bf16 %v3445, %v3444
      %v3469 = vpack.c.bf16 %v3447, %v3446
      %v3470 = vpack.c.bf16 %v3449, %v3448
      %v3471 = vpack.c.bf16 %v3451, %v3450
      %v3472 = vpack.c.bf16 %v3453, %v3452
      %v3473 = vpack.c.bf16 %v3455, %v3454
      %v3474 = vpack.c.bf16 %v3457, %v3456
      %v3475 = vpack.c.bf16 %v3459, %v3458
      %s3476 = scalar_lea.vmem %s6, 16
      %v3477 = vld [vmem:[%s3476] sm:$0x3]
      %v3478 = vpack.c.bf16 %v3477, %v3477
      %v3480 = vsel %vm503, %v3460, 0
      %v3483 = vsel %vm503, %v3461, 0
      %v3486 = vsel %vm503, %v3462, 0
      %v3489 = vsel %vm503, %v3463, 0
      %v3492 = vsel %vm503, %v3464, 0
      %v3495 = vsel %vm503, %v3465, 0
      %v3498 = vsel %vm503, %v3466, 0
      %v3501 = vsel %vm503, %v3467, 0
      %v3504 = vsel %vm503, %v3468, 0
      %v3507 = vsel %vm503, %v3469, 0
      %v3510 = vsel %vm503, %v3470, 0
      %v3513 = vsel %vm503, %v3471, 0
      %v3516 = vsel %vm503, %v3472, 0
      %v3519 = vsel %vm503, %v3473, 0
      %v3522 = vsel %vm503, %v3474, 0
      %v3525 = vsel %vm503, %v3475, 0
      %v3528 = vsel %vm1280, %v3478, 0
      %3530 = vmatprep.subr.bf16.mxu0 0
      %3531 = vmatpush1.bf16.msra.mxu0 %v3528
      %3532 = vmatprep.subr.bf16.mxu0 0
      %3533 = vmatpush1.bf16.msra.mxu0 0
      %3534 = vmatprep.subr.bf16.mxu0 0
      %3535 = vmatpush1.bf16.msra.mxu0 0
      %3536 = vmatprep.subr.bf16.mxu0 0
      %3537 = vmatpush1.bf16.msra.mxu0 0
      %3538 = vmatprep.subr.bf16.mxu0 0
      %3539 = vmatpush1.bf16.msra.mxu0 0
      %3540 = vmatprep.subr.bf16.mxu0 0
      %3541 = vmatpush1.bf16.msra.mxu0 0
      %3542 = vmatprep.subr.bf16.mxu0 0
      %3543 = vmatpush1.bf16.msra.mxu0 0
      %3544 = vmatprep.subr.bf16.mxu0 0
      %3545 = vmatpush1.bf16.msra.mxu0 0
      %3546 = vmatprep.subr.bf16.mxu0 0
      %3547 = vmatpush1.bf16.msra.mxu0 0
      %3548 = vmatprep.subr.bf16.mxu0 0
      %3549 = vmatpush1.bf16.msra.mxu0 0
      %3550 = vmatprep.subr.bf16.mxu0 0
      %3551 = vmatpush1.bf16.msra.mxu0 0
      %3552 = vmatprep.subr.bf16.mxu0 0
      %3553 = vmatpush1.bf16.msra.mxu0 0
      %3554 = vmatprep.subr.bf16.mxu0 0
      %3555 = vmatpush1.bf16.msra.mxu0 0
      %3556 = vmatprep.subr.bf16.mxu0 0
      %3557 = vmatpush1.bf16.msra.mxu0 0
      %3558 = vmatprep.subr.bf16.mxu0 0
      %3559 = vmatpush1.bf16.msra.mxu0 0
      %3560 = vmatprep.subr.bf16.mxu0 0
      %3561 = vmatpush1.bf16.msra.mxu0 0
      %3562 = vmatprep.mubr.bf16.mxu0 0
      %3563 = vmatmul.mubr.bf16.gmra.mrb[0].mxu0 %v3480
      %v3564 = vpop.f32.mrb[0].mxu0
      %v3565 = vadd.f32 0.0, %v3564
      %v3566 = vpop.f32.mrb[0].mxu0
      %v3567 = vpop.f32.mrb[0].mxu0
      %v3568 = vadd.f32 0.0, %v3567
      %v3569 = vpop.f32.mrb[0].mxu0
      %3570 = vmatprep.mubr.bf16.mxu0 0
      %3571 = vmatmul.mubr.bf16.gmra.mrb[0].mxu0 %v3483
      %v3572 = vpop.f32.mrb[0].mxu0
      %v3573 = vadd.f32 0.0, %v3572
      %v3574 = vpop.f32.mrb[0].mxu0
      %v3575 = vpop.f32.mrb[0].mxu0
      %v3576 = vadd.f32 0.0, %v3575
      %v3577 = vpop.f32.mrb[0].mxu0
      %3578 = vmatprep.mubr.bf16.mxu0 0
      %3579 = vmatmul.mubr.bf16.gmra.mrb[0].mxu0 %v3486
      %v3580 = vpop.f32.mrb[0].mxu0
      %v3581 = vadd.f32 0.0, %v3580
      %v3582 = vpop.f32.mrb[0].mxu0
      %v3583 = vpop.f32.mrb[0].mxu0
      %v3584 = vadd.f32 0.0, %v3583
      %v3585 = vpop.f32.mrb[0].mxu0
      %3586 = vmatprep.mubr.bf16.mxu0 0
      %3587 = vmatmul.mubr.bf16.gmra.mrb[0].mxu0 %v3489
      %v3588 = vpop.f32.mrb[0].mxu0
      %v3589 = vadd.f32 0.0, %v3588
      %v3590 = vpop.f32.mrb[0].mxu0
      %v3591 = vpop.f32.mrb[0].mxu0
      %v3592 = vadd.f32 0.0, %v3591
      %v3593 = vpop.f32.mrb[0].mxu0
      %3594 = vmatprep.mubr.bf16.mxu0 0
      %3595 = vmatmul.mubr.bf16.gmra.mrb[0].mxu0 %v3492
      %v3596 = vpop.f32.mrb[0].mxu0
      %v3597 = vadd.f32 0.0, %v3596
      %v3598 = vpop.f32.mrb[0].mxu0
      %v3599 = vpop.f32.mrb[0].mxu0
      %v3600 = vadd.f32 0.0, %v3599
      %v3601 = vpop.f32.mrb[0].mxu0
      %3602 = vmatprep.mubr.bf16.mxu0 0
      %3603 = vmatmul.mubr.bf16.gmra.mrb[0].mxu0 %v3495
      %v3604 = vpop.f32.mrb[0].mxu0
      %v3605 = vadd.f32 0.0, %v3604
      %v3606 = vpop.f32.mrb[0].mxu0
      %v3607 = vpop.f32.mrb[0].mxu0
      %v3608 = vadd.f32 0.0, %v3607
      %v3609 = vpop.f32.mrb[0].mxu0
      %3610 = vmatprep.mubr.bf16.mxu0 0
      %3611 = vmatmul.mubr.bf16.gmra.mrb[0].mxu0 %v3498
      %v3612 = vpop.f32.mrb[0].mxu0
      %v3613 = vadd.f32 0.0, %v3612
      %v3614 = vpop.f32.mrb[0].mxu0
      %v3615 = vpop.f32.mrb[0].mxu0
      %v3616 = vadd.f32 0.0, %v3615
      %v3617 = vpop.f32.mrb[0].mxu0
      %3618 = vmatprep.mubr.bf16.mxu0 0
      %3619 = vmatmul.mubr.bf16.gmra.mrb[0].mxu0 %v3501
      %v3620 = vpop.f32.mrb[0].mxu0
      %v3621 = vadd.f32 0.0, %v3620
      %v3622 = vpop.f32.mrb[0].mxu0
      %v3623 = vpop.f32.mrb[0].mxu0
      %v3624 = vadd.f32 0.0, %v3623
      %v3625 = vpop.f32.mrb[0].mxu0
      %3626 = vmatprep.mubr.bf16.mxu0 0
      %3627 = vmatmul.mubr.bf16.gmra.mrb[0].mxu0 %v3504
      %v3628 = vpop.f32.mrb[0].mxu0
      %v3629 = vadd.f32 0.0, %v3628
      %v3630 = vpop.f32.mrb[0].mxu0
      %v3631 = vpop.f32.mrb[0].mxu0
      %v3632 = vadd.f32 0.0, %v3631
      %v3633 = vpop.f32.mrb[0].mxu0
      %3634 = vmatprep.mubr.bf16.mxu0 0
      %3635 = vmatmul.mubr.bf16.gmra.mrb[0].mxu0 %v3507
      %v3636 = vpop.f32.mrb[0].mxu0
      %v3637 = vadd.f32 0.0, %v3636
      %v3638 = vpop.f32.mrb[0].mxu0
      %v3639 = vpop.f32.mrb[0].mxu0
      %v3640 = vadd.f32 0.0, %v3639
      %v3641 = vpop.f32.mrb[0].mxu0
      %3642 = vmatprep.mubr.bf16.mxu0 0
      %3643 = vmatmul.mubr.bf16.gmra.mrb[0].mxu0 %v3510
      %v3644 = vpop.f32.mrb[0].mxu0
      %v3645 = vadd.f32 0.0, %v3644
      %v3646 = vpop.f32.mrb[0].mxu0
      %v3647 = vpop.f32.mrb[0].mxu0
      %v3648 = vadd.f32 0.0, %v3647
      %v3649 = vpop.f32.mrb[0].mxu0
      %3650 = vmatprep.mubr.bf16.mxu0 0
      %3651 = vmatmul.mubr.bf16.gmra.mrb[0].mxu0 %v3513
      %v3652 = vpop.f32.mrb[0].mxu0
      %v3653 = vadd.f32 0.0, %v3652
      %v3654 = vpop.f32.mrb[0].mxu0
      %v3655 = vpop.f32.mrb[0].mxu0
      %v3656 = vadd.f32 0.0, %v3655
      %v3657 = vpop.f32.mrb[0].mxu0
      %3658 = vmatprep.mubr.bf16.mxu0 0
      %3659 = vmatmul.mubr.bf16.gmra.mrb[0].mxu0 %v3516
      %v3660 = vpop.f32.mrb[0].mxu0
      %v3661 = vadd.f32 0.0, %v3660
      %v3662 = vpop.f32.mrb[0].mxu0
      %v3663 = vpop.f32.mrb[0].mxu0
      %v3664 = vadd.f32 0.0, %v3663
      %v3665 = vpop.f32.mrb[0].mxu0
      %3666 = vmatprep.mubr.bf16.mxu0 0
      %3667 = vmatmul.mubr.bf16.gmra.mrb[0].mxu0 %v3519
      %v3668 = vpop.f32.mrb[0].mxu0
      %v3669 = vadd.f32 0.0, %v3668
      %v3670 = vpop.f32.mrb[0].mxu0
      %v3671 = vpop.f32.mrb[0].mxu0
      %v3672 = vadd.f32 0.0, %v3671
      %v3673 = vpop.f32.mrb[0].mxu0
      %3674 = vmatprep.mubr.bf16.mxu0 0
      %3675 = vmatmul.mubr.bf16.gmra.mrb[0].mxu0 %v3522
      %v3676 = vpop.f32.mrb[0].mxu0
      %v3677 = vadd.f32 0.0, %v3676
      %v3678 = vpop.f32.mrb[0].mxu0
      %v3679 = vpop.f32.mrb[0].mxu0
      %v3680 = vadd.f32 0.0, %v3679
      %v3681 = vpop.f32.mrb[0].mxu0
      %3682 = vmatprep.mubr.bf16.mxu0 0
      %3683 = vmatmul.mubr.bf16.gmra.mrb[0].mxu0 %v3525
      %v3684 = vpop.f32.mrb[0].mxu0
      %v3685 = vadd.f32 0.0, %v3684
      %v3686 = vpop.f32.mrb[0].mxu0
      %v3687 = vpop.f32.mrb[0].mxu0
      %v3688 = vadd.f32 0.0, %v3687
      %v3689 = vpop.f32.mrb[0].mxu0
      %3690 = vdwg.mxu0
      %v3691 = vadd.f32 %v3396, %v3565
      %v3692 = vadd.f32 %v3397, %v3568
      %v3693 = vadd.f32 %v3398, %v3573
      %v3694 = vadd.f32 %v3399, %v3576
      %v3695 = vadd.f32 %v3400, %v3581
      %v3696 = vadd.f32 %v3401, %v3584
      %v3697 = vadd.f32 %v3402, %v3589
      %v3698 = vadd.f32 %v3403, %v3592
      %v3699 = vadd.f32 %v3404, %v3597
      %v3700 = vadd.f32 %v3405, %v3600
      %v3701 = vadd.f32 %v3406, %v3605
      %v3702 = vadd.f32 %v3407, %v3608
      %v3703 = vadd.f32 %v3408, %v3613
      %v3704 = vadd.f32 %v3409, %v3616
      %v3705 = vadd.f32 %v3410, %v3621
      %v3706 = vadd.f32 %v3411, %v3624
      %v3707 = vadd.f32 %v3412, %v3629
      %v3708 = vadd.f32 %v3413, %v3632
      %v3709 = vadd.f32 %v3414, %v3637
      %v3710 = vadd.f32 %v3415, %v3640
      %v3711 = vadd.f32 %v3416, %v3645
      %v3712 = vadd.f32 %v3417, %v3648
      %v3713 = vadd.f32 %v3418, %v3653
      %v3714 = vadd.f32 %v3419, %v3656
      %v3715 = vadd.f32 %v3420, %v3661
      %v3716 = vadd.f32 %v3421, %v3664
      %v3717 = vadd.f32 %v3422, %v3669
      %v3718 = vadd.f32 %v3423, %v3672
      %v3719 = vadd.f32 %v3424, %v3677
      %v3720 = vadd.f32 %v3425, %v3680
      %v3721 = vadd.f32 %v3426, %v3685
      %v3722 = vadd.f32 %v3427, %v3688
      %v3723 = vld [vmem:[%s7] sm:$0x1]
      %v3725 = vlaneseq
      %v3726 = vshrl.u32 %v3725, 7
      %v3727 = vsub.s32 0, %v3726
      %v3728 = vrot.slane %v3723, %v3727
      %v3730 = vmul.f32 %v3691, %v3728
      %v3731 = vmul.f32 %v3692, %v3728
      %v3732 = vmul.f32 %v3693, %v3728
      %v3733 = vmul.f32 %v3694, %v3728
      %v3734 = vmul.f32 %v3695, %v3728
      %v3735 = vmul.f32 %v3696, %v3728
      %v3736 = vmul.f32 %v3697, %v3728
      %v3737 = vmul.f32 %v3698, %v3728
      %v3738 = vmul.f32 %v3699, %v3728
      %v3739 = vmul.f32 %v3700, %v3728
      %v3740 = vmul.f32 %v3701, %v3728
      %v3741 = vmul.f32 %v3702, %v3728
      %v3742 = vmul.f32 %v3703, %v3728
      %v3743 = vmul.f32 %v3704, %v3728
      %v3744 = vmul.f32 %v3705, %v3728
      %v3745 = vmul.f32 %v3706, %v3728
      %v3746 = vmul.f32 %v3707, %v3728
      %v3747 = vmul.f32 %v3708, %v3728
      %v3748 = vmul.f32 %v3709, %v3728
      %v3749 = vmul.f32 %v3710, %v3728
      %v3750 = vmul.f32 %v3711, %v3728
      %v3751 = vmul.f32 %v3712, %v3728
      %v3752 = vmul.f32 %v3713, %v3728
      %v3753 = vmul.f32 %v3714, %v3728
      %v3754 = vmul.f32 %v3715, %v3728
      %v3755 = vmul.f32 %v3716, %v3728
      %v3756 = vmul.f32 %v3717, %v3728
      %v3757 = vmul.f32 %v3718, %v3728
      %v3758 = vmul.f32 %v3719, %v3728
      %v3759 = vmul.f32 %v3720, %v3728
      %v3760 = vmul.f32 %v3721, %v3728
      %v3761 = vmul.f32 %v3722, %v3728
      %v3762 = vld [vmem:[%s8] sm:$0x1]
      %v3764 = vlaneseq
      %v3765 = vshrl.u32 %v3764, 7
      %v3766 = vsub.s32 0, %v3765
      %v3767 = vrot.slane %v3762, %v3766
      %v3769 = vadd.f32 %v3730, %v3767
      %v3770 = vadd.f32 %v3731, %v3767
      %v3771 = vadd.f32 %v3732, %v3767
      %v3772 = vadd.f32 %v3733, %v3767
      %v3773 = vadd.f32 %v3734, %v3767
      %v3774 = vadd.f32 %v3735, %v3767
      %v3775 = vadd.f32 %v3736, %v3767
      %v3776 = vadd.f32 %v3737, %v3767
      %v3777 = vadd.f32 %v3738, %v3767
      %v3778 = vadd.f32 %v3739, %v3767
      %v3779 = vadd.f32 %v3740, %v3767
      %v3780 = vadd.f32 %v3741, %v3767
      %v3781 = vadd.f32 %v3742, %v3767
      %v3782 = vadd.f32 %v3743, %v3767
      %v3783 = vadd.f32 %v3744, %v3767
      %v3784 = vadd.f32 %v3745, %v3767
      %v3785 = vadd.f32 %v3746, %v3767
      %v3786 = vadd.f32 %v3747, %v3767
      %v3787 = vadd.f32 %v3748, %v3767
      %v3788 = vadd.f32 %v3749, %v3767
      %v3789 = vadd.f32 %v3750, %v3767
      %v3790 = vadd.f32 %v3751, %v3767
      %v3791 = vadd.f32 %v3752, %v3767
      %v3792 = vadd.f32 %v3753, %v3767
      %v3793 = vadd.f32 %v3754, %v3767
      %v3794 = vadd.f32 %v3755, %v3767
      %v3795 = vadd.f32 %v3756, %v3767
      %v3796 = vadd.f32 %v3757, %v3767
      %v3797 = vadd.f32 %v3758, %v3767
      %v3798 = vadd.f32 %v3759, %v3767
      %v3799 = vadd.f32 %v3760, %v3767
      %v3800 = vadd.f32 %v3761, %v3767
      %v3801 = vmax.f32 %v3769, 0.0
      %v3802 = vmax.f32 %v3770, 0.0
      %v3803 = vmax.f32 %v3771, 0.0
      %v3804 = vmax.f32 %v3772, 0.0
      %v3805 = vmax.f32 %v3773, 0.0
      %v3806 = vmax.f32 %v3774, 0.0
      %v3807 = vmax.f32 %v3775, 0.0
      %v3808 = vmax.f32 %v3776, 0.0
      %v3809 = vmax.f32 %v3777, 0.0
      %v3810 = vmax.f32 %v3778, 0.0
      %v3811 = vmax.f32 %v3779, 0.0
      %v3812 = vmax.f32 %v3780, 0.0
      %v3813 = vmax.f32 %v3781, 0.0
      %v3814 = vmax.f32 %v3782, 0.0
      %v3815 = vmax.f32 %v3783, 0.0
      %v3816 = vmax.f32 %v3784, 0.0
      %v3817 = vmax.f32 %v3785, 0.0
      %v3818 = vmax.f32 %v3786, 0.0
      %v3819 = vmax.f32 %v3787, 0.0
      %v3820 = vmax.f32 %v3788, 0.0
      %v3821 = vmax.f32 %v3789, 0.0
      %v3822 = vmax.f32 %v3790, 0.0
      %v3823 = vmax.f32 %v3791, 0.0
      %v3824 = vmax.f32 %v3792, 0.0
      %v3825 = vmax.f32 %v3793, 0.0
      %v3826 = vmax.f32 %v3794, 0.0
      %v3827 = vmax.f32 %v3795, 0.0
      %v3828 = vmax.f32 %v3796, 0.0
      %v3829 = vmax.f32 %v3797, 0.0
      %v3830 = vmax.f32 %v3798, 0.0
      %v3831 = vmax.f32 %v3799, 0.0
      %v3832 = vmax.f32 %v3800, 0.0
      %v3833 = vpack.c.bf16 %v3802, %v3801
      %v3834 = vpack.c.bf16 %v3804, %v3803
      %v3835 = vpack.c.bf16 %v3806, %v3805
      %v3836 = vpack.c.bf16 %v3808, %v3807
      %v3837 = vpack.c.bf16 %v3810, %v3809
      %v3838 = vpack.c.bf16 %v3812, %v3811
      %v3839 = vpack.c.bf16 %v3814, %v3813
      %v3840 = vpack.c.bf16 %v3816, %v3815
      %v3841 = vpack.c.bf16 %v3818, %v3817
      %v3842 = vpack.c.bf16 %v3820, %v3819
      %v3843 = vpack.c.bf16 %v3822, %v3821
      %v3844 = vpack.c.bf16 %v3824, %v3823
      %v3845 = vpack.c.bf16 %v3826, %v3825
      %v3846 = vpack.c.bf16 %v3828, %v3827
      %v3847 = vpack.c.bf16 %v3830, %v3829
      %v3848 = vpack.c.bf16 %v3832, %v3831
      %v3849 = vld [vmem:[%s9] sm:$0x3]
      %v3850 = vpack.c.bf16 %v3849, %v3849
      %v3852 = vsel %vm503, %v3833, 0
      %v3855 = vsel %vm503, %v3834, 0
      %v3858 = vsel %vm503, %v3835, 0
      %v3861 = vsel %vm503, %v3836, 0
      %v3864 = vsel %vm503, %v3837, 0
      %v3867 = vsel %vm503, %v3838, 0
      %v3870 = vsel %vm503, %v3839, 0
      %v3873 = vsel %vm503, %v3840, 0
      %v3876 = vsel %vm503, %v3841, 0
      %v3879 = vsel %vm503, %v3842, 0
      %v3882 = vsel %vm503, %v3843, 0
      %v3885 = vsel %vm503, %v3844, 0
      %v3888 = vsel %vm503, %v3845, 0
      %v3891 = vsel %vm503, %v3846, 0
      %v3894 = vsel %vm503, %v3847, 0
      %v3897 = vsel %vm503, %v3848, 0
      %v3900 = vsel %vm1280, %v3850, 0
      %3902 = vmatprep.subr.bf16.mxu0 0
      %3903 = vmatpush1.bf16.msra.mxu0 %v3900
      %3904 = vmatprep.subr.bf16.mxu0 0
      %3905 = vmatpush1.bf16.msra.mxu0 0
      %3906 = vmatprep.subr.bf16.mxu0 0
      %3907 = vmatpush1.bf16.msra.mxu0 0
      %3908 = vmatprep.subr.bf16.mxu0 0
      %3909 = vmatpush1.bf16.msra.mxu0 0
      %3910 = vmatprep.subr.bf16.mxu0 0
      %3911 = vmatpush1.bf16.msra.mxu0 0
      %3912 = vmatprep.subr.bf16.mxu0 0
      %3913 = vmatpush1.bf16.msra.mxu0 0
      %3914 = vmatprep.subr.bf16.mxu0 0
      %3915 = vmatpush1.bf16.msra.mxu0 0
      %3916 = vmatprep.subr.bf16.mxu0 0
      %3917 = vmatpush1.bf16.msra.mxu0 0
      %3918 = vmatprep.subr.bf16.mxu0 0
      %3919 = vmatpush1.bf16.msra.mxu0 0
      %3920 = vmatprep.subr.bf16.mxu0 0
      %3921 = vmatpush1.bf16.msra.mxu0 0
      %3922 = vmatprep.subr.bf16.mxu0 0
      %3923 = vmatpush1.bf16.msra.mxu0 0
      %3924 = vmatprep.subr.bf16.mxu0 0
      %3925 = vmatpush1.bf16.msra.mxu0 0
      %3926 = vmatprep.subr.bf16.mxu0 0
      %3927 = vmatpush1.bf16.msra.mxu0 0
      %3928 = vmatprep.subr.bf16.mxu0 0
      %3929 = vmatpush1.bf16.msra.mxu0 0
      %3930 = vmatprep.subr.bf16.mxu0 0
      %3931 = vmatpush1.bf16.msra.mxu0 0
      %3932 = vmatprep.subr.bf16.mxu0 0
      %3933 = vmatpush1.bf16.msra.mxu0 0
      %3934 = vmatprep.mubr.bf16.mxu0 0
      %3935 = vmatmul.mubr.bf16.gmra.mrb[0].mxu0 %v3852
      %v3936 = vpop.f32.mrb[0].mxu0
      %v3937 = vadd.f32 0.0, %v3936
      %v3938 = vpop.f32.mrb[0].mxu0
      %v3939 = vpop.f32.mrb[0].mxu0
      %v3940 = vadd.f32 0.0, %v3939
      %v3941 = vpop.f32.mrb[0].mxu0
      %3942 = vmatprep.mubr.bf16.mxu0 0
      %3943 = vmatmul.mubr.bf16.gmra.mrb[0].mxu0 %v3855
      %v3944 = vpop.f32.mrb[0].mxu0
      %v3945 = vadd.f32 0.0, %v3944
      %v3946 = vpop.f32.mrb[0].mxu0
      %v3947 = vpop.f32.mrb[0].mxu0
      %v3948 = vadd.f32 0.0, %v3947
      %v3949 = vpop.f32.mrb[0].mxu0
      %3950 = vmatprep.mubr.bf16.mxu0 0
      %3951 = vmatmul.mubr.bf16.gmra.mrb[0].mxu0 %v3858
      %v3952 = vpop.f32.mrb[0].mxu0
      %v3953 = vadd.f32 0.0, %v3952
      %v3954 = vpop.f32.mrb[0].mxu0
      %v3955 = vpop.f32.mrb[0].mxu0
      %v3956 = vadd.f32 0.0, %v3955
      %v3957 = vpop.f32.mrb[0].mxu0
      %3958 = vmatprep.mubr.bf16.mxu0 0
      %3959 = vmatmul.mubr.bf16.gmra.mrb[0].mxu0 %v3861
      %v3960 = vpop.f32.mrb[0].mxu0
      %v3961 = vadd.f32 0.0, %v3960
      %v3962 = vpop.f32.mrb[0].mxu0
      %v3963 = vpop.f32.mrb[0].mxu0
      %v3964 = vadd.f32 0.0, %v3963
      %v3965 = vpop.f32.mrb[0].mxu0
      %3966 = vmatprep.mubr.bf16.mxu0 0
      %3967 = vmatmul.mubr.bf16.gmra.mrb[0].mxu0 %v3864
      %v3968 = vpop.f32.mrb[0].mxu0
      %v3969 = vadd.f32 0.0, %v3968
      %v3970 = vpop.f32.mrb[0].mxu0
      %v3971 = vpop.f32.mrb[0].mxu0
      %v3972 = vadd.f32 0.0, %v3971
      %v3973 = vpop.f32.mrb[0].mxu0
      %3974 = vmatprep.mubr.bf16.mxu0 0
      %3975 = vmatmul.mubr.bf16.gmra.mrb[0].mxu0 %v3867
      %v3976 = vpop.f32.mrb[0].mxu0
      %v3977 = vadd.f32 0.0, %v3976
      %v3978 = vpop.f32.mrb[0].mxu0
      %v3979 = vpop.f32.mrb[0].mxu0
      %v3980 = vadd.f32 0.0, %v3979
      %v3981 = vpop.f32.mrb[0].mxu0
      %3982 = vmatprep.mubr.bf16.mxu0 0
      %3983 = vmatmul.mubr.bf16.gmra.mrb[0].mxu0 %v3870
      %v3984 = vpop.f32.mrb[0].mxu0
      %v3985 = vadd.f32 0.0, %v3984
      %v3986 = vpop.f32.mrb[0].mxu0
      %v3987 = vpop.f32.mrb[0].mxu0
      %v3988 = vadd.f32 0.0, %v3987
      %v3989 = vpop.f32.mrb[0].mxu0
      %3990 = vmatprep.mubr.bf16.mxu0 0
      %3991 = vmatmul.mubr.bf16.gmra.mrb[0].mxu0 %v3873
      %v3992 = vpop.f32.mrb[0].mxu0
      %v3993 = vadd.f32 0.0, %v3992
      %v3994 = vpop.f32.mrb[0].mxu0
      %v3995 = vpop.f32.mrb[0].mxu0
      %v3996 = vadd.f32 0.0, %v3995
      %v3997 = vpop.f32.mrb[0].mxu0
      %3998 = vmatprep.mubr.bf16.mxu0 0
      %3999 = vmatmul.mubr.bf16.gmra.mrb[0].mxu0 %v3876
      %v4000 = vpop.f32.mrb[0].mxu0
      %v4001 = vadd.f32 0.0, %v4000
      %v4002 = vpop.f32.mrb[0].mxu0
      %v4003 = vpop.f32.mrb[0].mxu0
      %v4004 = vadd.f32 0.0, %v4003
      %v4005 = vpop.f32.mrb[0].mxu0
      %4006 = vmatprep.mubr.bf16.mxu0 0
      %4007 = vmatmul.mubr.bf16.gmra.mrb[0].mxu0 %v3879
      %v4008 = vpop.f32.mrb[0].mxu0
      %v4009 = vadd.f32 0.0, %v4008
      %v4010 = vpop.f32.mrb[0].mxu0
      %v4011 = vpop.f32.mrb[0].mxu0
      %v4012 = vadd.f32 0.0, %v4011
      %v4013 = vpop.f32.mrb[0].mxu0
      %4014 = vmatprep.mubr.bf16.mxu0 0
      %4015 = vmatmul.mubr.bf16.gmra.mrb[0].mxu0 %v3882
      %v4016 = vpop.f32.mrb[0].mxu0
      %v4017 = vadd.f32 0.0, %v4016
      %v4018 = vpop.f32.mrb[0].mxu0
      %v4019 = vpop.f32.mrb[0].mxu0
      %v4020 = vadd.f32 0.0, %v4019
      %v4021 = vpop.f32.mrb[0].mxu0
      %4022 = vmatprep.mubr.bf16.mxu0 0
      %4023 = vmatmul.mubr.bf16.gmra.mrb[0].mxu0 %v3885
      %v4024 = vpop.f32.mrb[0].mxu0
      %v4025 = vadd.f32 0.0, %v4024
      %v4026 = vpop.f32.mrb[0].mxu0
      %v4027 = vpop.f32.mrb[0].mxu0
      %v4028 = vadd.f32 0.0, %v4027
      %v4029 = vpop.f32.mrb[0].mxu0
      %4030 = vmatprep.mubr.bf16.mxu0 0
      %4031 = vmatmul.mubr.bf16.gmra.mrb[0].mxu0 %v3888
      %v4032 = vpop.f32.mrb[0].mxu0
      %v4033 = vadd.f32 0.0, %v4032
      %v4034 = vpop.f32.mrb[0].mxu0
      %v4035 = vpop.f32.mrb[0].mxu0
      %v4036 = vadd.f32 0.0, %v4035
      %v4037 = vpop.f32.mrb[0].mxu0
      %4038 = vmatprep.mubr.bf16.mxu0 0
      %4039 = vmatmul.mubr.bf16.gmra.mrb[0].mxu0 %v3891
      %v4040 = vpop.f32.mrb[0].mxu0
      %v4041 = vadd.f32 0.0, %v4040
      %v4042 = vpop.f32.mrb[0].mxu0
      %v4043 = vpop.f32.mrb[0].mxu0
      %v4044 = vadd.f32 0.0, %v4043
      %v4045 = vpop.f32.mrb[0].mxu0
      %4046 = vmatprep.mubr.bf16.mxu0 0
      %4047 = vmatmul.mubr.bf16.gmra.mrb[0].mxu0 %v3894
      %v4048 = vpop.f32.mrb[0].mxu0
      %v4049 = vadd.f32 0.0, %v4048
      %v4050 = vpop.f32.mrb[0].mxu0
      %v4051 = vpop.f32.mrb[0].mxu0
      %v4052 = vadd.f32 0.0, %v4051
      %v4053 = vpop.f32.mrb[0].mxu0
      %4054 = vmatprep.mubr.bf16.mxu0 0
      %4055 = vmatmul.mubr.bf16.gmra.mrb[0].mxu0 %v3897
      %v4056 = vpop.f32.mrb[0].mxu0
      %v4057 = vadd.f32 0.0, %v4056
      %v4058 = vpop.f32.mrb[0].mxu0
      %v4059 = vpop.f32.mrb[0].mxu0
      %v4060 = vadd.f32 0.0, %v4059
      %v4061 = vpop.f32.mrb[0].mxu0
      %4062 = vdwg.mxu0
      %v4063 = vld [vmem:[%s10] sm:$0x1]
      %v4065 = vlaneseq
      %v4066 = vshrl.u32 %v4065, 7
      %v4067 = vsub.s32 0, %v4066
      %v4068 = vrot.slane %v4063, %v4067
      %v4070 = vmul.f32 %v3937, %v4068
      %v4071 = vmul.f32 %v3940, %v4068
      %v4072 = vmul.f32 %v3945, %v4068
      %v4073 = vmul.f32 %v3948, %v4068
      %v4074 = vmul.f32 %v3953, %v4068
      %v4075 = vmul.f32 %v3956, %v4068
      %v4076 = vmul.f32 %v3961, %v4068
      %v4077 = vmul.f32 %v3964, %v4068
      %v4078 = vmul.f32 %v3969, %v4068
      %v4079 = vmul.f32 %v3972, %v4068
      %v4080 = vmul.f32 %v3977, %v4068
      %v4081 = vmul.f32 %v3980, %v4068
      %v4082 = vmul.f32 %v3985, %v4068
      %v4083 = vmul.f32 %v3988, %v4068
      %v4084 = vmul.f32 %v3993, %v4068
      %v4085 = vmul.f32 %v3996, %v4068
      %v4086 = vmul.f32 %v4001, %v4068
      %v4087 = vmul.f32 %v4004, %v4068
      %v4088 = vmul.f32 %v4009, %v4068
      %v4089 = vmul.f32 %v4012, %v4068
      %v4090 = vmul.f32 %v4017, %v4068
      %v4091 = vmul.f32 %v4020, %v4068
      %v4092 = vmul.f32 %v4025, %v4068
      %v4093 = vmul.f32 %v4028, %v4068
      %v4094 = vmul.f32 %v4033, %v4068
      %v4095 = vmul.f32 %v4036, %v4068
      %v4096 = vmul.f32 %v4041, %v4068
      %v4097 = vmul.f32 %v4044, %v4068
      %v4098 = vmul.f32 %v4049, %v4068
      %v4099 = vmul.f32 %v4052, %v4068
      %v4100 = vmul.f32 %v4057, %v4068
      %v4101 = vmul.f32 %v4060, %v4068
      %v4102 = vld [vmem:[%s11] sm:$0x1]
      %v4104 = vlaneseq
      %v4105 = vshrl.u32 %v4104, 7
      %v4106 = vsub.s32 0, %v4105
      %v4107 = vrot.slane %v4102, %v4106
      %v4109 = vadd.f32 %v4070, %v4107
      %v4110 = vadd.f32 %v4071, %v4107
      %v4111 = vadd.f32 %v4072, %v4107
      %v4112 = vadd.f32 %v4073, %v4107
      %v4113 = vadd.f32 %v4074, %v4107
      %v4114 = vadd.f32 %v4075, %v4107
      %v4115 = vadd.f32 %v4076, %v4107
      %v4116 = vadd.f32 %v4077, %v4107
      %v4117 = vadd.f32 %v4078, %v4107
      %v4118 = vadd.f32 %v4079, %v4107
      %v4119 = vadd.f32 %v4080, %v4107
      %v4120 = vadd.f32 %v4081, %v4107
      %v4121 = vadd.f32 %v4082, %v4107
      %v4122 = vadd.f32 %v4083, %v4107
      %v4123 = vadd.f32 %v4084, %v4107
      %v4124 = vadd.f32 %v4085, %v4107
      %v4125 = vadd.f32 %v4086, %v4107
      %v4126 = vadd.f32 %v4087, %v4107
      %v4127 = vadd.f32 %v4088, %v4107
      %v4128 = vadd.f32 %v4089, %v4107
      %v4129 = vadd.f32 %v4090, %v4107
      %v4130 = vadd.f32 %v4091, %v4107
      %v4131 = vadd.f32 %v4092, %v4107
      %v4132 = vadd.f32 %v4093, %v4107
      %v4133 = vadd.f32 %v4094, %v4107
      %v4134 = vadd.f32 %v4095, %v4107
      %v4135 = vadd.f32 %v4096, %v4107
      %v4136 = vadd.f32 %v4097, %v4107
      %v4137 = vadd.f32 %v4098, %v4107
      %v4138 = vadd.f32 %v4099, %v4107
      %v4139 = vadd.f32 %v4100, %v4107
      %v4140 = vadd.f32 %v4101, %v4107
      %v4141 = vld [vmem:[%s475] sm:$0xff]
      %v4142 = vld [vmem:[%s475 + $0x8] sm:$0xff]
      %v4143 = vld [vmem:[%s475 + $0x10] sm:$0xff]
      %v4144 = vld [vmem:[%s475 + $0x18] sm:$0xff]
      %v4145 = vld [vmem:[%s475 + $0x20] sm:$0xff]
      %v4146 = vld [vmem:[%s475 + $0x28] sm:$0xff]
      %v4147 = vld [vmem:[%s475 + $0x30] sm:$0xff]
      %v4148 = vld [vmem:[%s475 + $0x38] sm:$0xff]
      %v4149 = vld [vmem:[%s475 + $0x40] sm:$0xff]
      %v4150 = vld [vmem:[%s475 + $0x48] sm:$0xff]
      %v4151 = vld [vmem:[%s475 + $0x50] sm:$0xff]
      %v4152 = vld [vmem:[%s475 + $0x58] sm:$0xff]
      %v4153 = vld [vmem:[%s475 + $0x60] sm:$0xff]
      %v4154 = vld [vmem:[%s475 + $0x68] sm:$0xff]
      %v4155 = vld [vmem:[%s475 + $0x70] sm:$0xff]
      %v4156 = vld [vmem:[%s475 + $0x78] sm:$0xff]
      %v4157 = vld [vmem:[%s475 + $0x80] sm:$0xff]
      %v4158 = vld [vmem:[%s475 + $0x88] sm:$0xff]
      %v4159 = vld [vmem:[%s475 + $0x90] sm:$0xff]
      %v4160 = vld [vmem:[%s475 + $0x98] sm:$0xff]
      %v4161 = vld [vmem:[%s475 + $0xa0] sm:$0xff]
      %v4162 = vld [vmem:[%s475 + $0xa8] sm:$0xff]
      %v4163 = vld [vmem:[%s475 + $0xb0] sm:$0xff]
      %v4164 = vld [vmem:[%s475 + $0xb8] sm:$0xff]
      %v4165 = vld [vmem:[%s475 + $0xc0] sm:$0xff]
      %v4166 = vld [vmem:[%s475 + $0xc8] sm:$0xff]
      %v4167 = vld [vmem:[%s475 + $0xd0] sm:$0xff]
      %v4168 = vld [vmem:[%s475 + $0xd8] sm:$0xff]
      %v4169 = vld [vmem:[%s475 + $0xe0] sm:$0xff]
      %v4170 = vld [vmem:[%s475 + $0xe8] sm:$0xff]
      %v4171 = vld [vmem:[%s475 + $0xf0] sm:$0xff]
      %v4172 = vld [vmem:[%s475 + $0xf8] sm:$0xff]
      %v4173 = vadd.f32 %v4109, %v4141
      %v4174 = vadd.f32 %v4110, %v4142
      %v4175 = vadd.f32 %v4111, %v4143
      %v4176 = vadd.f32 %v4112, %v4144
      %v4177 = vadd.f32 %v4113, %v4145
      %v4178 = vadd.f32 %v4114, %v4146
      %v4179 = vadd.f32 %v4115, %v4147
      %v4180 = vadd.f32 %v4116, %v4148
      %v4181 = vadd.f32 %v4117, %v4149
      %v4182 = vadd.f32 %v4118, %v4150
      %v4183 = vadd.f32 %v4119, %v4151
      %v4184 = vadd.f32 %v4120, %v4152
      %v4185 = vadd.f32 %v4121, %v4153
      %v4186 = vadd.f32 %v4122, %v4154
      %v4187 = vadd.f32 %v4123, %v4155
      %v4188 = vadd.f32 %v4124, %v4156
      %v4189 = vadd.f32 %v4125, %v4157
      %v4190 = vadd.f32 %v4126, %v4158
      %v4191 = vadd.f32 %v4127, %v4159
      %v4192 = vadd.f32 %v4128, %v4160
      %v4193 = vadd.f32 %v4129, %v4161
      %v4194 = vadd.f32 %v4130, %v4162
      %v4195 = vadd.f32 %v4131, %v4163
      %v4196 = vadd.f32 %v4132, %v4164
      %v4197 = vadd.f32 %v4133, %v4165
      %v4198 = vadd.f32 %v4134, %v4166
      %v4199 = vadd.f32 %v4135, %v4167
      %v4200 = vadd.f32 %v4136, %v4168
      %v4201 = vadd.f32 %v4137, %v4169
      %v4202 = vadd.f32 %v4138, %v4170
      %v4203 = vadd.f32 %v4139, %v4171
      %v4204 = vadd.f32 %v4140, %v4172
      %v4205 = vmax.f32 %v4173, 0.0
      %v4206 = vmax.f32 %v4174, 0.0
      %v4207 = vmax.f32 %v4175, 0.0
      %v4208 = vmax.f32 %v4176, 0.0
      %v4209 = vmax.f32 %v4177, 0.0
      %v4210 = vmax.f32 %v4178, 0.0
      %v4211 = vmax.f32 %v4179, 0.0
      %v4212 = vmax.f32 %v4180, 0.0
      %v4213 = vmax.f32 %v4181, 0.0
      %v4214 = vmax.f32 %v4182, 0.0
      %v4215 = vmax.f32 %v4183, 0.0
      %v4216 = vmax.f32 %v4184, 0.0
      %v4217 = vmax.f32 %v4185, 0.0
      %v4218 = vmax.f32 %v4186, 0.0
      %v4219 = vmax.f32 %v4187, 0.0
      %v4220 = vmax.f32 %v4188, 0.0
      %v4221 = vmax.f32 %v4189, 0.0
      %v4222 = vmax.f32 %v4190, 0.0
      %v4223 = vmax.f32 %v4191, 0.0
      %v4224 = vmax.f32 %v4192, 0.0
      %v4225 = vmax.f32 %v4193, 0.0
      %v4226 = vmax.f32 %v4194, 0.0
      %v4227 = vmax.f32 %v4195, 0.0
      %v4228 = vmax.f32 %v4196, 0.0
      %v4229 = vmax.f32 %v4197, 0.0
      %v4230 = vmax.f32 %v4198, 0.0
      %v4231 = vmax.f32 %v4199, 0.0
      %v4232 = vmax.f32 %v4200, 0.0
      %v4233 = vmax.f32 %v4201, 0.0
      %v4234 = vmax.f32 %v4202, 0.0
      %v4235 = vmax.f32 %v4203, 0.0
      %v4236 = vmax.f32 %v4204, 0.0
      %4237 = vst.msk [vmem:[%s496] sm:$0xff] %vm613, %v4205
      %4238 = vst.msk [vmem:[%s496 + $0x8] sm:$0xff] %vm613, %v4206
      %4239 = vst.msk [vmem:[%s496 + $0x10] sm:$0xff] %vm613, %v4207
      %4240 = vst.msk [vmem:[%s496 + $0x18] sm:$0xff] %vm613, %v4208
      %4241 = vst.msk [vmem:[%s496 + $0x20] sm:$0xff] %vm613, %v4209
      %4242 = vst.msk [vmem:[%s496 + $0x28] sm:$0xff] %vm613, %v4210
      %4243 = vst.msk [vmem:[%s496 + $0x30] sm:$0xff] %vm613, %v4211
      %4244 = vst.msk [vmem:[%s496 + $0x38] sm:$0xff] %vm613, %v4212
      %4245 = vst.msk [vmem:[%s496 + $0x40] sm:$0xff] %vm613, %v4213
      %4246 = vst.msk [vmem:[%s496 + $0x48] sm:$0xff] %vm613, %v4214
      %4247 = vst.msk [vmem:[%s496 + $0x50] sm:$0xff] %vm613, %v4215
      %4248 = vst.msk [vmem:[%s496 + $0x58] sm:$0xff] %vm613, %v4216
      %4249 = vst.msk [vmem:[%s496 + $0x60] sm:$0xff] %vm613, %v4217
      %4250 = vst.msk [vmem:[%s496 + $0x68] sm:$0xff] %vm613, %v4218
      %4251 = vst.msk [vmem:[%s496 + $0x70] sm:$0xff] %vm613, %v4219
      %4252 = vst.msk [vmem:[%s496 + $0x78] sm:$0xff] %vm613, %v4220
      %4253 = vst.msk [vmem:[%s496 + $0x80] sm:$0xff] %vm613, %v4221
      %4254 = vst.msk [vmem:[%s496 + $0x88] sm:$0xff] %vm613, %v4222
      %4255 = vst.msk [vmem:[%s496 + $0x90] sm:$0xff] %vm613, %v4223
      %4256 = vst.msk [vmem:[%s496 + $0x98] sm:$0xff] %vm613, %v4224
      %4257 = vst.msk [vmem:[%s496 + $0xa0] sm:$0xff] %vm613, %v4225
      %4258 = vst.msk [vmem:[%s496 + $0xa8] sm:$0xff] %vm613, %v4226
      %4259 = vst.msk [vmem:[%s496 + $0xb0] sm:$0xff] %vm613, %v4227
      %4260 = vst.msk [vmem:[%s496 + $0xb8] sm:$0xff] %vm613, %v4228
      %4261 = vst.msk [vmem:[%s496 + $0xc0] sm:$0xff] %vm613, %v4229
      %4262 = vst.msk [vmem:[%s496 + $0xc8] sm:$0xff] %vm613, %v4230
      %4263 = vst.msk [vmem:[%s496 + $0xd0] sm:$0xff] %vm613, %v4231
      %4264 = vst.msk [vmem:[%s496 + $0xd8] sm:$0xff] %vm613, %v4232
      %4265 = vst.msk [vmem:[%s496 + $0xe0] sm:$0xff] %vm613, %v4233
      %4266 = vst.msk [vmem:[%s496 + $0xe8] sm:$0xff] %vm613, %v4234
      %4267 = vst.msk [vmem:[%s496 + $0xf0] sm:$0xff] %vm613, %v4235
      %4268 = vst.msk [vmem:[%s496 + $0xf8] sm:$0xff] %vm613, %v4236
      %s4269 = smul.u32 16, %s28
      %p4270 = scmp.lt.s32.totalorder %s27, 1
      %s4271 = scalar_select %p4270, %s27, 1
      %p4272 = scmp.lt.s32.totalorder %s4269, 15
      %s4273 = scalar_select %p4272, %s4269, 15
      %s4274 = smul.addr %s4273, 2
      %s4275 = smul.addr %s4271, 32
      %s4276 = sadd.s32 %s4274, %s4275
      %s4277 = smul.addr %s4276, 8
      %s4278 = scalar_lea.vmem %s12, %s4277
      // Predicated region
      $region77: #{tpu_custom_call.1} parent=67 // pred_check
        %p4279 = pneg %p324
      $region78: #{tpu_custom_call.1} parent=67 // pred_check_branch
        %4281 = sbr.rel (%p4279) target = $region80
      $region79: #{tpu_custom_call.1} parent=67 // pred_region
        %s4282 = smul.u32 16, %s28
      $region80: #{tpu_custom_call.1} parent=67 // pred_fallthru
        _
    $region68: #{tpu_custom_call.1} parent=5 // pred_fallthru
      _
    %p4283 = scmp.le.s32.totalorder 2, %s18
    // Predicated region
    $region81: #{tpu_custom_call.1} parent=5 // pred_check
      %p4284 = pneg %p4283
    $region82: #{tpu_custom_call.1} parent=5 // pred_check_branch
      %4286 = sbr.rel (%p4284) target = $region84
    $region83: #{tpu_custom_call.1} parent=5 // pred_region
      %s4287 = ssub.s32 %s18, 2
      // Predicated region
      $region85: #{tpu_custom_call.1} parent=83 // pred_check
        %p4288 = pneg %p330
      $region86: #{tpu_custom_call.1} parent=83 // pred_check_branch
        %4290 = sbr.rel (%p4288) target = $region88
      $region87: #{tpu_custom_call.1} parent=83 // pred_region
        %s4291 = smul.u32 16, %s30
        %p4292 = scmp.lt.s32.totalorder %s29, 1
        %s4293 = scalar_select %p4292, %s29, 1
        %p4294 = scmp.lt.s32.totalorder %s4291, 15
        %s4295 = scalar_select %p4294, %s4291, 15
        %s4296 = smul.addr %s4295, 2
        %s4297 = smul.addr %s4293, 32
        %s4298 = sadd.s32 %s4296, %s4297
        %s4299 = smul.addr %s4298, 8
        %s4300 = scalar_lea.vmem %s12, %s4299
      $region88: #{tpu_custom_call.1} parent=83 // pred_fallthru
        _
    $region84: #{tpu_custom_call.1} parent=5 // pred_fallthru
      _
  $region6: #{tpu_custom_call.1} parent=0 // loop_footer
    %s22 = sadd.s32 1, %s18
  $region7: #{tpu_custom_call.1} parent=0 // loop_footer_branch
    %17 = sbr.rel target = $region3
  $region8: #{tpu_custom_call.1} parent=0 // loop_exit
    _

</llo_original>
